<compile_context>
chip_gen: v7x
topology: tpu7x:2x2x1
jax: 0.10.0
libtpu: 0.0.40
codegen_flags: <defaults>
</compile_context>

<pallas_src>
import jax
import jax.numpy as jnp
from jax.experimental import pallas as pl
from jax.experimental.pallas import tpu as pltpu


# ----------------------------- model dimensions ---------------------------- #
SKIP_CH = 4        # skip_channels
IN_CH = 8          # in_channels of the block (x channels (4) + skip (4))
OUT_CH = 8         # out_channels
ALPHA = 0.5

CHI = IN_CH - int(ALPHA * IN_CH)       # 4  high-freq channels after concat
CLI = int(ALPHA * IN_CH)               # 4  low-freq  channels after concat
CHO = OUT_CH - int(ALPHA * OUT_CH)     # 4  high-freq mid channels
CLO = int(ALPHA * OUT_CH)              # 4  low-freq  mid channels
CSH = SKIP_CH - int(SKIP_CH * ALPHA)   # 2  skip -> high channels
CSL = int(SKIP_CH * ALPHA)             # 2  skip -> low  channels
XHC = CHI - CSH                        # 2  high-freq channels of input x_h
XLC = CLI - CSL                        # 2  low-freq  channels of input x_l

H_HI, W_HI = 16, 16                    # high-freq spatial (after x2 upsample)
H_LO, W_LO = 8, 8                      # low-freq  spatial (after x2 upsample)
HW_HI = H_HI * W_HI                    # 256
HW_LO = H_LO * W_LO                    # 64
HW_XL = (H_LO // 2) * (W_LO // 2)      # 16 (input x_l is 4x4)


# ------------------------- in-kernel helper routines ------------------------ #

def _dot(a, b):
    return jnp.dot(a, b, preferred_element_type=jnp.float32)


def _conv3x3_flat(x, wmat, w_img, xpad_ref, col_ref):
    """'Same' 3x3 conv on a (Cin, H*W) lane-flat activation.

    A flat zero-padded copy and a (9*Cin, H*W) im2col slab are assembled in
    VMEM scratch with static-offset slices, then contracted with the
    (Cout, 9*Cin) weight in a single MXU matmul.
    """
    cin, hw = x.shape
    # flat zero-padded row: [w_img+1 zeros | x | w_img+1 zeros]
    xpad_ref[...] = jnp.zeros(xpad_ref.shape, jnp.float32)
    xpad_ref[:, w_img + 1:w_img + 1 + hw] = x
    # image-column index of every flat spatial position (for border masking)
    col_w = jax.lax.broadcasted_iota(jnp.int32, (cin, hw), 1) % w_img
    t = 0
    for dh in (-1, 0, 1):
        for dw in (-1, 0, 1):
            start = (w_img + 1) + dh * w_img + dw      # static offset
            piece = xpad_ref[:, start:start + hw]      # shifted copy (Cin, HW)
            # positions that crossed the left/right image border must be
            # zeroed; top/bottom borders already read the zero pad.
            if dw == -1:
                piece = jnp.where(col_w >= 1, piece, 0.0)
            elif dw == 1:
                piece = jnp.where(col_w <= w_img - 2, piece, 0.0)
            col_ref[t * cin:(t + 1) * cin, :] = piece
            t += 1
    return _dot(wmat, col_ref[...])                    # (Cout, H*W)


# ------------------------------ fused kernel -------------------------------- #

def _fused_decoder_kernel(
        xh_ref, xl_ref, skip_ref,                  # per-image activations
        u48_ref, u816_ref, p168_ref,               # constant resample matrices
        chw_ref, chb_ref, clw_ref, clb_ref,        # CatSkipOctave 1x1 convs
        w1hh_ref, w1l_ref, w1hl_ref, b1h_ref, b1l_ref,   # OctaveConv2ReLU
        w2hh_ref, w2lh_ref, b2_ref,                # LastOctaveConv2ReLU
        out_ref,                                   # (1, OUT_CH, 256)
        xpad_hi, xpad_lo, col_hi, col_lo, cat_hi, cat_lo):   # VMEM scratch
    x_h = xh_ref[0]                      # (2, 64)   8x8  high-freq input
    x_l = xl_ref[0]                      # (2, 16)   4x4  low-freq  input
    skip = skip_ref[0]                   # (4, 256)  16x16 skip feature
    u48 = u48_ref[...]                   # (16, 64)  4x4  -> 8x8   nearest x2
    u816 = u816_ref[...]                 # (64, 256) 8x8  -> 16x16 nearest x2
    p168 = p168_ref[...]                 # (256, 64) 16x16 -> 8x8  2x2 avg-pool

    # --- OctaveInterpolate: nearest x2 on both octaves (MXU selection) ------ #
    xh_up = _dot(x_h, u816)              # (2, 256)
    xl_up = _dot(x_l, u48)               # (2, 64)

    # --- CatSkipOctave: 1x1 conv / avgpool+1x1 conv on skip, channel concat - #
    skip_h = _dot(chw_ref[...], skip) + chb_ref[...]               # (2, 256)
    skip_l = _dot(clw_ref[...], _dot(skip, p168)) + clb_ref[...]   # (2, 64)
    cat_hi[0:XHC, :] = xh_up
    cat_hi[XHC:CHI, :] = skip_h
    cat_lo[0:XLC, :] = xl_up
    cat_lo[XLC:CLI, :] = skip_l
    cat_h = cat_hi[...]                  # (4, 256)
    cat_l = cat_lo[...]                  # (4, 64)

    # --- OctaveConv2ReLU (BN folded into weights / biases) ------------------ #
    hh = _conv3x3_flat(cat_h, w1hh_ref[...], W_HI, xpad_hi, col_hi)     # (4, 256)
    lh_ll = _conv3x3_flat(cat_l, w1l_ref[...], W_LO, xpad_lo, col_lo)   # (8, 64)
    lh = lh_ll[0:CHO, :]                 # low->high path (4, 64)
    ll = lh_ll[CHO:CHO + CLO, :]         # low->low  path (4, 64)
    cat_h_pool = _dot(cat_h, p168)       # (4, 64)  2x2 avg-pool of cat_h
    hl = _conv3x3_flat(cat_h_pool, w1hl_ref[...], W_LO, xpad_lo, col_lo)  # (4, 64)

    y_h = jnp.maximum(hh + _dot(lh, u816) + b1h_ref[...], 0.0)     # (4, 256)
    y_l = jnp.maximum(ll + hl + b1l_ref[...], 0.0)                 # (4, 64)

    # --- LastOctaveConv2ReLU: merge both octaves into one full-res map ------ #
    hh2 = _conv3x3_flat(y_h, w2hh_ref[...], W_HI, xpad_hi, col_hi)  # (8, 256)
    lh2 = _conv3x3_flat(y_l, w2lh_ref[...], W_LO, xpad_lo, col_lo)  # (8, 64)
    out_ref[0] = jnp.maximum(hh2 + _dot(lh2, u816) + b2_ref[...], 0.0)


# ------------------------------ host wrapper -------------------------------- #

def last_octave_decoder_block(x_h, x_l, skip, kernel_params):
    """x_h: (N,2,8,8), x_l: (N,2,4,4), skip: (N,4,16,16) NCHW -> (N,8,16,16)."""
    n = x_h.shape[0]
    # flatten spatial onto the lane axis (pure metadata reshapes, no transpose)
    xh = x_h.reshape(n, XHC, HW_LO)            # (N, 2, 64)
    xl = x_l.reshape(n, XLC, HW_XL)            # (N, 2, 16)
    sk = skip.reshape(n, SKIP_CH, HW_HI)       # (N, 4, 256)

    def per_image(c, hw):
        return pl.BlockSpec((1, c, hw), lambda i: (i, 0, 0))

    def full2d(a):
        return pl.BlockSpec(a.shape, lambda i: (0, 0))

    out = pl.pallas_call(
        _fused_decoder_kernel,
        out_shape=jax.ShapeDtypeStruct((n, OUT_CH, HW_HI), jnp.float32),
        grid=(n,),
        in_specs=[per_image(XHC, HW_LO), per_image(XLC, HW_XL),
                  per_image(SKIP_CH, HW_HI)]
                 + [full2d(a) for a in kernel_params],
        out_specs=per_image(OUT_CH, HW_HI),
        scratch_shapes=[
            pltpu.VMEM((CHI, HW_HI + 2 * W_HI + 2), jnp.float32),   # xpad_hi
            pltpu.VMEM((CLI, HW_LO + 2 * W_LO + 2), jnp.float32),   # xpad_lo
            pltpu.VMEM((9 * CHI, HW_HI), jnp.float32),              # col_hi
            pltpu.VMEM((9 * CLI, HW_LO), jnp.float32),              # col_lo
            pltpu.VMEM((CHI, HW_HI), jnp.float32),                  # cat_hi
            pltpu.VMEM((CLI, HW_LO), jnp.float32),                  # cat_lo
        ],
        compiler_params=pltpu.CompilerParams(
            dimension_semantics=("parallel",)),
    )(xh, xl, sk, *kernel_params)
    return out.reshape(n, OUT_CH, H_HI, W_HI)   # (C, H*W) layout IS NCHW


# ---------------------------- parameters (synthetic) ------------------------ #

def fold_bn(gamma, beta, mean, var, eps=1e-5):
    scale = gamma / jnp.sqrt(var + eps)
    return scale, beta - mean * scale


def init_params(key):
    """Synthetic parameters.  Conv weights are HWIO; inference-mode BN is
    folded into the conv weights / biases (Conv2d bias=False before BN)."""
    keys = iter(jax.random.split(key, 40))

    def w(shape, s=0.1):
        return s * jax.random.normal(next(keys), shape, jnp.float32)

    def bn(c):
        gamma = 1.0 + 0.1 * jax.random.normal(next(keys), (c,), jnp.float32)
        beta = 0.1 * jax.random.normal(next(keys), (c,), jnp.float32)
        mean = 0.1 * jax.random.normal(next(keys), (c,), jnp.float32)
        var = jax.random.uniform(next(keys), (c,), jnp.float32, 0.5, 1.5)
        return fold_bn(gamma, beta, mean, var)

    p = {}
    # CatSkipOctave: two 1x1 convs (with bias)
    p['cat_h_w'] = w((SKIP_CH, CSH)); p['cat_h_b'] = w((CSH,))
    p['cat_l_w'] = w((SKIP_CH, CSL)); p['cat_l_b'] = w((CSL,))

    # OctaveConv2ReLU(IN_CH -> OUT_CH): 4 conv paths (bias=False) + BN_h / BN_l
    w1_hh, w1_hl = w((3, 3, CHI, CHO)), w((3, 3, CHI, CLO))
    w1_lh, w1_ll = w((3, 3, CLI, CHO)), w((3, 3, CLI, CLO))
    s_h, b_h = bn(CHO)
    s_l, b_l = bn(CLO)
    p['W1_hh'] = w1_hh * s_h; p['W1_lh'] = w1_lh * s_h; p['b1_h'] = b_h
    p['W1_ll'] = w1_ll * s_l; p['W1_hl'] = w1_hl * s_l; p['b1_l'] = b_l

    # LastOctaveConv2ReLU(OUT_CH -> OUT_CH): merge to one output map + BN
    w2_hh, w2_lh = w((3, 3, CHO, OUT_CH)), w((3, 3, CLO, OUT_CH))
    s2, b2 = bn(OUT_CH)
    p['W2_hh'] = w2_hh * s2; p['W2_lh'] = w2_lh * s2; p['b2'] = b2
    return p


def _conv_mat(w_hwio):
    """(3,3,Cin,Cout) HWIO -> (Cout, 9*Cin); rows are tap-major (dh, dw), then
    Cin -- exactly the in-kernel im2col ordering."""
    kh, kw, cin, cout = w_hwio.shape
    return w_hwio.reshape(kh * kw * cin, cout).T


def _upsample_matrix(h, w):
    """Nearest-x2 selection matrix (h*w, 4*h*w):  y_flat = x_flat @ U."""
    wh = 2 * w
    dst = jnp.arange(4 * h * w)
    src = (dst // wh // 2) * w + (dst % wh) // 2
    return (jnp.arange(h * w)[:, None] == src[None, :]).astype(jnp.float32)


def pack_kernel_params(p):
    """Order must match _fused_decoder_kernel's argument list."""
    u48 = _upsample_matrix(4, 4)                 # (16, 64)
    u816 = _upsample_matrix(H_LO, W_LO)          # (64, 256)
    p168 = 0.25 * u816.T                         # (256, 64) 2x2 avg-pool
    return (
        u48, u816, p168,
        p['cat_h_w'].T, p['cat_h_b'].reshape(CSH, 1),
        p['cat_l_w'].T, p['cat_l_b'].reshape(CSL, 1),
        _conv_mat(p['W1_hh']),
        jnp.concatenate([_conv_mat(p['W1_lh']), _conv_mat(p['W1_ll'])], axis=0),
        _conv_mat(p['W1_hl']),
        p['b1_h'].reshape(CHO, 1), p['b1_l'].reshape(CLO, 1),
        _conv_mat(p['W2_hh']), _conv_mat(p['W2_lh']),
        p['b2'].reshape(OUT_CH, 1),
    )


# --------------------------- pure-JAX reference ------------------------------ #

def reference_forward(x_h, x_l, skip, p):
    """Straightforward XLA implementation with identical semantics, used to
    validate the fused Pallas kernel."""
    hi = jax.lax.Precision.HIGHEST

    def up2(x):
        return jnp.repeat(jnp.repeat(x, 2, axis=2), 2, axis=3)

    def pool2(x):
        n, c, h, w = x.shape
        return x.reshape(n, c, h // 2, 2, w // 2, 2).mean(axis=(3, 5))

    def conv1x1(x, w, b):
        return jnp.einsum('io,nihw->nohw', w, x, precision=hi) + b[None, :, None, None]

    def conv3x3(x, w):
        return jax.lax.conv_general_dilated(
            x, w, window_strides=(1, 1), padding='SAME',
            dimension_numbers=('NCHW', 'HWIO', 'NCHW'), precision=hi)

    x_h, x_l = up2(x_h), up2(x_l)                        # OctaveInterpolate
    skip_h = conv1x1(skip, p['cat_h_w'], p['cat_h_b'])   # CatSkipOctave
    skip_l = conv1x1(pool2(skip), p['cat_l_w'], p['cat_l_b'])
    cat_h = jnp.concatenate([x_h, skip_h], axis=1)
    cat_l = jnp.concatenate([x_l, skip_l], axis=1)

    hh = conv3x3(cat_h, p['W1_hh'])                      # OctaveConv2ReLU
    lh = conv3x3(cat_l, p['W1_lh'])
    ll = conv3x3(cat_l, p['W1_ll'])
    hl = conv3x3(pool2(cat_h), p['W1_hl'])
    y_h = jax.nn.relu(hh + up2(lh) + p['b1_h'][None, :, None, None])
    y_l = jax.nn.relu(ll + hl + p['b1_l'][None, :, None, None])

    hh2 = conv3x3(y_h, p['W2_hh'])                       # LastOctaveConv2ReLU
    lh2 = conv3x3(y_l, p['W2_lh'])
    return jax.nn.relu(hh2 + up2(lh2) + p['b2'][None, :, None, None])


# ----------------------------------- main ------------------------------------ #

if __name__ == "__main__":
    key = jax.random.PRNGKey(0)
    k1, k2, k3, kp = jax.random.split(key, 4)

    N = 2
    # Octave features from the previous decoder stage + skip feature (NCHW):
    x_h = jax.random.normal(k1, (N, XHC, H_HI // 2, W_HI // 2), jnp.float32)  # (2,2,8,8)
    x_l = jax.random.normal(k2, (N, XLC, H_LO // 2, W_LO // 2), jnp.float32)  # (2,2,4,4)
    skip = jax.random.normal(k3, (N, SKIP_CH, H_HI, W_HI), jnp.float32)       # (2,4,16,16)

    params = init_params(kp)
    kparams = pack_kernel_params(params)

    fwd = jax.jit(lambda a, b, c: last_octave_decoder_block(a, b, c, kparams))
    out = jax.block_until_ready(fwd(x_h, x_l, skip))

    assert out.shape == (N, OUT_CH, H_HI, W_HI), out.shape
    assert out.dtype == jnp.float32
    assert bool(jnp.all(jnp.isfinite(out)))

    ref = jax.jit(reference_forward)(x_h, x_l, skip, params)
    max_err = float(jnp.max(jnp.abs(out - ref)))
    assert max_err < 5e-3, f"kernel/reference mismatch, max abs err = {max_err}"

    print("KERNEL_OK")
</pallas_src>

<mosaic_0001>
module attributes {stable_mosaic.version = 11 : i64} {
  func.func @_fused_decoder_kernel(%arg0: i32, %arg1: memref<1x2x64xf32, #tpu.memory_space<vmem>>, %arg2: memref<1x2x16xf32, #tpu.memory_space<vmem>>, %arg3: memref<1x4x256xf32, #tpu.memory_space<vmem>>, %arg4: memref<16x64xf32, #tpu.memory_space<vmem>>, %arg5: memref<64x256xf32, #tpu.memory_space<vmem>>, %arg6: memref<256x64xf32, #tpu.memory_space<vmem>>, %arg7: memref<2x4xf32, #tpu.memory_space<vmem>>, %arg8: memref<2x1xf32, #tpu.memory_space<vmem>>, %arg9: memref<2x4xf32, #tpu.memory_space<vmem>>, %arg10: memref<2x1xf32, #tpu.memory_space<vmem>>, %arg11: memref<4x36xf32, #tpu.memory_space<vmem>>, %arg12: memref<8x36xf32, #tpu.memory_space<vmem>>, %arg13: memref<4x36xf32, #tpu.memory_space<vmem>>, %arg14: memref<4x1xf32, #tpu.memory_space<vmem>>, %arg15: memref<4x1xf32, #tpu.memory_space<vmem>>, %arg16: memref<8x36xf32, #tpu.memory_space<vmem>>, %arg17: memref<8x36xf32, #tpu.memory_space<vmem>>, %arg18: memref<8x1xf32, #tpu.memory_space<vmem>>, %arg19: memref<1x8x256xf32, #tpu.memory_space<vmem>>, %arg20: memref<4x290xf32, #tpu.memory_space<vmem>>, %arg21: memref<4x82xf32, #tpu.memory_space<vmem>>, %arg22: memref<36x256xf32, #tpu.memory_space<vmem>>, %arg23: memref<36x64xf32, #tpu.memory_space<vmem>>, %arg24: memref<4x256xf32, #tpu.memory_space<vmem>>, %arg25: memref<4x64xf32, #tpu.memory_space<vmem>>) attributes {dimension_semantics = [#tpu.dimension_semantics<parallel>], iteration_bounds = array<i64: 2>, scalar_prefetch = 0 : i64, scratch_operands = 6 : i64, tpu.core_type = #tpu.core_type<tc>, window_params = [{transform_indices = @transform_0, window_bounds = array<i64: 1, 2, 64>}, {transform_indices = @transform_1, window_bounds = array<i64: 1, 2, 16>}, {transform_indices = @transform_2, window_bounds = array<i64: 1, 4, 256>}, {pipeline_mode = #tpu.pipeline_mode<synchronous>, transform_indices = @transform_3, window_bounds = array<i64: 16, 64>}, {pipeline_mode = #tpu.pipeline_mode<synchronous>, transform_indices = @transform_4, window_bounds = array<i64: 64, 256>}, {pipeline_mode = #tpu.pipeline_mode<synchronous>, transform_indices = @transform_5, window_bounds = array<i64: 256, 64>}, {pipeline_mode = #tpu.pipeline_mode<synchronous>, transform_indices = @transform_6, window_bounds = array<i64: 2, 4>}, {pipeline_mode = #tpu.pipeline_mode<synchronous>, transform_indices = @transform_7, window_bounds = array<i64: 2, 1>}, {pipeline_mode = #tpu.pipeline_mode<synchronous>, transform_indices = @transform_8, window_bounds = array<i64: 2, 4>}, {pipeline_mode = #tpu.pipeline_mode<synchronous>, transform_indices = @transform_9, window_bounds = array<i64: 2, 1>}, {pipeline_mode = #tpu.pipeline_mode<synchronous>, transform_indices = @transform_10, window_bounds = array<i64: 4, 36>}, {pipeline_mode = #tpu.pipeline_mode<synchronous>, transform_indices = @transform_11, window_bounds = array<i64: 8, 36>}, {pipeline_mode = #tpu.pipeline_mode<synchronous>, transform_indices = @transform_12, window_bounds = array<i64: 4, 36>}, {pipeline_mode = #tpu.pipeline_mode<synchronous>, transform_indices = @transform_13, window_bounds = array<i64: 4, 1>}, {pipeline_mode = #tpu.pipeline_mode<synchronous>, transform_indices = @transform_14, window_bounds = array<i64: 4, 1>}, {pipeline_mode = #tpu.pipeline_mode<synchronous>, transform_indices = @transform_15, window_bounds = array<i64: 8, 36>}, {pipeline_mode = #tpu.pipeline_mode<synchronous>, transform_indices = @transform_16, window_bounds = array<i64: 8, 36>}, {pipeline_mode = #tpu.pipeline_mode<synchronous>, transform_indices = @transform_17, window_bounds = array<i64: 8, 1>}, {transform_indices = @transform_18, window_bounds = array<i64: 1, 8, 256>}]} {
    %c0 = arith.constant 0 : index
    %c0_0 = arith.constant 0 : index
    %c0_1 = arith.constant 0 : index
    %0 = vector.load %arg1[%c0, %c0_0, %c0_1] : memref<1x2x64xf32, #tpu.memory_space<vmem>>, vector<1x2x64xf32>
    %1 = vector.shape_cast %0 : vector<1x2x64xf32> to vector<2x64xf32>
    %c0_2 = arith.constant 0 : index
    %c0_3 = arith.constant 0 : index
    %c0_4 = arith.constant 0 : index
    %2 = vector.load %arg2[%c0_2, %c0_3, %c0_4] : memref<1x2x16xf32, #tpu.memory_space<vmem>>, vector<1x2x16xf32>
    %3 = vector.shape_cast %2 : vector<1x2x16xf32> to vector<2x16xf32>
    %c0_5 = arith.constant 0 : index
    %c0_6 = arith.constant 0 : index
    %c0_7 = arith.constant 0 : index
    %4 = vector.load %arg3[%c0_5, %c0_6, %c0_7] : memref<1x4x256xf32, #tpu.memory_space<vmem>>, vector<1x4x256xf32>
    %5 = vector.shape_cast %4 : vector<1x4x256xf32> to vector<4x256xf32>
    %c0_8 = arith.constant 0 : index
    %c0_9 = arith.constant 0 : index
    %6 = vector.load %arg4[%c0_8, %c0_9] : memref<16x64xf32, #tpu.memory_space<vmem>>, vector<16x64xf32>
    %c0_10 = arith.constant 0 : index
    %c0_11 = arith.constant 0 : index
    %7 = vector.load %arg5[%c0_10, %c0_11] : memref<64x256xf32, #tpu.memory_space<vmem>>, vector<64x256xf32>
    %c0_12 = arith.constant 0 : index
    %c0_13 = arith.constant 0 : index
    %8 = vector.load %arg6[%c0_12, %c0_13] : memref<256x64xf32, #tpu.memory_space<vmem>>, vector<256x64xf32>
    %cst = arith.constant dense<0.000000e+00> : vector<2x256xf32>
    %9 = tpu.matmul %1, %7, %cst {dimension_numbers = #tpu.dot_dimension_numbers<[1], [0], [0], [1], [0, 0, 1, 1], [], []>} : vector<2x64xf32>, vector<64x256xf32>, vector<2x256xf32> -> vector<2x256xf32>
    %cst_14 = arith.constant dense<0.000000e+00> : vector<2x64xf32>
    %10 = tpu.matmul %3, %6, %cst_14 {dimension_numbers = #tpu.dot_dimension_numbers<[1], [0], [0], [1], [0, 0, 1, 1], [], []>} : vector<2x16xf32>, vector<16x64xf32>, vector<2x64xf32> -> vector<2x64xf32>
    %c0_15 = arith.constant 0 : index
    %c0_16 = arith.constant 0 : index
    %11 = vector.load %arg7[%c0_15, %c0_16] : memref<2x4xf32, #tpu.memory_space<vmem>>, vector<2x4xf32>
    %cst_17 = arith.constant dense<0.000000e+00> : vector<2x256xf32>
    %12 = tpu.matmul %11, %5, %cst_17 {dimension_numbers = #tpu.dot_dimension_numbers<[1], [0], [0], [1], [0, 0, 1, 1], [], []>} : vector<2x4xf32>, vector<4x256xf32>, vector<2x256xf32> -> vector<2x256xf32>
    %c0_18 = arith.constant 0 : index
    %c0_19 = arith.constant 0 : index
    %13 = vector.load %arg8[%c0_18, %c0_19] : memref<2x1xf32, #tpu.memory_space<vmem>>, vector<2x1xf32>
    %14 = vector.broadcast %13 : vector<2x1xf32> to vector<2x256xf32>
    %15 = arith.addf %12, %14 : vector<2x256xf32>
    %c0_20 = arith.constant 0 : index
    %c0_21 = arith.constant 0 : index
    %16 = vector.load %arg9[%c0_20, %c0_21] : memref<2x4xf32, #tpu.memory_space<vmem>>, vector<2x4xf32>
    %cst_22 = arith.constant dense<0.000000e+00> : vector<4x64xf32>
    %17 = tpu.matmul %5, %8, %cst_22 {dimension_numbers = #tpu.dot_dimension_numbers<[1], [0], [0], [1], [0, 0, 1, 1], [], []>} : vector<4x256xf32>, vector<256x64xf32>, vector<4x64xf32> -> vector<4x64xf32>
    %cst_23 = arith.constant dense<0.000000e+00> : vector<2x64xf32>
    %18 = tpu.matmul %16, %17, %cst_23 {dimension_numbers = #tpu.dot_dimension_numbers<[1], [0], [0], [1], [0, 0, 1, 1], [], []>} : vector<2x4xf32>, vector<4x64xf32>, vector<2x64xf32> -> vector<2x64xf32>
    %c0_24 = arith.constant 0 : index
    %c0_25 = arith.constant 0 : index
    %19 = vector.load %arg10[%c0_24, %c0_25] : memref<2x1xf32, #tpu.memory_space<vmem>>, vector<2x1xf32>
    %20 = vector.broadcast %19 : vector<2x1xf32> to vector<2x64xf32>
    %21 = arith.addf %18, %20 : vector<2x64xf32>
    %c0_26 = arith.constant 0 : index
    %c0_27 = arith.constant 0 : index
    %22 = vector.load %arg24[%c0_26, %c0_27] : memref<4x256xf32, #tpu.memory_space<vmem>>, vector<2x256xf32>
    tpu.vector_store %arg24[%c0_26, %c0_27], %9 {strides = array<i32>} : memref<4x256xf32, #tpu.memory_space<vmem>>, vector<2x256xf32>,
    %c2 = arith.constant 2 : index
    %c0_28 = arith.constant 0 : index
    %23 = vector.load %arg24[%c2, %c0_28] : memref<4x256xf32, #tpu.memory_space<vmem>>, vector<2x256xf32>
    tpu.vector_store %arg24[%c2, %c0_28], %15 {strides = array<i32>} : memref<4x256xf32, #tpu.memory_space<vmem>>, vector<2x256xf32>,
    %c0_29 = arith.constant 0 : index
    %c0_30 = arith.constant 0 : index
    %24 = vector.load %arg25[%c0_29, %c0_30] : memref<4x64xf32, #tpu.memory_space<vmem>>, vector<2x64xf32>
    tpu.vector_store %arg25[%c0_29, %c0_30], %10 {strides = array<i32>} : memref<4x64xf32, #tpu.memory_space<vmem>>, vector<2x64xf32>,
    %c2_31 = arith.constant 2 : index
    %c0_32 = arith.constant 0 : index
    %25 = vector.load %arg25[%c2_31, %c0_32] : memref<4x64xf32, #tpu.memory_space<vmem>>, vector<2x64xf32>
    tpu.vector_store %arg25[%c2_31, %c0_32], %21 {strides = array<i32>} : memref<4x64xf32, #tpu.memory_space<vmem>>, vector<2x64xf32>,
    %c0_33 = arith.constant 0 : index
    %c0_34 = arith.constant 0 : index
    %26 = vector.load %arg24[%c0_33, %c0_34] : memref<4x256xf32, #tpu.memory_space<vmem>>, vector<4x256xf32>
    %c0_35 = arith.constant 0 : index
    %c0_36 = arith.constant 0 : index
    %27 = vector.load %arg25[%c0_35, %c0_36] : memref<4x64xf32, #tpu.memory_space<vmem>>, vector<4x64xf32>
    %c0_37 = arith.constant 0 : index
    %c0_38 = arith.constant 0 : index
    %28 = vector.load %arg11[%c0_37, %c0_38] : memref<4x36xf32, #tpu.memory_space<vmem>>, vector<4x36xf32>
    %cst_39 = arith.constant 0.000000e+00 : f32
    %29 = vector.broadcast %cst_39 : f32 to vector<4x290xf32>
    %c0_40 = arith.constant 0 : index
    %c0_41 = arith.constant 0 : index
    %30 = vector.load %arg20[%c0_40, %c0_41] : memref<4x290xf32, #tpu.memory_space<vmem>>, vector<4x290xf32>
    tpu.vector_store %arg20[%c0_40, %c0_41], %29 {strides = array<i32>} : memref<4x290xf32, #tpu.memory_space<vmem>>, vector<4x290xf32>,
    %c0_42 = arith.constant 0 : index
    %c17 = arith.constant 17 : index
    %31 = vector.load %arg20[%c0_42, %c17] : memref<4x290xf32, #tpu.memory_space<vmem>>, vector<4x256xf32>
    tpu.vector_store %arg20[%c0_42, %c17], %26 {strides = array<i32>} : memref<4x290xf32, #tpu.memory_space<vmem>>, vector<4x256xf32>,
    %32 = tpu.iota {dimensions = array<i32: 1>} : vector<4x256xi32>
    %c16_i32 = arith.constant 16 : i32
    %c0_i32 = arith.constant 0 : i32
    %33 = arith.cmpi eq, %c16_i32, %c0_i32 : i32
    %c1_i32 = arith.constant 1 : i32
    %34 = arith.select %33, %c1_i32, %c16_i32 : i32
    %35 = vector.broadcast %34 : i32 to vector<4x256xi32>
    %36 = arith.remsi %32, %35 : vector<4x256xi32>
    %c0_i32_43 = arith.constant 0 : i32
    %37 = vector.broadcast %c0_i32_43 : i32 to vector<4x256xi32>
    %38 = arith.cmpi ne, %36, %37 : vector<4x256xi32>
    %c0_i32_44 = arith.constant 0 : i32
    %39 = vector.broadcast %c0_i32_44 : i32 to vector<4x256xi32>
    %40 = arith.cmpi slt, %36, %39 : vector<4x256xi32>
    %c0_i32_45 = arith.constant 0 : i32
    %41 = arith.cmpi slt, %34, %c0_i32_45 : i32
    %42 = vector.broadcast %41 : i1 to vector<4x256xi1>
    %43 = vector.broadcast %42 : vector<4x256xi1> to vector<4x256xi1>
    %44 = arith.xori %40, %43 : vector<4x256xi1>
    %45 = arith.andi %44, %38 : vector<4x256xi1>
    %46 = vector.broadcast %34 : i32 to vector<4x256xi32>
    %47 = arith.addi %36, %46 : vector<4x256xi32>
    %48 = arith.select %45, %47, %36 : vector<4x256xi1>, vector<4x256xi32>
    %c0_46 = arith.constant 0 : index
    %c0_47 = arith.constant 0 : index
    %49 = vector.load %arg20[%c0_46, %c0_47] : memref<4x290xf32, #tpu.memory_space<vmem>>, vector<4x256xf32>
    %c1_i32_48 = arith.constant 1 : i32
    %50 = vector.broadcast %c1_i32_48 : i32 to vector<4x256xi32>
    %51 = arith.cmpi sge, %48, %50 : vector<4x256xi32>
    %cst_49 = arith.constant 0.000000e+00 : f32
    %52 = vector.broadcast %cst_49 : f32 to vector<4x256xf32>
    %53 = arith.select %51, %49, %52 : vector<4x256xi1>, vector<4x256xf32>
    %c0_50 = arith.constant 0 : index
    %c0_51 = arith.constant 0 : index
    %54 = vector.load %arg22[%c0_50, %c0_51] : memref<36x256xf32, #tpu.memory_space<vmem>>, vector<4x256xf32>
    tpu.vector_store %arg22[%c0_50, %c0_51], %53 {strides = array<i32>} : memref<36x256xf32, #tpu.memory_space<vmem>>, vector<4x256xf32>,
    %c0_52 = arith.constant 0 : index
    %c1 = arith.constant 1 : index
    %55 = vector.load %arg20[%c0_52, %c1] : memref<4x290xf32, #tpu.memory_space<vmem>>, vector<4x256xf32>
    %c4 = arith.constant 4 : index
    %c0_53 = arith.constant 0 : index
    %56 = vector.load %arg22[%c4, %c0_53] : memref<36x256xf32, #tpu.memory_space<vmem>>, vector<4x256xf32>
    tpu.vector_store %arg22[%c4, %c0_53], %55 {strides = array<i32>} : memref<36x256xf32, #tpu.memory_space<vmem>>, vector<4x256xf32>,
    %c0_54 = arith.constant 0 : index
    %c2_55 = arith.constant 2 : index
    %57 = vector.load %arg20[%c0_54, %c2_55] : memref<4x290xf32, #tpu.memory_space<vmem>>, vector<4x256xf32>
    %c14_i32 = arith.constant 14 : i32
    %58 = vector.broadcast %c14_i32 : i32 to vector<4x256xi32>
    %59 = arith.cmpi sle, %48, %58 : vector<4x256xi32>
    %cst_56 = arith.constant 0.000000e+00 : f32
    %60 = vector.broadcast %cst_56 : f32 to vector<4x256xf32>
    %61 = arith.select %59, %57, %60 : vector<4x256xi1>, vector<4x256xf32>
    %c8 = arith.constant 8 : index
    %c0_57 = arith.constant 0 : index
    %62 = vector.load %arg22[%c8, %c0_57] : memref<36x256xf32, #tpu.memory_space<vmem>>, vector<4x256xf32>
    tpu.vector_store %arg22[%c8, %c0_57], %61 {strides = array<i32>} : memref<36x256xf32, #tpu.memory_space<vmem>>, vector<4x256xf32>,
    %c0_58 = arith.constant 0 : index
    %c16 = arith.constant 16 : index
    %63 = vector.load %arg20[%c0_58, %c16] : memref<4x290xf32, #tpu.memory_space<vmem>>, vector<4x256xf32>
    %c1_i32_59 = arith.constant 1 : i32
    %64 = vector.broadcast %c1_i32_59 : i32 to vector<4x256xi32>
    %65 = arith.cmpi sge, %48, %64 : vector<4x256xi32>
    %cst_60 = arith.constant 0.000000e+00 : f32
    %66 = vector.broadcast %cst_60 : f32 to vector<4x256xf32>
    %67 = arith.select %65, %63, %66 : vector<4x256xi1>, vector<4x256xf32>
    %c12 = arith.constant 12 : index
    %c0_61 = arith.constant 0 : index
    %68 = vector.load %arg22[%c12, %c0_61] : memref<36x256xf32, #tpu.memory_space<vmem>>, vector<4x256xf32>
    tpu.vector_store %arg22[%c12, %c0_61], %67 {strides = array<i32>} : memref<36x256xf32, #tpu.memory_space<vmem>>, vector<4x256xf32>,
    %c0_62 = arith.constant 0 : index
    %c17_63 = arith.constant 17 : index
    %69 = vector.load %arg20[%c0_62, %c17_63] : memref<4x290xf32, #tpu.memory_space<vmem>>, vector<4x256xf32>
    %c16_64 = arith.constant 16 : index
    %c0_65 = arith.constant 0 : index
    %70 = vector.load %arg22[%c16_64, %c0_65] : memref<36x256xf32, #tpu.memory_space<vmem>>, vector<4x256xf32>
    tpu.vector_store %arg22[%c16_64, %c0_65], %69 {strides = array<i32>} : memref<36x256xf32, #tpu.memory_space<vmem>>, vector<4x256xf32>,
    %c0_66 = arith.constant 0 : index
    %c18 = arith.constant 18 : index
    %71 = vector.load %arg20[%c0_66, %c18] : memref<4x290xf32, #tpu.memory_space<vmem>>, vector<4x256xf32>
    %c14_i32_67 = arith.constant 14 : i32
    %72 = vector.broadcast %c14_i32_67 : i32 to vector<4x256xi32>
    %73 = arith.cmpi sle, %48, %72 : vector<4x256xi32>
    %cst_68 = arith.constant 0.000000e+00 : f32
    %74 = vector.broadcast %cst_68 : f32 to vector<4x256xf32>
    %75 = arith.select %73, %71, %74 : vector<4x256xi1>, vector<4x256xf32>
    %c20 = arith.constant 20 : index
    %c0_69 = arith.constant 0 : index
    %76 = vector.load %arg22[%c20, %c0_69] : memref<36x256xf32, #tpu.memory_space<vmem>>, vector<4x256xf32>
    tpu.vector_store %arg22[%c20, %c0_69], %75 {strides = array<i32>} : memref<36x256xf32, #tpu.memory_space<vmem>>, vector<4x256xf32>,
    %c0_70 = arith.constant 0 : index
    %c32 = arith.constant 32 : index
    %77 = vector.load %arg20[%c0_70, %c32] : memref<4x290xf32, #tpu.memory_space<vmem>>, vector<4x256xf32>
    %c1_i32_71 = arith.constant 1 : i32
    %78 = vector.broadcast %c1_i32_71 : i32 to vector<4x256xi32>
    %79 = arith.cmpi sge, %48, %78 : vector<4x256xi32>
    %cst_72 = arith.constant 0.000000e+00 : f32
    %80 = vector.broadcast %cst_72 : f32 to vector<4x256xf32>
    %81 = arith.select %79, %77, %80 : vector<4x256xi1>, vector<4x256xf32>
    %c24 = arith.constant 24 : index
    %c0_73 = arith.constant 0 : index
    %82 = vector.load %arg22[%c24, %c0_73] : memref<36x256xf32, #tpu.memory_space<vmem>>, vector<4x256xf32>
    tpu.vector_store %arg22[%c24, %c0_73], %81 {strides = array<i32>} : memref<36x256xf32, #tpu.memory_space<vmem>>, vector<4x256xf32>,
    %c0_74 = arith.constant 0 : index
    %c33 = arith.constant 33 : index
    %83 = vector.load %arg20[%c0_74, %c33] : memref<4x290xf32, #tpu.memory_space<vmem>>, vector<4x256xf32>
    %c28 = arith.constant 28 : index
    %c0_75 = arith.constant 0 : index
    %84 = vector.load %arg22[%c28, %c0_75] : memref<36x256xf32, #tpu.memory_space<vmem>>, vector<4x256xf32>
    tpu.vector_store %arg22[%c28, %c0_75], %83 {strides = array<i32>} : memref<36x256xf32, #tpu.memory_space<vmem>>, vector<4x256xf32>,
    %c0_76 = arith.constant 0 : index
    %c34 = arith.constant 34 : index
    %85 = vector.load %arg20[%c0_76, %c34] : memref<4x290xf32, #tpu.memory_space<vmem>>, vector<4x256xf32>
    %c14_i32_77 = arith.constant 14 : i32
    %86 = vector.broadcast %c14_i32_77 : i32 to vector<4x256xi32>
    %87 = arith.cmpi sle, %48, %86 : vector<4x256xi32>
    %cst_78 = arith.constant 0.000000e+00 : f32
    %88 = vector.broadcast %cst_78 : f32 to vector<4x256xf32>
    %89 = arith.select %87, %85, %88 : vector<4x256xi1>, vector<4x256xf32>
    %c32_79 = arith.constant 32 : index
    %c0_80 = arith.constant 0 : index
    %90 = vector.load %arg22[%c32_79, %c0_80] : memref<36x256xf32, #tpu.memory_space<vmem>>, vector<4x256xf32>
    tpu.vector_store %arg22[%c32_79, %c0_80], %89 {strides = array<i32>} : memref<36x256xf32, #tpu.memory_space<vmem>>, vector<4x256xf32>,
    %c0_81 = arith.constant 0 : index
    %c0_82 = arith.constant 0 : index
    %91 = vector.load %arg22[%c0_81, %c0_82] : memref<36x256xf32, #tpu.memory_space<vmem>>, vector<36x256xf32>
    %cst_83 = arith.constant dense<0.000000e+00> : vector<4x256xf32>
    %92 = tpu.matmul %28, %91, %cst_83 {dimension_numbers = #tpu.dot_dimension_numbers<[1], [0], [0], [1], [0, 0, 1, 1], [], []>} : vector<4x36xf32>, vector<36x256xf32>, vector<4x256xf32> -> vector<4x256xf32>
    %c0_84 = arith.constant 0 : index
    %c0_85 = arith.constant 0 : index
    %93 = vector.load %arg12[%c0_84, %c0_85] : memref<8x36xf32, #tpu.memory_space<vmem>>, vector<8x36xf32>
    %cst_86 = arith.constant 0.000000e+00 : f32
    %94 = vector.broadcast %cst_86 : f32 to vector<4x82xf32>
    %c0_87 = arith.constant 0 : index
    %c0_88 = arith.constant 0 : index
    %95 = vector.load %arg21[%c0_87, %c0_88] : memref<4x82xf32, #tpu.memory_space<vmem>>, vector<4x82xf32>
    tpu.vector_store %arg21[%c0_87, %c0_88], %94 {strides = array<i32>} : memref<4x82xf32, #tpu.memory_space<vmem>>, vector<4x82xf32>,
    %c0_89 = arith.constant 0 : index
    %c9 = arith.constant 9 : index
    %96 = vector.load %arg21[%c0_89, %c9] : memref<4x82xf32, #tpu.memory_space<vmem>>, vector<4x64xf32>
    tpu.vector_store %arg21[%c0_89, %c9], %27 {strides = array<i32>} : memref<4x82xf32, #tpu.memory_space<vmem>>, vector<4x64xf32>,
    %97 = tpu.iota {dimensions = array<i32: 1>} : vector<4x64xi32>
    %c8_i32 = arith.constant 8 : i32
    %c0_i32_90 = arith.constant 0 : i32
    %98 = arith.cmpi eq, %c8_i32, %c0_i32_90 : i32
    %c1_i32_91 = arith.constant 1 : i32
    %99 = arith.select %98, %c1_i32_91, %c8_i32 : i32
    %100 = vector.broadcast %99 : i32 to vector<4x64xi32>
    %101 = arith.remsi %97, %100 : vector<4x64xi32>
    %c0_i32_92 = arith.constant 0 : i32
    %102 = vector.broadcast %c0_i32_92 : i32 to vector<4x64xi32>
    %103 = arith.cmpi ne, %101, %102 : vector<4x64xi32>
    %c0_i32_93 = arith.constant 0 : i32
    %104 = vector.broadcast %c0_i32_93 : i32 to vector<4x64xi32>
    %105 = arith.cmpi slt, %101, %104 : vector<4x64xi32>
    %c0_i32_94 = arith.constant 0 : i32
    %106 = arith.cmpi slt, %99, %c0_i32_94 : i32
    %107 = vector.broadcast %106 : i1 to vector<4x64xi1>
    %108 = vector.broadcast %107 : vector<4x64xi1> to vector<4x64xi1>
    %109 = arith.xori %105, %108 : vector<4x64xi1>
    %110 = arith.andi %109, %103 : vector<4x64xi1>
    %111 = vector.broadcast %99 : i32 to vector<4x64xi32>
    %112 = arith.addi %101, %111 : vector<4x64xi32>
    %113 = arith.select %110, %112, %101 : vector<4x64xi1>, vector<4x64xi32>
    %c0_95 = arith.constant 0 : index
    %c0_96 = arith.constant 0 : index
    %114 = vector.load %arg21[%c0_95, %c0_96] : memref<4x82xf32, #tpu.memory_space<vmem>>, vector<4x64xf32>
    %c1_i32_97 = arith.constant 1 : i32
    %115 = vector.broadcast %c1_i32_97 : i32 to vector<4x64xi32>
    %116 = arith.cmpi sge, %113, %115 : vector<4x64xi32>
    %cst_98 = arith.constant 0.000000e+00 : f32
    %117 = vector.broadcast %cst_98 : f32 to vector<4x64xf32>
    %118 = arith.select %116, %114, %117 : vector<4x64xi1>, vector<4x64xf32>
    %c0_99 = arith.constant 0 : index
    %c0_100 = arith.constant 0 : index
    %119 = vector.load %arg23[%c0_99, %c0_100] : memref<36x64xf32, #tpu.memory_space<vmem>>, vector<4x64xf32>
    tpu.vector_store %arg23[%c0_99, %c0_100], %118 {strides = array<i32>} : memref<36x64xf32, #tpu.memory_space<vmem>>, vector<4x64xf32>,
    %c0_101 = arith.constant 0 : index
    %c1_102 = arith.constant 1 : index
    %120 = vector.load %arg21[%c0_101, %c1_102] : memref<4x82xf32, #tpu.memory_space<vmem>>, vector<4x64xf32>
    %c4_103 = arith.constant 4 : index
    %c0_104 = arith.constant 0 : index
    %121 = vector.load %arg23[%c4_103, %c0_104] : memref<36x64xf32, #tpu.memory_space<vmem>>, vector<4x64xf32>
    tpu.vector_store %arg23[%c4_103, %c0_104], %120 {strides = array<i32>} : memref<36x64xf32, #tpu.memory_space<vmem>>, vector<4x64xf32>,
    %c0_105 = arith.constant 0 : index
    %c2_106 = arith.constant 2 : index
    %122 = vector.load %arg21[%c0_105, %c2_106] : memref<4x82xf32, #tpu.memory_space<vmem>>, vector<4x64xf32>
    %c6_i32 = arith.constant 6 : i32
    %123 = vector.broadcast %c6_i32 : i32 to vector<4x64xi32>
    %124 = arith.cmpi sle, %113, %123 : vector<4x64xi32>
    %cst_107 = arith.constant 0.000000e+00 : f32
    %125 = vector.broadcast %cst_107 : f32 to vector<4x64xf32>
    %126 = arith.select %124, %122, %125 : vector<4x64xi1>, vector<4x64xf32>
    %c8_108 = arith.constant 8 : index
    %c0_109 = arith.constant 0 : index
    %127 = vector.load %arg23[%c8_108, %c0_109] : memref<36x64xf32, #tpu.memory_space<vmem>>, vector<4x64xf32>
    tpu.vector_store %arg23[%c8_108, %c0_109], %126 {strides = array<i32>} : memref<36x64xf32, #tpu.memory_space<vmem>>, vector<4x64xf32>,
    %c0_110 = arith.constant 0 : index
    %c8_111 = arith.constant 8 : index
    %128 = vector.load %arg21[%c0_110, %c8_111] : memref<4x82xf32, #tpu.memory_space<vmem>>, vector<4x64xf32>
    %c1_i32_112 = arith.constant 1 : i32
    %129 = vector.broadcast %c1_i32_112 : i32 to vector<4x64xi32>
    %130 = arith.cmpi sge, %113, %129 : vector<4x64xi32>
    %cst_113 = arith.constant 0.000000e+00 : f32
    %131 = vector.broadcast %cst_113 : f32 to vector<4x64xf32>
    %132 = arith.select %130, %128, %131 : vector<4x64xi1>, vector<4x64xf32>
    %c12_114 = arith.constant 12 : index
    %c0_115 = arith.constant 0 : index
    %133 = vector.load %arg23[%c12_114, %c0_115] : memref<36x64xf32, #tpu.memory_space<vmem>>, vector<4x64xf32>
    tpu.vector_store %arg23[%c12_114, %c0_115], %132 {strides = array<i32>} : memref<36x64xf32, #tpu.memory_space<vmem>>, vector<4x64xf32>,
    %c0_116 = arith.constant 0 : index
    %c9_117 = arith.constant 9 : index
    %134 = vector.load %arg21[%c0_116, %c9_117] : memref<4x82xf32, #tpu.memory_space<vmem>>, vector<4x64xf32>
    %c16_118 = arith.constant 16 : index
    %c0_119 = arith.constant 0 : index
    %135 = vector.load %arg23[%c16_118, %c0_119] : memref<36x64xf32, #tpu.memory_space<vmem>>, vector<4x64xf32>
    tpu.vector_store %arg23[%c16_118, %c0_119], %134 {strides = array<i32>} : memref<36x64xf32, #tpu.memory_space<vmem>>, vector<4x64xf32>,
    %c0_120 = arith.constant 0 : index
    %c10 = arith.constant 10 : index
    %136 = vector.load %arg21[%c0_120, %c10] : memref<4x82xf32, #tpu.memory_space<vmem>>, vector<4x64xf32>
    %c6_i32_121 = arith.constant 6 : i32
    %137 = vector.broadcast %c6_i32_121 : i32 to vector<4x64xi32>
    %138 = arith.cmpi sle, %113, %137 : vector<4x64xi32>
    %cst_122 = arith.constant 0.000000e+00 : f32
    %139 = vector.broadcast %cst_122 : f32 to vector<4x64xf32>
    %140 = arith.select %138, %136, %139 : vector<4x64xi1>, vector<4x64xf32>
    %c20_123 = arith.constant 20 : index
    %c0_124 = arith.constant 0 : index
    %141 = vector.load %arg23[%c20_123, %c0_124] : memref<36x64xf32, #tpu.memory_space<vmem>>, vector<4x64xf32>
    tpu.vector_store %arg23[%c20_123, %c0_124], %140 {strides = array<i32>} : memref<36x64xf32, #tpu.memory_space<vmem>>, vector<4x64xf32>,
    %c0_125 = arith.constant 0 : index
    %c16_126 = arith.constant 16 : index
    %142 = vector.load %arg21[%c0_125, %c16_126] : memref<4x82xf32, #tpu.memory_space<vmem>>, vector<4x64xf32>
    %c1_i32_127 = arith.constant 1 : i32
    %143 = vector.broadcast %c1_i32_127 : i32 to vector<4x64xi32>
    %144 = arith.cmpi sge, %113, %143 : vector<4x64xi32>
    %cst_128 = arith.constant 0.000000e+00 : f32
    %145 = vector.broadcast %cst_128 : f32 to vector<4x64xf32>
    %146 = arith.select %144, %142, %145 : vector<4x64xi1>, vector<4x64xf32>
    %c24_129 = arith.constant 24 : index
    %c0_130 = arith.constant 0 : index
    %147 = vector.load %arg23[%c24_129, %c0_130] : memref<36x64xf32, #tpu.memory_space<vmem>>, vector<4x64xf32>
    tpu.vector_store %arg23[%c24_129, %c0_130], %146 {strides = array<i32>} : memref<36x64xf32, #tpu.memory_space<vmem>>, vector<4x64xf32>,
    %c0_131 = arith.constant 0 : index
    %c17_132 = arith.constant 17 : index
    %148 = vector.load %arg21[%c0_131, %c17_132] : memref<4x82xf32, #tpu.memory_space<vmem>>, vector<4x64xf32>
    %c28_133 = arith.constant 28 : index
    %c0_134 = arith.constant 0 : index
    %149 = vector.load %arg23[%c28_133, %c0_134] : memref<36x64xf32, #tpu.memory_space<vmem>>, vector<4x64xf32>
    tpu.vector_store %arg23[%c28_133, %c0_134], %148 {strides = array<i32>} : memref<36x64xf32, #tpu.memory_space<vmem>>, vector<4x64xf32>,
    %c0_135 = arith.constant 0 : index
    %c18_136 = arith.constant 18 : index
    %150 = vector.load %arg21[%c0_135, %c18_136] : memref<4x82xf32, #tpu.memory_space<vmem>>, vector<4x64xf32>
    %c6_i32_137 = arith.constant 6 : i32
    %151 = vector.broadcast %c6_i32_137 : i32 to vector<4x64xi32>
    %152 = arith.cmpi sle, %113, %151 : vector<4x64xi32>
    %cst_138 = arith.constant 0.000000e+00 : f32
    %153 = vector.broadcast %cst_138 : f32 to vector<4x64xf32>
    %154 = arith.select %152, %150, %153 : vector<4x64xi1>, vector<4x64xf32>
    %c32_139 = arith.constant 32 : index
    %c0_140 = arith.constant 0 : index
    %155 = vector.load %arg23[%c32_139, %c0_140] : memref<36x64xf32, #tpu.memory_space<vmem>>, vector<4x64xf32>
    tpu.vector_store %arg23[%c32_139, %c0_140], %154 {strides = array<i32>} : memref<36x64xf32, #tpu.memory_space<vmem>>, vector<4x64xf32>,
    %c0_141 = arith.constant 0 : index
    %c0_142 = arith.constant 0 : index
    %156 = vector.load %arg23[%c0_141, %c0_142] : memref<36x64xf32, #tpu.memory_space<vmem>>, vector<36x64xf32>
    %cst_143 = arith.constant dense<0.000000e+00> : vector<8x64xf32>
    %157 = tpu.matmul %93, %156, %cst_143 {dimension_numbers = #tpu.dot_dimension_numbers<[1], [0], [0], [1], [0, 0, 1, 1], [], []>} : vector<8x36xf32>, vector<36x64xf32>, vector<8x64xf32> -> vector<8x64xf32>
    %158 = vector.extract_strided_slice %157 {offsets = [0, 0], sizes = [4, 64], strides = [1, 1]} : vector<8x64xf32> to vector<4x64xf32>
    %159 = vector.extract_strided_slice %157 {offsets = [4, 0], sizes = [4, 64], strides = [1, 1]} : vector<8x64xf32> to vector<4x64xf32>
    %cst_144 = arith.constant dense<0.000000e+00> : vector<4x64xf32>
    %160 = tpu.matmul %26, %8, %cst_144 {dimension_numbers = #tpu.dot_dimension_numbers<[1], [0], [0], [1], [0, 0, 1, 1], [], []>} : vector<4x256xf32>, vector<256x64xf32>, vector<4x64xf32> -> vector<4x64xf32>
    %c0_145 = arith.constant 0 : index
    %c0_146 = arith.constant 0 : index
    %161 = vector.load %arg13[%c0_145, %c0_146] : memref<4x36xf32, #tpu.memory_space<vmem>>, vector<4x36xf32>
    %cst_147 = arith.constant 0.000000e+00 : f32
    %162 = vector.broadcast %cst_147 : f32 to vector<4x82xf32>
    %c0_148 = arith.constant 0 : index
    %c0_149 = arith.constant 0 : index
    %163 = vector.load %arg21[%c0_148, %c0_149] : memref<4x82xf32, #tpu.memory_space<vmem>>, vector<4x82xf32>
    tpu.vector_store %arg21[%c0_148, %c0_149], %162 {strides = array<i32>} : memref<4x82xf32, #tpu.memory_space<vmem>>, vector<4x82xf32>,
    %c0_150 = arith.constant 0 : index
    %c9_151 = arith.constant 9 : index
    %164 = vector.load %arg21[%c0_150, %c9_151] : memref<4x82xf32, #tpu.memory_space<vmem>>, vector<4x64xf32>
    tpu.vector_store %arg21[%c0_150, %c9_151], %160 {strides = array<i32>} : memref<4x82xf32, #tpu.memory_space<vmem>>, vector<4x64xf32>,
    %165 = tpu.iota {dimensions = array<i32: 1>} : vector<4x64xi32>
    %c8_i32_152 = arith.constant 8 : i32
    %c0_i32_153 = arith.constant 0 : i32
    %166 = arith.cmpi eq, %c8_i32_152, %c0_i32_153 : i32
    %c1_i32_154 = arith.constant 1 : i32
    %167 = arith.select %166, %c1_i32_154, %c8_i32_152 : i32
    %168 = vector.broadcast %167 : i32 to vector<4x64xi32>
    %169 = arith.remsi %165, %168 : vector<4x64xi32>
    %c0_i32_155 = arith.constant 0 : i32
    %170 = vector.broadcast %c0_i32_155 : i32 to vector<4x64xi32>
    %171 = arith.cmpi ne, %169, %170 : vector<4x64xi32>
    %c0_i32_156 = arith.constant 0 : i32
    %172 = vector.broadcast %c0_i32_156 : i32 to vector<4x64xi32>
    %173 = arith.cmpi slt, %169, %172 : vector<4x64xi32>
    %c0_i32_157 = arith.constant 0 : i32
    %174 = arith.cmpi slt, %167, %c0_i32_157 : i32
    %175 = vector.broadcast %174 : i1 to vector<4x64xi1>
    %176 = vector.broadcast %175 : vector<4x64xi1> to vector<4x64xi1>
    %177 = arith.xori %173, %176 : vector<4x64xi1>
    %178 = arith.andi %177, %171 : vector<4x64xi1>
    %179 = vector.broadcast %167 : i32 to vector<4x64xi32>
    %180 = arith.addi %169, %179 : vector<4x64xi32>
    %181 = arith.select %178, %180, %169 : vector<4x64xi1>, vector<4x64xi32>
    %c0_158 = arith.constant 0 : index
    %c0_159 = arith.constant 0 : index
    %182 = vector.load %arg21[%c0_158, %c0_159] : memref<4x82xf32, #tpu.memory_space<vmem>>, vector<4x64xf32>
    %c1_i32_160 = arith.constant 1 : i32
    %183 = vector.broadcast %c1_i32_160 : i32 to vector<4x64xi32>
    %184 = arith.cmpi sge, %181, %183 : vector<4x64xi32>
    %cst_161 = arith.constant 0.000000e+00 : f32
    %185 = vector.broadcast %cst_161 : f32 to vector<4x64xf32>
    %186 = arith.select %184, %182, %185 : vector<4x64xi1>, vector<4x64xf32>
    %c0_162 = arith.constant 0 : index
    %c0_163 = arith.constant 0 : index
    %187 = vector.load %arg23[%c0_162, %c0_163] : memref<36x64xf32, #tpu.memory_space<vmem>>, vector<4x64xf32>
    tpu.vector_store %arg23[%c0_162, %c0_163], %186 {strides = array<i32>} : memref<36x64xf32, #tpu.memory_space<vmem>>, vector<4x64xf32>,
    %c0_164 = arith.constant 0 : index
    %c1_165 = arith.constant 1 : index
    %188 = vector.load %arg21[%c0_164, %c1_165] : memref<4x82xf32, #tpu.memory_space<vmem>>, vector<4x64xf32>
    %c4_166 = arith.constant 4 : index
    %c0_167 = arith.constant 0 : index
    %189 = vector.load %arg23[%c4_166, %c0_167] : memref<36x64xf32, #tpu.memory_space<vmem>>, vector<4x64xf32>
    tpu.vector_store %arg23[%c4_166, %c0_167], %188 {strides = array<i32>} : memref<36x64xf32, #tpu.memory_space<vmem>>, vector<4x64xf32>,
    %c0_168 = arith.constant 0 : index
    %c2_169 = arith.constant 2 : index
    %190 = vector.load %arg21[%c0_168, %c2_169] : memref<4x82xf32, #tpu.memory_space<vmem>>, vector<4x64xf32>
    %c6_i32_170 = arith.constant 6 : i32
    %191 = vector.broadcast %c6_i32_170 : i32 to vector<4x64xi32>
    %192 = arith.cmpi sle, %181, %191 : vector<4x64xi32>
    %cst_171 = arith.constant 0.000000e+00 : f32
    %193 = vector.broadcast %cst_171 : f32 to vector<4x64xf32>
    %194 = arith.select %192, %190, %193 : vector<4x64xi1>, vector<4x64xf32>
    %c8_172 = arith.constant 8 : index
    %c0_173 = arith.constant 0 : index
    %195 = vector.load %arg23[%c8_172, %c0_173] : memref<36x64xf32, #tpu.memory_space<vmem>>, vector<4x64xf32>
    tpu.vector_store %arg23[%c8_172, %c0_173], %194 {strides = array<i32>} : memref<36x64xf32, #tpu.memory_space<vmem>>, vector<4x64xf32>,
    %c0_174 = arith.constant 0 : index
    %c8_175 = arith.constant 8 : index
    %196 = vector.load %arg21[%c0_174, %c8_175] : memref<4x82xf32, #tpu.memory_space<vmem>>, vector<4x64xf32>
    %c1_i32_176 = arith.constant 1 : i32
    %197 = vector.broadcast %c1_i32_176 : i32 to vector<4x64xi32>
    %198 = arith.cmpi sge, %181, %197 : vector<4x64xi32>
    %cst_177 = arith.constant 0.000000e+00 : f32
    %199 = vector.broadcast %cst_177 : f32 to vector<4x64xf32>
    %200 = arith.select %198, %196, %199 : vector<4x64xi1>, vector<4x64xf32>
    %c12_178 = arith.constant 12 : index
    %c0_179 = arith.constant 0 : index
    %201 = vector.load %arg23[%c12_178, %c0_179] : memref<36x64xf32, #tpu.memory_space<vmem>>, vector<4x64xf32>
    tpu.vector_store %arg23[%c12_178, %c0_179], %200 {strides = array<i32>} : memref<36x64xf32, #tpu.memory_space<vmem>>, vector<4x64xf32>,
    %c0_180 = arith.constant 0 : index
    %c9_181 = arith.constant 9 : index
    %202 = vector.load %arg21[%c0_180, %c9_181] : memref<4x82xf32, #tpu.memory_space<vmem>>, vector<4x64xf32>
    %c16_182 = arith.constant 16 : index
    %c0_183 = arith.constant 0 : index
    %203 = vector.load %arg23[%c16_182, %c0_183] : memref<36x64xf32, #tpu.memory_space<vmem>>, vector<4x64xf32>
    tpu.vector_store %arg23[%c16_182, %c0_183], %202 {strides = array<i32>} : memref<36x64xf32, #tpu.memory_space<vmem>>, vector<4x64xf32>,
    %c0_184 = arith.constant 0 : index
    %c10_185 = arith.constant 10 : index
    %204 = vector.load %arg21[%c0_184, %c10_185] : memref<4x82xf32, #tpu.memory_space<vmem>>, vector<4x64xf32>
    %c6_i32_186 = arith.constant 6 : i32
    %205 = vector.broadcast %c6_i32_186 : i32 to vector<4x64xi32>
    %206 = arith.cmpi sle, %181, %205 : vector<4x64xi32>
    %cst_187 = arith.constant 0.000000e+00 : f32
    %207 = vector.broadcast %cst_187 : f32 to vector<4x64xf32>
    %208 = arith.select %206, %204, %207 : vector<4x64xi1>, vector<4x64xf32>
    %c20_188 = arith.constant 20 : index
    %c0_189 = arith.constant 0 : index
    %209 = vector.load %arg23[%c20_188, %c0_189] : memref<36x64xf32, #tpu.memory_space<vmem>>, vector<4x64xf32>
    tpu.vector_store %arg23[%c20_188, %c0_189], %208 {strides = array<i32>} : memref<36x64xf32, #tpu.memory_space<vmem>>, vector<4x64xf32>,
    %c0_190 = arith.constant 0 : index
    %c16_191 = arith.constant 16 : index
    %210 = vector.load %arg21[%c0_190, %c16_191] : memref<4x82xf32, #tpu.memory_space<vmem>>, vector<4x64xf32>
    %c1_i32_192 = arith.constant 1 : i32
    %211 = vector.broadcast %c1_i32_192 : i32 to vector<4x64xi32>
    %212 = arith.cmpi sge, %181, %211 : vector<4x64xi32>
    %cst_193 = arith.constant 0.000000e+00 : f32
    %213 = vector.broadcast %cst_193 : f32 to vector<4x64xf32>
    %214 = arith.select %212, %210, %213 : vector<4x64xi1>, vector<4x64xf32>
    %c24_194 = arith.constant 24 : index
    %c0_195 = arith.constant 0 : index
    %215 = vector.load %arg23[%c24_194, %c0_195] : memref<36x64xf32, #tpu.memory_space<vmem>>, vector<4x64xf32>
    tpu.vector_store %arg23[%c24_194, %c0_195], %214 {strides = array<i32>} : memref<36x64xf32, #tpu.memory_space<vmem>>, vector<4x64xf32>,
    %c0_196 = arith.constant 0 : index
    %c17_197 = arith.constant 17 : index
    %216 = vector.load %arg21[%c0_196, %c17_197] : memref<4x82xf32, #tpu.memory_space<vmem>>, vector<4x64xf32>
    %c28_198 = arith.constant 28 : index
    %c0_199 = arith.constant 0 : index
    %217 = vector.load %arg23[%c28_198, %c0_199] : memref<36x64xf32, #tpu.memory_space<vmem>>, vector<4x64xf32>
    tpu.vector_store %arg23[%c28_198, %c0_199], %216 {strides = array<i32>} : memref<36x64xf32, #tpu.memory_space<vmem>>, vector<4x64xf32>,
    %c0_200 = arith.constant 0 : index
    %c18_201 = arith.constant 18 : index
    %218 = vector.load %arg21[%c0_200, %c18_201] : memref<4x82xf32, #tpu.memory_space<vmem>>, vector<4x64xf32>
    %c6_i32_202 = arith.constant 6 : i32
    %219 = vector.broadcast %c6_i32_202 : i32 to vector<4x64xi32>
    %220 = arith.cmpi sle, %181, %219 : vector<4x64xi32>
    %cst_203 = arith.constant 0.000000e+00 : f32
    %221 = vector.broadcast %cst_203 : f32 to vector<4x64xf32>
    %222 = arith.select %220, %218, %221 : vector<4x64xi1>, vector<4x64xf32>
    %c32_204 = arith.constant 32 : index
    %c0_205 = arith.constant 0 : index
    %223 = vector.load %arg23[%c32_204, %c0_205] : memref<36x64xf32, #tpu.memory_space<vmem>>, vector<4x64xf32>
    tpu.vector_store %arg23[%c32_204, %c0_205], %222 {strides = array<i32>} : memref<36x64xf32, #tpu.memory_space<vmem>>, vector<4x64xf32>,
    %c0_206 = arith.constant 0 : index
    %c0_207 = arith.constant 0 : index
    %224 = vector.load %arg23[%c0_206, %c0_207] : memref<36x64xf32, #tpu.memory_space<vmem>>, vector<36x64xf32>
    %cst_208 = arith.constant dense<0.000000e+00> : vector<4x64xf32>
    %225 = tpu.matmul %161, %224, %cst_208 {dimension_numbers = #tpu.dot_dimension_numbers<[1], [0], [0], [1], [0, 0, 1, 1], [], []>} : vector<4x36xf32>, vector<36x64xf32>, vector<4x64xf32> -> vector<4x64xf32>
    %cst_209 = arith.constant dense<0.000000e+00> : vector<4x256xf32>
    %226 = tpu.matmul %158, %7, %cst_209 {dimension_numbers = #tpu.dot_dimension_numbers<[1], [0], [0], [1], [0, 0, 1, 1], [], []>} : vector<4x64xf32>, vector<64x256xf32>, vector<4x256xf32> -> vector<4x256xf32>
    %227 = arith.addf %92, %226 : vector<4x256xf32>
    %c0_210 = arith.constant 0 : index
    %c0_211 = arith.constant 0 : index
    %228 = vector.load %arg14[%c0_210, %c0_211] : memref<4x1xf32, #tpu.memory_space<vmem>>, vector<4x1xf32>
    %229 = vector.broadcast %228 : vector<4x1xf32> to vector<4x256xf32>
    %230 = arith.addf %227, %229 : vector<4x256xf32>
    %cst_212 = arith.constant 0.000000e+00 : f32
    %231 = vector.broadcast %cst_212 : f32 to vector<4x256xf32>
    %232 = arith.maximumf %230, %231 : vector<4x256xf32>
    %233 = arith.addf %159, %225 : vector<4x64xf32>
    %c0_213 = arith.constant 0 : index
    %c0_214 = arith.constant 0 : index
    %234 = vector.load %arg15[%c0_213, %c0_214] : memref<4x1xf32, #tpu.memory_space<vmem>>, vector<4x1xf32>
    %235 = vector.broadcast %234 : vector<4x1xf32> to vector<4x64xf32>
    %236 = arith.addf %233, %235 : vector<4x64xf32>
    %cst_215 = arith.constant 0.000000e+00 : f32
    %237 = vector.broadcast %cst_215 : f32 to vector<4x64xf32>
    %238 = arith.maximumf %236, %237 : vector<4x64xf32>
    %c0_216 = arith.constant 0 : index
    %c0_217 = arith.constant 0 : index
    %239 = vector.load %arg16[%c0_216, %c0_217] : memref<8x36xf32, #tpu.memory_space<vmem>>, vector<8x36xf32>
    %cst_218 = arith.constant 0.000000e+00 : f32
    %240 = vector.broadcast %cst_218 : f32 to vector<4x290xf32>
    %c0_219 = arith.constant 0 : index
    %c0_220 = arith.constant 0 : index
    %241 = vector.load %arg20[%c0_219, %c0_220] : memref<4x290xf32, #tpu.memory_space<vmem>>, vector<4x290xf32>
    tpu.vector_store %arg20[%c0_219, %c0_220], %240 {strides = array<i32>} : memref<4x290xf32, #tpu.memory_space<vmem>>, vector<4x290xf32>,
    %c0_221 = arith.constant 0 : index
    %c17_222 = arith.constant 17 : index
    %242 = vector.load %arg20[%c0_221, %c17_222] : memref<4x290xf32, #tpu.memory_space<vmem>>, vector<4x256xf32>
    tpu.vector_store %arg20[%c0_221, %c17_222], %232 {strides = array<i32>} : memref<4x290xf32, #tpu.memory_space<vmem>>, vector<4x256xf32>,
    %243 = tpu.iota {dimensions = array<i32: 1>} : vector<4x256xi32>
    %c16_i32_223 = arith.constant 16 : i32
    %c0_i32_224 = arith.constant 0 : i32
    %244 = arith.cmpi eq, %c16_i32_223, %c0_i32_224 : i32
    %c1_i32_225 = arith.constant 1 : i32
    %245 = arith.select %244, %c1_i32_225, %c16_i32_223 : i32
    %246 = vector.broadcast %245 : i32 to vector<4x256xi32>
    %247 = arith.remsi %243, %246 : vector<4x256xi32>
    %c0_i32_226 = arith.constant 0 : i32
    %248 = vector.broadcast %c0_i32_226 : i32 to vector<4x256xi32>
    %249 = arith.cmpi ne, %247, %248 : vector<4x256xi32>
    %c0_i32_227 = arith.constant 0 : i32
    %250 = vector.broadcast %c0_i32_227 : i32 to vector<4x256xi32>
    %251 = arith.cmpi slt, %247, %250 : vector<4x256xi32>
    %c0_i32_228 = arith.constant 0 : i32
    %252 = arith.cmpi slt, %245, %c0_i32_228 : i32
    %253 = vector.broadcast %252 : i1 to vector<4x256xi1>
    %254 = vector.broadcast %253 : vector<4x256xi1> to vector<4x256xi1>
    %255 = arith.xori %251, %254 : vector<4x256xi1>
    %256 = arith.andi %255, %249 : vector<4x256xi1>
    %257 = vector.broadcast %245 : i32 to vector<4x256xi32>
    %258 = arith.addi %247, %257 : vector<4x256xi32>
    %259 = arith.select %256, %258, %247 : vector<4x256xi1>, vector<4x256xi32>
    %c0_229 = arith.constant 0 : index
    %c0_230 = arith.constant 0 : index
    %260 = vector.load %arg20[%c0_229, %c0_230] : memref<4x290xf32, #tpu.memory_space<vmem>>, vector<4x256xf32>
    %c1_i32_231 = arith.constant 1 : i32
    %261 = vector.broadcast %c1_i32_231 : i32 to vector<4x256xi32>
    %262 = arith.cmpi sge, %259, %261 : vector<4x256xi32>
    %cst_232 = arith.constant 0.000000e+00 : f32
    %263 = vector.broadcast %cst_232 : f32 to vector<4x256xf32>
    %264 = arith.select %262, %260, %263 : vector<4x256xi1>, vector<4x256xf32>
    %c0_233 = arith.constant 0 : index
    %c0_234 = arith.constant 0 : index
    %265 = vector.load %arg22[%c0_233, %c0_234] : memref<36x256xf32, #tpu.memory_space<vmem>>, vector<4x256xf32>
    tpu.vector_store %arg22[%c0_233, %c0_234], %264 {strides = array<i32>} : memref<36x256xf32, #tpu.memory_space<vmem>>, vector<4x256xf32>,
    %c0_235 = arith.constant 0 : index
    %c1_236 = arith.constant 1 : index
    %266 = vector.load %arg20[%c0_235, %c1_236] : memref<4x290xf32, #tpu.memory_space<vmem>>, vector<4x256xf32>
    %c4_237 = arith.constant 4 : index
    %c0_238 = arith.constant 0 : index
    %267 = vector.load %arg22[%c4_237, %c0_238] : memref<36x256xf32, #tpu.memory_space<vmem>>, vector<4x256xf32>
    tpu.vector_store %arg22[%c4_237, %c0_238], %266 {strides = array<i32>} : memref<36x256xf32, #tpu.memory_space<vmem>>, vector<4x256xf32>,
    %c0_239 = arith.constant 0 : index
    %c2_240 = arith.constant 2 : index
    %268 = vector.load %arg20[%c0_239, %c2_240] : memref<4x290xf32, #tpu.memory_space<vmem>>, vector<4x256xf32>
    %c14_i32_241 = arith.constant 14 : i32
    %269 = vector.broadcast %c14_i32_241 : i32 to vector<4x256xi32>
    %270 = arith.cmpi sle, %259, %269 : vector<4x256xi32>
    %cst_242 = arith.constant 0.000000e+00 : f32
    %271 = vector.broadcast %cst_242 : f32 to vector<4x256xf32>
    %272 = arith.select %270, %268, %271 : vector<4x256xi1>, vector<4x256xf32>
    %c8_243 = arith.constant 8 : index
    %c0_244 = arith.constant 0 : index
    %273 = vector.load %arg22[%c8_243, %c0_244] : memref<36x256xf32, #tpu.memory_space<vmem>>, vector<4x256xf32>
    tpu.vector_store %arg22[%c8_243, %c0_244], %272 {strides = array<i32>} : memref<36x256xf32, #tpu.memory_space<vmem>>, vector<4x256xf32>,
    %c0_245 = arith.constant 0 : index
    %c16_246 = arith.constant 16 : index
    %274 = vector.load %arg20[%c0_245, %c16_246] : memref<4x290xf32, #tpu.memory_space<vmem>>, vector<4x256xf32>
    %c1_i32_247 = arith.constant 1 : i32
    %275 = vector.broadcast %c1_i32_247 : i32 to vector<4x256xi32>
    %276 = arith.cmpi sge, %259, %275 : vector<4x256xi32>
    %cst_248 = arith.constant 0.000000e+00 : f32
    %277 = vector.broadcast %cst_248 : f32 to vector<4x256xf32>
    %278 = arith.select %276, %274, %277 : vector<4x256xi1>, vector<4x256xf32>
    %c12_249 = arith.constant 12 : index
    %c0_250 = arith.constant 0 : index
    %279 = vector.load %arg22[%c12_249, %c0_250] : memref<36x256xf32, #tpu.memory_space<vmem>>, vector<4x256xf32>
    tpu.vector_store %arg22[%c12_249, %c0_250], %278 {strides = array<i32>} : memref<36x256xf32, #tpu.memory_space<vmem>>, vector<4x256xf32>,
    %c0_251 = arith.constant 0 : index
    %c17_252 = arith.constant 17 : index
    %280 = vector.load %arg20[%c0_251, %c17_252] : memref<4x290xf32, #tpu.memory_space<vmem>>, vector<4x256xf32>
    %c16_253 = arith.constant 16 : index
    %c0_254 = arith.constant 0 : index
    %281 = vector.load %arg22[%c16_253, %c0_254] : memref<36x256xf32, #tpu.memory_space<vmem>>, vector<4x256xf32>
    tpu.vector_store %arg22[%c16_253, %c0_254], %280 {strides = array<i32>} : memref<36x256xf32, #tpu.memory_space<vmem>>, vector<4x256xf32>,
    %c0_255 = arith.constant 0 : index
    %c18_256 = arith.constant 18 : index
    %282 = vector.load %arg20[%c0_255, %c18_256] : memref<4x290xf32, #tpu.memory_space<vmem>>, vector<4x256xf32>
    %c14_i32_257 = arith.constant 14 : i32
    %283 = vector.broadcast %c14_i32_257 : i32 to vector<4x256xi32>
    %284 = arith.cmpi sle, %259, %283 : vector<4x256xi32>
    %cst_258 = arith.constant 0.000000e+00 : f32
    %285 = vector.broadcast %cst_258 : f32 to vector<4x256xf32>
    %286 = arith.select %284, %282, %285 : vector<4x256xi1>, vector<4x256xf32>
    %c20_259 = arith.constant 20 : index
    %c0_260 = arith.constant 0 : index
    %287 = vector.load %arg22[%c20_259, %c0_260] : memref<36x256xf32, #tpu.memory_space<vmem>>, vector<4x256xf32>
    tpu.vector_store %arg22[%c20_259, %c0_260], %286 {strides = array<i32>} : memref<36x256xf32, #tpu.memory_space<vmem>>, vector<4x256xf32>,
    %c0_261 = arith.constant 0 : index
    %c32_262 = arith.constant 32 : index
    %288 = vector.load %arg20[%c0_261, %c32_262] : memref<4x290xf32, #tpu.memory_space<vmem>>, vector<4x256xf32>
    %c1_i32_263 = arith.constant 1 : i32
    %289 = vector.broadcast %c1_i32_263 : i32 to vector<4x256xi32>
    %290 = arith.cmpi sge, %259, %289 : vector<4x256xi32>
    %cst_264 = arith.constant 0.000000e+00 : f32
    %291 = vector.broadcast %cst_264 : f32 to vector<4x256xf32>
    %292 = arith.select %290, %288, %291 : vector<4x256xi1>, vector<4x256xf32>
    %c24_265 = arith.constant 24 : index
    %c0_266 = arith.constant 0 : index
    %293 = vector.load %arg22[%c24_265, %c0_266] : memref<36x256xf32, #tpu.memory_space<vmem>>, vector<4x256xf32>
    tpu.vector_store %arg22[%c24_265, %c0_266], %292 {strides = array<i32>} : memref<36x256xf32, #tpu.memory_space<vmem>>, vector<4x256xf32>,
    %c0_267 = arith.constant 0 : index
    %c33_268 = arith.constant 33 : index
    %294 = vector.load %arg20[%c0_267, %c33_268] : memref<4x290xf32, #tpu.memory_space<vmem>>, vector<4x256xf32>
    %c28_269 = arith.constant 28 : index
    %c0_270 = arith.constant 0 : index
    %295 = vector.load %arg22[%c28_269, %c0_270] : memref<36x256xf32, #tpu.memory_space<vmem>>, vector<4x256xf32>
    tpu.vector_store %arg22[%c28_269, %c0_270], %294 {strides = array<i32>} : memref<36x256xf32, #tpu.memory_space<vmem>>, vector<4x256xf32>,
    %c0_271 = arith.constant 0 : index
    %c34_272 = arith.constant 34 : index
    %296 = vector.load %arg20[%c0_271, %c34_272] : memref<4x290xf32, #tpu.memory_space<vmem>>, vector<4x256xf32>
    %c14_i32_273 = arith.constant 14 : i32
    %297 = vector.broadcast %c14_i32_273 : i32 to vector<4x256xi32>
    %298 = arith.cmpi sle, %259, %297 : vector<4x256xi32>
    %cst_274 = arith.constant 0.000000e+00 : f32
    %299 = vector.broadcast %cst_274 : f32 to vector<4x256xf32>
    %300 = arith.select %298, %296, %299 : vector<4x256xi1>, vector<4x256xf32>
    %c32_275 = arith.constant 32 : index
    %c0_276 = arith.constant 0 : index
    %301 = vector.load %arg22[%c32_275, %c0_276] : memref<36x256xf32, #tpu.memory_space<vmem>>, vector<4x256xf32>
    tpu.vector_store %arg22[%c32_275, %c0_276], %300 {strides = array<i32>} : memref<36x256xf32, #tpu.memory_space<vmem>>, vector<4x256xf32>,
    %c0_277 = arith.constant 0 : index
    %c0_278 = arith.constant 0 : index
    %302 = vector.load %arg22[%c0_277, %c0_278] : memref<36x256xf32, #tpu.memory_space<vmem>>, vector<36x256xf32>
    %cst_279 = arith.constant dense<0.000000e+00> : vector<8x256xf32>
    %303 = tpu.matmul %239, %302, %cst_279 {dimension_numbers = #tpu.dot_dimension_numbers<[1], [0], [0], [1], [0, 0, 1, 1], [], []>} : vector<8x36xf32>, vector<36x256xf32>, vector<8x256xf32> -> vector<8x256xf32>
    %c0_280 = arith.constant 0 : index
    %c0_281 = arith.constant 0 : index
    %304 = vector.load %arg17[%c0_280, %c0_281] : memref<8x36xf32, #tpu.memory_space<vmem>>, vector<8x36xf32>
    %cst_282 = arith.constant 0.000000e+00 : f32
    %305 = vector.broadcast %cst_282 : f32 to vector<4x82xf32>
    %c0_283 = arith.constant 0 : index
    %c0_284 = arith.constant 0 : index
    %306 = vector.load %arg21[%c0_283, %c0_284] : memref<4x82xf32, #tpu.memory_space<vmem>>, vector<4x82xf32>
    tpu.vector_store %arg21[%c0_283, %c0_284], %305 {strides = array<i32>} : memref<4x82xf32, #tpu.memory_space<vmem>>, vector<4x82xf32>,
    %c0_285 = arith.constant 0 : index
    %c9_286 = arith.constant 9 : index
    %307 = vector.load %arg21[%c0_285, %c9_286] : memref<4x82xf32, #tpu.memory_space<vmem>>, vector<4x64xf32>
    tpu.vector_store %arg21[%c0_285, %c9_286], %238 {strides = array<i32>} : memref<4x82xf32, #tpu.memory_space<vmem>>, vector<4x64xf32>,
    %308 = tpu.iota {dimensions = array<i32: 1>} : vector<4x64xi32>
    %c8_i32_287 = arith.constant 8 : i32
    %c0_i32_288 = arith.constant 0 : i32
    %309 = arith.cmpi eq, %c8_i32_287, %c0_i32_288 : i32
    %c1_i32_289 = arith.constant 1 : i32
    %310 = arith.select %309, %c1_i32_289, %c8_i32_287 : i32
    %311 = vector.broadcast %310 : i32 to vector<4x64xi32>
    %312 = arith.remsi %308, %311 : vector<4x64xi32>
    %c0_i32_290 = arith.constant 0 : i32
    %313 = vector.broadcast %c0_i32_290 : i32 to vector<4x64xi32>
    %314 = arith.cmpi ne, %312, %313 : vector<4x64xi32>
    %c0_i32_291 = arith.constant 0 : i32
    %315 = vector.broadcast %c0_i32_291 : i32 to vector<4x64xi32>
    %316 = arith.cmpi slt, %312, %315 : vector<4x64xi32>
    %c0_i32_292 = arith.constant 0 : i32
    %317 = arith.cmpi slt, %310, %c0_i32_292 : i32
    %318 = vector.broadcast %317 : i1 to vector<4x64xi1>
    %319 = vector.broadcast %318 : vector<4x64xi1> to vector<4x64xi1>
    %320 = arith.xori %316, %319 : vector<4x64xi1>
    %321 = arith.andi %320, %314 : vector<4x64xi1>
    %322 = vector.broadcast %310 : i32 to vector<4x64xi32>
    %323 = arith.addi %312, %322 : vector<4x64xi32>
    %324 = arith.select %321, %323, %312 : vector<4x64xi1>, vector<4x64xi32>
    %c0_293 = arith.constant 0 : index
    %c0_294 = arith.constant 0 : index
    %325 = vector.load %arg21[%c0_293, %c0_294] : memref<4x82xf32, #tpu.memory_space<vmem>>, vector<4x64xf32>
    %c1_i32_295 = arith.constant 1 : i32
    %326 = vector.broadcast %c1_i32_295 : i32 to vector<4x64xi32>
    %327 = arith.cmpi sge, %324, %326 : vector<4x64xi32>
    %cst_296 = arith.constant 0.000000e+00 : f32
    %328 = vector.broadcast %cst_296 : f32 to vector<4x64xf32>
    %329 = arith.select %327, %325, %328 : vector<4x64xi1>, vector<4x64xf32>
    %c0_297 = arith.constant 0 : index
    %c0_298 = arith.constant 0 : index
    %330 = vector.load %arg23[%c0_297, %c0_298] : memref<36x64xf32, #tpu.memory_space<vmem>>, vector<4x64xf32>
    tpu.vector_store %arg23[%c0_297, %c0_298], %329 {strides = array<i32>} : memref<36x64xf32, #tpu.memory_space<vmem>>, vector<4x64xf32>,
    %c0_299 = arith.constant 0 : index
    %c1_300 = arith.constant 1 : index
    %331 = vector.load %arg21[%c0_299, %c1_300] : memref<4x82xf32, #tpu.memory_space<vmem>>, vector<4x64xf32>
    %c4_301 = arith.constant 4 : index
    %c0_302 = arith.constant 0 : index
    %332 = vector.load %arg23[%c4_301, %c0_302] : memref<36x64xf32, #tpu.memory_space<vmem>>, vector<4x64xf32>
    tpu.vector_store %arg23[%c4_301, %c0_302], %331 {strides = array<i32>} : memref<36x64xf32, #tpu.memory_space<vmem>>, vector<4x64xf32>,
    %c0_303 = arith.constant 0 : index
    %c2_304 = arith.constant 2 : index
    %333 = vector.load %arg21[%c0_303, %c2_304] : memref<4x82xf32, #tpu.memory_space<vmem>>, vector<4x64xf32>
    %c6_i32_305 = arith.constant 6 : i32
    %334 = vector.broadcast %c6_i32_305 : i32 to vector<4x64xi32>
    %335 = arith.cmpi sle, %324, %334 : vector<4x64xi32>
    %cst_306 = arith.constant 0.000000e+00 : f32
    %336 = vector.broadcast %cst_306 : f32 to vector<4x64xf32>
    %337 = arith.select %335, %333, %336 : vector<4x64xi1>, vector<4x64xf32>
    %c8_307 = arith.constant 8 : index
    %c0_308 = arith.constant 0 : index
    %338 = vector.load %arg23[%c8_307, %c0_308] : memref<36x64xf32, #tpu.memory_space<vmem>>, vector<4x64xf32>
    tpu.vector_store %arg23[%c8_307, %c0_308], %337 {strides = array<i32>} : memref<36x64xf32, #tpu.memory_space<vmem>>, vector<4x64xf32>,
    %c0_309 = arith.constant 0 : index
    %c8_310 = arith.constant 8 : index
    %339 = vector.load %arg21[%c0_309, %c8_310] : memref<4x82xf32, #tpu.memory_space<vmem>>, vector<4x64xf32>
    %c1_i32_311 = arith.constant 1 : i32
    %340 = vector.broadcast %c1_i32_311 : i32 to vector<4x64xi32>
    %341 = arith.cmpi sge, %324, %340 : vector<4x64xi32>
    %cst_312 = arith.constant 0.000000e+00 : f32
    %342 = vector.broadcast %cst_312 : f32 to vector<4x64xf32>
    %343 = arith.select %341, %339, %342 : vector<4x64xi1>, vector<4x64xf32>
    %c12_313 = arith.constant 12 : index
    %c0_314 = arith.constant 0 : index
    %344 = vector.load %arg23[%c12_313, %c0_314] : memref<36x64xf32, #tpu.memory_space<vmem>>, vector<4x64xf32>
    tpu.vector_store %arg23[%c12_313, %c0_314], %343 {strides = array<i32>} : memref<36x64xf32, #tpu.memory_space<vmem>>, vector<4x64xf32>,
    %c0_315 = arith.constant 0 : index
    %c9_316 = arith.constant 9 : index
    %345 = vector.load %arg21[%c0_315, %c9_316] : memref<4x82xf32, #tpu.memory_space<vmem>>, vector<4x64xf32>
    %c16_317 = arith.constant 16 : index
    %c0_318 = arith.constant 0 : index
    %346 = vector.load %arg23[%c16_317, %c0_318] : memref<36x64xf32, #tpu.memory_space<vmem>>, vector<4x64xf32>
    tpu.vector_store %arg23[%c16_317, %c0_318], %345 {strides = array<i32>} : memref<36x64xf32, #tpu.memory_space<vmem>>, vector<4x64xf32>,
    %c0_319 = arith.constant 0 : index
    %c10_320 = arith.constant 10 : index
    %347 = vector.load %arg21[%c0_319, %c10_320] : memref<4x82xf32, #tpu.memory_space<vmem>>, vector<4x64xf32>
    %c6_i32_321 = arith.constant 6 : i32
    %348 = vector.broadcast %c6_i32_321 : i32 to vector<4x64xi32>
    %349 = arith.cmpi sle, %324, %348 : vector<4x64xi32>
    %cst_322 = arith.constant 0.000000e+00 : f32
    %350 = vector.broadcast %cst_322 : f32 to vector<4x64xf32>
    %351 = arith.select %349, %347, %350 : vector<4x64xi1>, vector<4x64xf32>
    %c20_323 = arith.constant 20 : index
    %c0_324 = arith.constant 0 : index
    %352 = vector.load %arg23[%c20_323, %c0_324] : memref<36x64xf32, #tpu.memory_space<vmem>>, vector<4x64xf32>
    tpu.vector_store %arg23[%c20_323, %c0_324], %351 {strides = array<i32>} : memref<36x64xf32, #tpu.memory_space<vmem>>, vector<4x64xf32>,
    %c0_325 = arith.constant 0 : index
    %c16_326 = arith.constant 16 : index
    %353 = vector.load %arg21[%c0_325, %c16_326] : memref<4x82xf32, #tpu.memory_space<vmem>>, vector<4x64xf32>
    %c1_i32_327 = arith.constant 1 : i32
    %354 = vector.broadcast %c1_i32_327 : i32 to vector<4x64xi32>
    %355 = arith.cmpi sge, %324, %354 : vector<4x64xi32>
    %cst_328 = arith.constant 0.000000e+00 : f32
    %356 = vector.broadcast %cst_328 : f32 to vector<4x64xf32>
    %357 = arith.select %355, %353, %356 : vector<4x64xi1>, vector<4x64xf32>
    %c24_329 = arith.constant 24 : index
    %c0_330 = arith.constant 0 : index
    %358 = vector.load %arg23[%c24_329, %c0_330] : memref<36x64xf32, #tpu.memory_space<vmem>>, vector<4x64xf32>
    tpu.vector_store %arg23[%c24_329, %c0_330], %357 {strides = array<i32>} : memref<36x64xf32, #tpu.memory_space<vmem>>, vector<4x64xf32>,
    %c0_331 = arith.constant 0 : index
    %c17_332 = arith.constant 17 : index
    %359 = vector.load %arg21[%c0_331, %c17_332] : memref<4x82xf32, #tpu.memory_space<vmem>>, vector<4x64xf32>
    %c28_333 = arith.constant 28 : index
    %c0_334 = arith.constant 0 : index
    %360 = vector.load %arg23[%c28_333, %c0_334] : memref<36x64xf32, #tpu.memory_space<vmem>>, vector<4x64xf32>
    tpu.vector_store %arg23[%c28_333, %c0_334], %359 {strides = array<i32>} : memref<36x64xf32, #tpu.memory_space<vmem>>, vector<4x64xf32>,
    %c0_335 = arith.constant 0 : index
    %c18_336 = arith.constant 18 : index
    %361 = vector.load %arg21[%c0_335, %c18_336] : memref<4x82xf32, #tpu.memory_space<vmem>>, vector<4x64xf32>
    %c6_i32_337 = arith.constant 6 : i32
    %362 = vector.broadcast %c6_i32_337 : i32 to vector<4x64xi32>
    %363 = arith.cmpi sle, %324, %362 : vector<4x64xi32>
    %cst_338 = arith.constant 0.000000e+00 : f32
    %364 = vector.broadcast %cst_338 : f32 to vector<4x64xf32>
    %365 = arith.select %363, %361, %364 : vector<4x64xi1>, vector<4x64xf32>
    %c32_339 = arith.constant 32 : index
    %c0_340 = arith.constant 0 : index
    %366 = vector.load %arg23[%c32_339, %c0_340] : memref<36x64xf32, #tpu.memory_space<vmem>>, vector<4x64xf32>
    tpu.vector_store %arg23[%c32_339, %c0_340], %365 {strides = array<i32>} : memref<36x64xf32, #tpu.memory_space<vmem>>, vector<4x64xf32>,
    %c0_341 = arith.constant 0 : index
    %c0_342 = arith.constant 0 : index
    %367 = vector.load %arg23[%c0_341, %c0_342] : memref<36x64xf32, #tpu.memory_space<vmem>>, vector<36x64xf32>
    %cst_343 = arith.constant dense<0.000000e+00> : vector<8x64xf32>
    %368 = tpu.matmul %304, %367, %cst_343 {dimension_numbers = #tpu.dot_dimension_numbers<[1], [0], [0], [1], [0, 0, 1, 1], [], []>} : vector<8x36xf32>, vector<36x64xf32>, vector<8x64xf32> -> vector<8x64xf32>
    %cst_344 = arith.constant dense<0.000000e+00> : vector<8x256xf32>
    %369 = tpu.matmul %368, %7, %cst_344 {dimension_numbers = #tpu.dot_dimension_numbers<[1], [0], [0], [1], [0, 0, 1, 1], [], []>} : vector<8x64xf32>, vector<64x256xf32>, vector<8x256xf32> -> vector<8x256xf32>
    %370 = arith.addf %303, %369 : vector<8x256xf32>
    %c0_345 = arith.constant 0 : index
    %c0_346 = arith.constant 0 : index
    %371 = vector.load %arg18[%c0_345, %c0_346] : memref<8x1xf32, #tpu.memory_space<vmem>>, vector<8x1xf32>
    %372 = vector.broadcast %371 : vector<8x1xf32> to vector<8x256xf32>
    %373 = arith.addf %370, %372 : vector<8x256xf32>
    %cst_347 = arith.constant 0.000000e+00 : f32
    %374 = vector.broadcast %cst_347 : f32 to vector<8x256xf32>
    %375 = arith.maximumf %373, %374 : vector<8x256xf32>
    %c0_348 = arith.constant 0 : index
    %c0_349 = arith.constant 0 : index
    %c0_350 = arith.constant 0 : index
    %376 = vector.load %arg19[%c0_348, %c0_349, %c0_350] : memref<1x8x256xf32, #tpu.memory_space<vmem>>, vector<1x8x256xf32>
    %377 = vector.shape_cast %376 : vector<1x8x256xf32> to vector<8x256xf32>
    %378 = vector.shape_cast %375 : vector<8x256xf32> to vector<1x8x256xf32>
    tpu.vector_store %arg19[%c0_348, %c0_349, %c0_350], %378 {strides = array<i32>} : memref<1x8x256xf32, #tpu.memory_space<vmem>>, vector<1x8x256xf32>,
    return
  }
  func.func @transform_0(%arg0: i32) -> (i32, i32, i32) {
    %c0_i32 = arith.constant 0 : i32
    %c0_i32_0 = arith.constant 0 : i32
    %c0_i32_1 = arith.constant 0 : i32
    return %arg0, %c0_i32, %c0_i32_0 : i32, i32, i32
  }
  func.func @transform_1(%arg0: i32) -> (i32, i32, i32) {
    %c0_i32 = arith.constant 0 : i32
    %c0_i32_0 = arith.constant 0 : i32
    %c0_i32_1 = arith.constant 0 : i32
    return %arg0, %c0_i32, %c0_i32_0 : i32, i32, i32
  }
  func.func @transform_2(%arg0: i32) -> (i32, i32, i32) {
    %c0_i32 = arith.constant 0 : i32
    %c0_i32_0 = arith.constant 0 : i32
    %c0_i32_1 = arith.constant 0 : i32
    return %arg0, %c0_i32, %c0_i32_0 : i32, i32, i32
  }
  func.func @transform_3(%arg0: i32) -> (i32, i32) {
    %c0_i32 = arith.constant 0 : i32
    %c0_i32_0 = arith.constant 0 : i32
    %c0_i32_1 = arith.constant 0 : i32
    return %c0_i32, %c0_i32_0 : i32, i32
  }
  func.func @transform_4(%arg0: i32) -> (i32, i32) {
    %c0_i32 = arith.constant 0 : i32
    %c0_i32_0 = arith.constant 0 : i32
    %c0_i32_1 = arith.constant 0 : i32
    return %c0_i32, %c0_i32_0 : i32, i32
  }
  func.func @transform_5(%arg0: i32) -> (i32, i32) {
    %c0_i32 = arith.constant 0 : i32
    %c0_i32_0 = arith.constant 0 : i32
    %c0_i32_1 = arith.constant 0 : i32
    return %c0_i32, %c0_i32_0 : i32, i32
  }
  func.func @transform_6(%arg0: i32) -> (i32, i32) {
    %c0_i32 = arith.constant 0 : i32
    %c0_i32_0 = arith.constant 0 : i32
    %c0_i32_1 = arith.constant 0 : i32
    return %c0_i32, %c0_i32_0 : i32, i32
  }
  func.func @transform_7(%arg0: i32) -> (i32, i32) {
    %c0_i32 = arith.constant 0 : i32
    %c0_i32_0 = arith.constant 0 : i32
    %c0_i32_1 = arith.constant 0 : i32
    return %c0_i32, %c0_i32_0 : i32, i32
  }
  func.func @transform_8(%arg0: i32) -> (i32, i32) {
    %c0_i32 = arith.constant 0 : i32
    %c0_i32_0 = arith.constant 0 : i32
    %c0_i32_1 = arith.constant 0 : i32
    return %c0_i32, %c0_i32_0 : i32, i32
  }
  func.func @transform_9(%arg0: i32) -> (i32, i32) {
    %c0_i32 = arith.constant 0 : i32
    %c0_i32_0 = arith.constant 0 : i32
    %c0_i32_1 = arith.constant 0 : i32
    return %c0_i32, %c0_i32_0 : i32, i32
  }
  func.func @transform_10(%arg0: i32) -> (i32, i32) {
    %c0_i32 = arith.constant 0 : i32
    %c0_i32_0 = arith.constant 0 : i32
    %c0_i32_1 = arith.constant 0 : i32
    return %c0_i32, %c0_i32_0 : i32, i32
  }
  func.func @transform_11(%arg0: i32) -> (i32, i32) {
    %c0_i32 = arith.constant 0 : i32
    %c0_i32_0 = arith.constant 0 : i32
    %c0_i32_1 = arith.constant 0 : i32
    return %c0_i32, %c0_i32_0 : i32, i32
  }
  func.func @transform_12(%arg0: i32) -> (i32, i32) {
    %c0_i32 = arith.constant 0 : i32
    %c0_i32_0 = arith.constant 0 : i32
    %c0_i32_1 = arith.constant 0 : i32
    return %c0_i32, %c0_i32_0 : i32, i32
  }
  func.func @transform_13(%arg0: i32) -> (i32, i32) {
    %c0_i32 = arith.constant 0 : i32
    %c0_i32_0 = arith.constant 0 : i32
    %c0_i32_1 = arith.constant 0 : i32
    return %c0_i32, %c0_i32_0 : i32, i32
  }
  func.func @transform_14(%arg0: i32) -> (i32, i32) {
    %c0_i32 = arith.constant 0 : i32
    %c0_i32_0 = arith.constant 0 : i32
    %c0_i32_1 = arith.constant 0 : i32
    return %c0_i32, %c0_i32_0 : i32, i32
  }
  func.func @transform_15(%arg0: i32) -> (i32, i32) {
    %c0_i32 = arith.constant 0 : i32
    %c0_i32_0 = arith.constant 0 : i32
    %c0_i32_1 = arith.constant 0 : i32
    return %c0_i32, %c0_i32_0 : i32, i32
  }
  func.func @transform_16(%arg0: i32) -> (i32, i32) {
    %c0_i32 = arith.constant 0 : i32
    %c0_i32_0 = arith.constant 0 : i32
    %c0_i32_1 = arith.constant 0 : i32
    return %c0_i32, %c0_i32_0 : i32, i32
  }
  func.func @transform_17(%arg0: i32) -> (i32, i32) {
    %c0_i32 = arith.constant 0 : i32
    %c0_i32_0 = arith.constant 0 : i32
    %c0_i32_1 = arith.constant 0 : i32
    return %c0_i32, %c0_i32_0 : i32, i32
  }
  func.func @transform_18(%arg0: i32) -> (i32, i32, i32) {
    %c0_i32 = arith.constant 0 : i32
    %c0_i32_0 = arith.constant 0 : i32
    %c0_i32_1 = arith.constant 0 : i32
    return %arg0, %c0_i32, %c0_i32_0 : i32, i32, i32
  }
}

</mosaic_0001>

<llo_original>
// kernel: _lambda_.1
$region0: #{_lambda_.1}
  #allocation0 [shape = 'u32[]', space=smem, size = 0x4, offset = 0x4, fixed_abs, tag = 'smem constant byte address 0x4 - core index']
  #allocation1 [shape = 'u32[144,128]{1,0:T(1,128)}', space=vmem, size = 0x12000, scoped, tag = 'internal scratch']
  #allocation2 [shape = 'f32[4,290]{1,0:T(4,128)}', space=vmem, size = 0x1800, scoped, tag = 'scratch operand']
  #allocation3 [shape = 'f32[4,82]{1,0:T(4,128)}', space=vmem, size = 0x800, scoped, tag = 'scratch operand']
  #allocation4 [shape = 'f32[36,256]{1,0:T(8,128)}', space=vmem, size = 0xa000, scoped, tag = 'scratch operand']
  #allocation5 [shape = 'f32[36,64]{1,0:T(8,128)}', space=vmem, size = 0x5000, scoped, tag = 'scratch operand']
  #allocation6 [shape = 'f32[4,256]{1,0:T(4,128)}', space=vmem, size = 0x1000, scoped, tag = 'scratch operand']
  #allocation7 [shape = 'f32[4,64]{1,0:T(4,128)}', space=vmem, size = 0x800, scoped, tag = 'scratch operand']
  %s0 = inlined_call_operand.vmem [shape: f32[2,2,64], index: 0, kind: input, shape index: {}]
  %s1 = inlined_call_operand.vmem [shape: f32[2,2,16], index: 1, kind: input, shape index: {}]
  %s2 = inlined_call_operand.vmem [shape: f32[2,4,256], index: 2, kind: input, shape index: {}]
  %s3 = inlined_call_operand.vmem [shape: f32[16,64], index: 3, kind: input, shape index: {}]
  %s4 = inlined_call_operand.vmem [shape: f32[64,256], index: 4, kind: input, shape index: {}]
  %s5 = inlined_call_operand.hbm [shape: f32[256,64], index: 5, kind: input, shape index: {}]
  %s6 = inlined_call_operand.vmem [shape: f32[2,4], index: 6, kind: input, shape index: {}]
  %s7 = inlined_call_operand.vmem [shape: f32[2,1], index: 7, kind: input, shape index: {}]
  %s8 = inlined_call_operand.vmem [shape: f32[2,4], index: 8, kind: input, shape index: {}]
  %s9 = inlined_call_operand.vmem [shape: f32[2,1], index: 9, kind: input, shape index: {}]
  %s10 = inlined_call_operand.vmem [shape: f32[4,36], index: 10, kind: input, shape index: {}]
  %s11 = inlined_call_operand.vmem [shape: f32[8,36], index: 11, kind: input, shape index: {}]
  %s12 = inlined_call_operand.vmem [shape: f32[4,36], index: 12, kind: input, shape index: {}]
  %s13 = inlined_call_operand.vmem [shape: f32[4,1], index: 13, kind: input, shape index: {}]
  %s14 = inlined_call_operand.vmem [shape: f32[4,1], index: 14, kind: input, shape index: {}]
  %s15 = inlined_call_operand.vmem [shape: f32[8,36], index: 15, kind: input, shape index: {}]
  %s16 = inlined_call_operand.vmem [shape: f32[8,36], index: 16, kind: input, shape index: {}]
  %s17 = inlined_call_operand.vmem [shape: f32[8,1], index: 17, kind: input, shape index: {}]
  %s18 = inlined_call_operand.vmem [shape: f32[2,8,256], index: 18, kind: output, shape index: {}]
  %s19 = sld [smem:[#allocation0]]
  $region109: #{_lambda_.1} parent=0
    _
  %s21 = ssub.s32 1, %s19
  %s22 = scalar_select 0, %s21, %s19
  $region1: #{_lambda_.1} parent=0
    #allocation8 [shape = 'u8[131072]{0}', space=vmem, size = 0x20000, scoped, tag = 'input window, operand 5, single buffered']
    #allocation9 [shape = 's32[2]{0}', space=sflag, size = 0x8, scoped, tag = 'scoped memory for _lambda_.1']
    %23 = vsyncpa [#allocation9], 0
    loop: start=0, step=1, limit=4
    $region2: #{_lambda_.1} parent=1 // loop_pre_header
      _
    $region3: #{_lambda_.1} parent=1 // loop_header
      %s25 = sphi 0, %s29
      %p26 = scmp.ge.s32.totalorder %s25, 4
      %s35 = sphi 0, %s37
      %s38 = sphi 0, %s35
      %s39 = sphi 0, %s38
      %s55 = sphi 0, %s39
      %s61 = sphi 0, %s63
      %s64 = sphi 0, %s61
      %s65 = sphi 0, %s64
      %s81 = sphi 0, %s65
      %s87 = sphi 0, %s89
      %s90 = sphi 0, %s87
      %s91 = sphi 0, %s90
      %s107 = sphi 0, %s91
      %s111 = sphi 0, %s111
      %s113 = sphi 0, %s111
      %s114 = sphi 0, %s113
      %s128 = sphi 0, %s114
      %s132 = sphi 0, %s132
      %s134 = sphi 0, %s132
      %s135 = sphi 0, %s134
      %s149 = sphi 0, %s135
      %s153 = sphi 0, %s153
      %s155 = sphi 0, %s153
      %s156 = sphi 0, %s155
      %s170 = sphi 0, %s156
      %s174 = sphi 0, %s174
      %s176 = sphi 0, %s174
      %s177 = sphi 0, %s176
      %s191 = sphi 0, %s177
      %s195 = sphi 0, %s195
      %s197 = sphi 0, %s195
      %s198 = sphi 0, %s197
      %s212 = sphi 0, %s198
      %s216 = sphi 0, %s216
      %s218 = sphi 0, %s216
      %s219 = sphi 0, %s218
      %s233 = sphi 0, %s219
      %s237 = sphi 0, %s237
      %s239 = sphi 0, %s237
      %s240 = sphi 0, %s239
      %s254 = sphi 0, %s240
      %s258 = sphi 0, %s258
      %s260 = sphi 0, %s258
      %s261 = sphi 0, %s260
      %s275 = sphi 0, %s261
      %s279 = sphi 0, %s279
      %s281 = sphi 0, %s279
      %s282 = sphi 0, %s281
      %s296 = sphi 0, %s282
      %s300 = sphi 0, %s300
      %s302 = sphi 0, %s300
      %s303 = sphi 0, %s302
      %s317 = sphi 0, %s303
      %s321 = sphi 0, %s321
      %s323 = sphi 0, %s321
      %s324 = sphi 0, %s323
      %s338 = sphi 0, %s324
      %s342 = sphi 0, %s342
      %s344 = sphi 0, %s342
      %s345 = sphi 0, %s344
      %s359 = sphi 0, %s345
      %s363 = sphi 0, %s363
      %s365 = sphi 0, %s363
      %s366 = sphi 0, %s365
      %s380 = sphi 0, %s366
      %s384 = sphi 0, %s384
      %s386 = sphi 0, %s384
      %s387 = sphi 0, %s386
      %s401 = sphi 0, %s387
      %s405 = sphi 0, %s405
      %s407 = sphi 0, %s405
      %s408 = sphi 0, %s407
      %s422 = sphi 0, %s408
      %s428 = sphi 0, %s430
      %s431 = sphi 0, %s428
      %s432 = sphi 0, %s431
      %s448 = sphi 0, %s432
    $region4: #{_lambda_.1} parent=1 // loop_header_branch
      %28 = sbr.rel (%p26) target = $region8
    $region5: #{_lambda_.1} parent=1 // loop_body
      %s30 = ssub.s32 %s25, 1
      %s31 = ssub.s32 %s25, 2
      %s32 = sadd.s32 %s25, 1
      %s33 = ssub.s32 %s25, %s32
      %p34 = scmp.eq.s32.totalorder %s33, 0
      %s36 = sadd.s32 %s35, 1
      %s37 = scalar_select %p34, %s35, %s36
      %p40 = pneg %p34
      %p41 = scmp.eq.s32.totalorder %s25, 1
      %p42 = por %p40, %p41
      %p43 = scmp.ne.s32.totalorder %s35, %s38
      %p44 = scmp.eq.s32.totalorder %s25, 0
      %p45 = por %p43, %p44
      %p46 = scmp.ne.s32.totalorder %s35, %s38
      %p47 = scmp.eq.s32.totalorder %s30, 1
      %p48 = por %p46, %p47
      %p49 = scmp.ne.s32.totalorder %s38, %s39
      %p50 = scmp.eq.s32.totalorder %s30, 0
      %p51 = por %p49, %p50
      %p52 = scmp.ne.s32.totalorder %s38, %s39
      %p53 = scmp.eq.s32.totalorder %s31, 1
      %p54 = por %p52, %p53
      %p56 = scmp.ne.s32.totalorder %s39, %s55
      %p57 = scmp.eq.s32.totalorder %s31, 0
      %p58 = por %p56, %p57
      %s59 = ssub.s32 %s25, %s32
      %p60 = scmp.eq.s32.totalorder %s59, 0
      %s62 = sadd.s32 %s61, 1
      %s63 = scalar_select %p60, %s61, %s62
      %p66 = pneg %p60
      %p67 = scmp.eq.s32.totalorder %s25, 1
      %p68 = por %p66, %p67
      %p69 = scmp.ne.s32.totalorder %s61, %s64
      %p70 = scmp.eq.s32.totalorder %s25, 0
      %p71 = por %p69, %p70
      %p72 = scmp.ne.s32.totalorder %s61, %s64
      %p73 = scmp.eq.s32.totalorder %s30, 1
      %p74 = por %p72, %p73
      %p75 = scmp.ne.s32.totalorder %s64, %s65
      %p76 = scmp.eq.s32.totalorder %s30, 0
      %p77 = por %p75, %p76
      %p78 = scmp.ne.s32.totalorder %s64, %s65
      %p79 = scmp.eq.s32.totalorder %s31, 1
      %p80 = por %p78, %p79
      %p82 = scmp.ne.s32.totalorder %s65, %s81
      %p83 = scmp.eq.s32.totalorder %s31, 0
      %p84 = por %p82, %p83
      %s85 = ssub.s32 %s25, %s32
      %p86 = scmp.eq.s32.totalorder %s85, 0
      %s88 = sadd.s32 %s87, 1
      %s89 = scalar_select %p86, %s87, %s88
      %p92 = pneg %p86
      %p93 = scmp.eq.s32.totalorder %s25, 1
      %p94 = por %p92, %p93
      %p95 = scmp.ne.s32.totalorder %s87, %s90
      %p96 = scmp.eq.s32.totalorder %s25, 0
      %p97 = por %p95, %p96
      %p98 = scmp.ne.s32.totalorder %s87, %s90
      %p99 = scmp.eq.s32.totalorder %s30, 1
      %p100 = por %p98, %p99
      %p101 = scmp.ne.s32.totalorder %s90, %s91
      %p102 = scmp.eq.s32.totalorder %s30, 0
      %p103 = por %p101, %p102
      %p104 = scmp.ne.s32.totalorder %s90, %s91
      %p105 = scmp.eq.s32.totalorder %s31, 1
      %p106 = por %p104, %p105
      %p108 = scmp.ne.s32.totalorder %s91, %s107
      %p109 = scmp.eq.s32.totalorder %s31, 0
      %p110 = por %p108, %p109
      %s112 = sadd.s32 %s111, 1
      %p115 = scmp.eq.s32.totalorder %s25, 1
      %p116 = scmp.ne.s32.totalorder %s111, %s113
      %p117 = scmp.eq.s32.totalorder %s25, 0
      %p118 = por %p116, %p117
      %p119 = scmp.ne.s32.totalorder %s111, %s113
      %p120 = scmp.eq.s32.totalorder %s30, 1
      %p121 = por %p119, %p120
      %p122 = scmp.ne.s32.totalorder %s113, %s114
      %p123 = scmp.eq.s32.totalorder %s30, 0
      %p124 = por %p122, %p123
      %p125 = scmp.ne.s32.totalorder %s113, %s114
      %p126 = scmp.eq.s32.totalorder %s31, 1
      %p127 = por %p125, %p126
      %p129 = scmp.ne.s32.totalorder %s114, %s128
      %p130 = scmp.eq.s32.totalorder %s31, 0
      %p131 = por %p129, %p130
      %s133 = sadd.s32 %s132, 1
      %p136 = scmp.eq.s32.totalorder %s25, 1
      %p137 = scmp.ne.s32.totalorder %s132, %s134
      %p138 = scmp.eq.s32.totalorder %s25, 0
      %p139 = por %p137, %p138
      %p140 = scmp.ne.s32.totalorder %s132, %s134
      %p141 = scmp.eq.s32.totalorder %s30, 1
      %p142 = por %p140, %p141
      %p143 = scmp.ne.s32.totalorder %s134, %s135
      %p144 = scmp.eq.s32.totalorder %s30, 0
      %p145 = por %p143, %p144
      %p146 = scmp.ne.s32.totalorder %s134, %s135
      %p147 = scmp.eq.s32.totalorder %s31, 1
      %p148 = por %p146, %p147
      %p150 = scmp.ne.s32.totalorder %s135, %s149
      %p151 = scmp.eq.s32.totalorder %s31, 0
      %p152 = por %p150, %p151
      %s154 = sadd.s32 %s153, 1
      %p157 = scmp.eq.s32.totalorder %s25, 1
      %p158 = scmp.ne.s32.totalorder %s153, %s155
      %p159 = scmp.eq.s32.totalorder %s25, 0
      %p160 = por %p158, %p159
      %p161 = scmp.ne.s32.totalorder %s153, %s155
      %p162 = scmp.eq.s32.totalorder %s30, 1
      %p163 = por %p161, %p162
      %p164 = scmp.ne.s32.totalorder %s155, %s156
      %p165 = scmp.eq.s32.totalorder %s30, 0
      %p166 = por %p164, %p165
      %p167 = scmp.ne.s32.totalorder %s155, %s156
      %p168 = scmp.eq.s32.totalorder %s31, 1
      %p169 = por %p167, %p168
      %p171 = scmp.ne.s32.totalorder %s156, %s170
      %p172 = scmp.eq.s32.totalorder %s31, 0
      %p173 = por %p171, %p172
      %s175 = sadd.s32 %s174, 1
      %p178 = scmp.eq.s32.totalorder %s25, 1
      %p179 = scmp.ne.s32.totalorder %s174, %s176
      %p180 = scmp.eq.s32.totalorder %s25, 0
      %p181 = por %p179, %p180
      %p182 = scmp.ne.s32.totalorder %s174, %s176
      %p183 = scmp.eq.s32.totalorder %s30, 1
      %p184 = por %p182, %p183
      %p185 = scmp.ne.s32.totalorder %s176, %s177
      %p186 = scmp.eq.s32.totalorder %s30, 0
      %p187 = por %p185, %p186
      %p188 = scmp.ne.s32.totalorder %s176, %s177
      %p189 = scmp.eq.s32.totalorder %s31, 1
      %p190 = por %p188, %p189
      %p192 = scmp.ne.s32.totalorder %s177, %s191
      %p193 = scmp.eq.s32.totalorder %s31, 0
      %p194 = por %p192, %p193
      %s196 = sadd.s32 %s195, 1
      %p199 = scmp.eq.s32.totalorder %s25, 1
      %p200 = scmp.ne.s32.totalorder %s195, %s197
      %p201 = scmp.eq.s32.totalorder %s25, 0
      %p202 = por %p200, %p201
      %p203 = scmp.ne.s32.totalorder %s195, %s197
      %p204 = scmp.eq.s32.totalorder %s30, 1
      %p205 = por %p203, %p204
      %p206 = scmp.ne.s32.totalorder %s197, %s198
      %p207 = scmp.eq.s32.totalorder %s30, 0
      %p208 = por %p206, %p207
      %p209 = scmp.ne.s32.totalorder %s197, %s198
      %p210 = scmp.eq.s32.totalorder %s31, 1
      %p211 = por %p209, %p210
      %p213 = scmp.ne.s32.totalorder %s198, %s212
      %p214 = scmp.eq.s32.totalorder %s31, 0
      %p215 = por %p213, %p214
      %s217 = sadd.s32 %s216, 1
      %p220 = scmp.eq.s32.totalorder %s25, 1
      %p221 = scmp.ne.s32.totalorder %s216, %s218
      %p222 = scmp.eq.s32.totalorder %s25, 0
      %p223 = por %p221, %p222
      %p224 = scmp.ne.s32.totalorder %s216, %s218
      %p225 = scmp.eq.s32.totalorder %s30, 1
      %p226 = por %p224, %p225
      %p227 = scmp.ne.s32.totalorder %s218, %s219
      %p228 = scmp.eq.s32.totalorder %s30, 0
      %p229 = por %p227, %p228
      %p230 = scmp.ne.s32.totalorder %s218, %s219
      %p231 = scmp.eq.s32.totalorder %s31, 1
      %p232 = por %p230, %p231
      %p234 = scmp.ne.s32.totalorder %s219, %s233
      %p235 = scmp.eq.s32.totalorder %s31, 0
      %p236 = por %p234, %p235
      %s238 = sadd.s32 %s237, 1
      %p241 = scmp.eq.s32.totalorder %s25, 1
      %p242 = scmp.ne.s32.totalorder %s237, %s239
      %p243 = scmp.eq.s32.totalorder %s25, 0
      %p244 = por %p242, %p243
      %p245 = scmp.ne.s32.totalorder %s237, %s239
      %p246 = scmp.eq.s32.totalorder %s30, 1
      %p247 = por %p245, %p246
      %p248 = scmp.ne.s32.totalorder %s239, %s240
      %p249 = scmp.eq.s32.totalorder %s30, 0
      %p250 = por %p248, %p249
      %p251 = scmp.ne.s32.totalorder %s239, %s240
      %p252 = scmp.eq.s32.totalorder %s31, 1
      %p253 = por %p251, %p252
      %p255 = scmp.ne.s32.totalorder %s240, %s254
      %p256 = scmp.eq.s32.totalorder %s31, 0
      %p257 = por %p255, %p256
      %s259 = sadd.s32 %s258, 1
      %p262 = scmp.eq.s32.totalorder %s25, 1
      %p263 = scmp.ne.s32.totalorder %s258, %s260
      %p264 = scmp.eq.s32.totalorder %s25, 0
      %p265 = por %p263, %p264
      %p266 = scmp.ne.s32.totalorder %s258, %s260
      %p267 = scmp.eq.s32.totalorder %s30, 1
      %p268 = por %p266, %p267
      %p269 = scmp.ne.s32.totalorder %s260, %s261
      %p270 = scmp.eq.s32.totalorder %s30, 0
      %p271 = por %p269, %p270
      %p272 = scmp.ne.s32.totalorder %s260, %s261
      %p273 = scmp.eq.s32.totalorder %s31, 1
      %p274 = por %p272, %p273
      %p276 = scmp.ne.s32.totalorder %s261, %s275
      %p277 = scmp.eq.s32.totalorder %s31, 0
      %p278 = por %p276, %p277
      %s280 = sadd.s32 %s279, 1
      %p283 = scmp.eq.s32.totalorder %s25, 1
      %p284 = scmp.ne.s32.totalorder %s279, %s281
      %p285 = scmp.eq.s32.totalorder %s25, 0
      %p286 = por %p284, %p285
      %p287 = scmp.ne.s32.totalorder %s279, %s281
      %p288 = scmp.eq.s32.totalorder %s30, 1
      %p289 = por %p287, %p288
      %p290 = scmp.ne.s32.totalorder %s281, %s282
      %p291 = scmp.eq.s32.totalorder %s30, 0
      %p292 = por %p290, %p291
      %p293 = scmp.ne.s32.totalorder %s281, %s282
      %p294 = scmp.eq.s32.totalorder %s31, 1
      %p295 = por %p293, %p294
      %p297 = scmp.ne.s32.totalorder %s282, %s296
      %p298 = scmp.eq.s32.totalorder %s31, 0
      %p299 = por %p297, %p298
      %s301 = sadd.s32 %s300, 1
      %p304 = scmp.eq.s32.totalorder %s25, 1
      %p305 = scmp.ne.s32.totalorder %s300, %s302
      %p306 = scmp.eq.s32.totalorder %s25, 0
      %p307 = por %p305, %p306
      %p308 = scmp.ne.s32.totalorder %s300, %s302
      %p309 = scmp.eq.s32.totalorder %s30, 1
      %p310 = por %p308, %p309
      %p311 = scmp.ne.s32.totalorder %s302, %s303
      %p312 = scmp.eq.s32.totalorder %s30, 0
      %p313 = por %p311, %p312
      %p314 = scmp.ne.s32.totalorder %s302, %s303
      %p315 = scmp.eq.s32.totalorder %s31, 1
      %p316 = por %p314, %p315
      %p318 = scmp.ne.s32.totalorder %s303, %s317
      %p319 = scmp.eq.s32.totalorder %s31, 0
      %p320 = por %p318, %p319
      %s322 = sadd.s32 %s321, 1
      %p325 = scmp.eq.s32.totalorder %s25, 1
      %p326 = scmp.ne.s32.totalorder %s321, %s323
      %p327 = scmp.eq.s32.totalorder %s25, 0
      %p328 = por %p326, %p327
      %p329 = scmp.ne.s32.totalorder %s321, %s323
      %p330 = scmp.eq.s32.totalorder %s30, 1
      %p331 = por %p329, %p330
      %p332 = scmp.ne.s32.totalorder %s323, %s324
      %p333 = scmp.eq.s32.totalorder %s30, 0
      %p334 = por %p332, %p333
      %p335 = scmp.ne.s32.totalorder %s323, %s324
      %p336 = scmp.eq.s32.totalorder %s31, 1
      %p337 = por %p335, %p336
      %p339 = scmp.ne.s32.totalorder %s324, %s338
      %p340 = scmp.eq.s32.totalorder %s31, 0
      %p341 = por %p339, %p340
      %s343 = sadd.s32 %s342, 1
      %p346 = scmp.eq.s32.totalorder %s25, 1
      %p347 = scmp.ne.s32.totalorder %s342, %s344
      %p348 = scmp.eq.s32.totalorder %s25, 0
      %p349 = por %p347, %p348
      %p350 = scmp.ne.s32.totalorder %s342, %s344
      %p351 = scmp.eq.s32.totalorder %s30, 1
      %p352 = por %p350, %p351
      %p353 = scmp.ne.s32.totalorder %s344, %s345
      %p354 = scmp.eq.s32.totalorder %s30, 0
      %p355 = por %p353, %p354
      %p356 = scmp.ne.s32.totalorder %s344, %s345
      %p357 = scmp.eq.s32.totalorder %s31, 1
      %p358 = por %p356, %p357
      %p360 = scmp.ne.s32.totalorder %s345, %s359
      %p361 = scmp.eq.s32.totalorder %s31, 0
      %p362 = por %p360, %p361
      %s364 = sadd.s32 %s363, 1
      %p367 = scmp.eq.s32.totalorder %s25, 1
      %p368 = scmp.ne.s32.totalorder %s363, %s365
      %p369 = scmp.eq.s32.totalorder %s25, 0
      %p370 = por %p368, %p369
      %p371 = scmp.ne.s32.totalorder %s363, %s365
      %p372 = scmp.eq.s32.totalorder %s30, 1
      %p373 = por %p371, %p372
      %p374 = scmp.ne.s32.totalorder %s365, %s366
      %p375 = scmp.eq.s32.totalorder %s30, 0
      %p376 = por %p374, %p375
      %p377 = scmp.ne.s32.totalorder %s365, %s366
      %p378 = scmp.eq.s32.totalorder %s31, 1
      %p379 = por %p377, %p378
      %p381 = scmp.ne.s32.totalorder %s366, %s380
      %p382 = scmp.eq.s32.totalorder %s31, 0
      %p383 = por %p381, %p382
      %s385 = sadd.s32 %s384, 1
      %p388 = scmp.eq.s32.totalorder %s25, 1
      %p389 = scmp.ne.s32.totalorder %s384, %s386
      %p390 = scmp.eq.s32.totalorder %s25, 0
      %p391 = por %p389, %p390
      %p392 = scmp.ne.s32.totalorder %s384, %s386
      %p393 = scmp.eq.s32.totalorder %s30, 1
      %p394 = por %p392, %p393
      %p395 = scmp.ne.s32.totalorder %s386, %s387
      %p396 = scmp.eq.s32.totalorder %s30, 0
      %p397 = por %p395, %p396
      %p398 = scmp.ne.s32.totalorder %s386, %s387
      %p399 = scmp.eq.s32.totalorder %s31, 1
      %p400 = por %p398, %p399
      %p402 = scmp.ne.s32.totalorder %s387, %s401
      %p403 = scmp.eq.s32.totalorder %s31, 0
      %p404 = por %p402, %p403
      %s406 = sadd.s32 %s405, 1
      %p409 = scmp.eq.s32.totalorder %s25, 1
      %p410 = scmp.ne.s32.totalorder %s405, %s407
      %p411 = scmp.eq.s32.totalorder %s25, 0
      %p412 = por %p410, %p411
      %p413 = scmp.ne.s32.totalorder %s405, %s407
      %p414 = scmp.eq.s32.totalorder %s30, 1
      %p415 = por %p413, %p414
      %p416 = scmp.ne.s32.totalorder %s407, %s408
      %p417 = scmp.eq.s32.totalorder %s30, 0
      %p418 = por %p416, %p417
      %p419 = scmp.ne.s32.totalorder %s407, %s408
      %p420 = scmp.eq.s32.totalorder %s31, 1
      %p421 = por %p419, %p420
      %p423 = scmp.ne.s32.totalorder %s408, %s422
      %p424 = scmp.eq.s32.totalorder %s31, 0
      %p425 = por %p423, %p424
      %s426 = ssub.s32 %s25, %s32
      %p427 = scmp.eq.s32.totalorder %s426, 0
      %s429 = sadd.s32 %s428, 1
      %s430 = scalar_select %p427, %s428, %s429
      %p433 = pneg %p427
      %p434 = scmp.eq.s32.totalorder %s25, 1
      %p435 = por %p433, %p434
      %p436 = scmp.ne.s32.totalorder %s428, %s431
      %p437 = scmp.eq.s32.totalorder %s25, 0
      %p438 = por %p436, %p437
      %p439 = scmp.ne.s32.totalorder %s428, %s431
      %p440 = scmp.eq.s32.totalorder %s30, 1
      %p441 = por %p439, %p440
      %p442 = scmp.ne.s32.totalorder %s431, %s432
      %p443 = scmp.eq.s32.totalorder %s30, 0
      %p444 = por %p442, %p443
      %p445 = scmp.ne.s32.totalorder %s431, %s432
      %p446 = scmp.eq.s32.totalorder %s31, 1
      %p447 = por %p445, %p446
      %p449 = scmp.ne.s32.totalorder %s432, %s448
      %p450 = scmp.eq.s32.totalorder %s31, 0
      %p451 = por %p449, %p450
      %p452 = scmp.le.s32.totalorder 1, %s25
      %p453 = scmp.lt.s32.totalorder %s25, 3
      %p454 = pnand %p452, %p453
      %p455 = pneg %p454
      // Predicated region
      $region9: #{_lambda_.1} parent=5 // pred_check
        _
      $region10: #{_lambda_.1} parent=5 // pred_check_branch
        %457 = sbr.rel (%p454) target = $region12
      $region11: #{_lambda_.1} parent=5 // pred_region
        %s458 = ssub.s32 %s25, 1
        // Predicated region
        $region13: #{_lambda_.1} parent=11 // pred_check
          %p459 = pneg %p124
        $region14: #{_lambda_.1} parent=11 // pred_check_branch
          %461 = sbr.rel (%p459) target = $region16
        $region15: #{_lambda_.1} parent=11 // pred_region
          _
        $region16: #{_lambda_.1} parent=11 // pred_fallthru
          _
        // Predicated region
        $region17: #{_lambda_.1} parent=11 // pred_check
          %p462 = pneg %p145
        $region18: #{_lambda_.1} parent=11 // pred_check_branch
          %464 = sbr.rel (%p462) target = $region20
        $region19: #{_lambda_.1} parent=11 // pred_region
          _
        $region20: #{_lambda_.1} parent=11 // pred_fallthru
          _
        // Predicated region
        $region21: #{_lambda_.1} parent=11 // pred_check
          %p465 = pneg %p166
        $region22: #{_lambda_.1} parent=11 // pred_check_branch
          %467 = sbr.rel (%p465) target = $region24
        $region23: #{_lambda_.1} parent=11 // pred_region
          %s469 = ssub.s32 4096, 4096
          %470 = vsyncadd [#allocation9], %s469
          %s471 = sshll.u32 [#allocation8], 4
          %s472 = int_to_ptr.vmem [resolvable:$true] %s471
          %477 = dma.hbm_to_vmem [thread:$0]  %s5, 4096, %s472, [#allocation9], 128, 128, 8
        $region24: #{_lambda_.1} parent=11 // pred_fallthru
          _
        // Predicated region
        $region25: #{_lambda_.1} parent=11 // pred_check
          %p478 = pneg %p187
        $region26: #{_lambda_.1} parent=11 // pred_check_branch
          %480 = sbr.rel (%p478) target = $region28
        $region27: #{_lambda_.1} parent=11 // pred_region
          _
        $region28: #{_lambda_.1} parent=11 // pred_fallthru
          _
        // Predicated region
        $region29: #{_lambda_.1} parent=11 // pred_check
          %p481 = pneg %p208
        $region30: #{_lambda_.1} parent=11 // pred_check_branch
          %483 = sbr.rel (%p481) target = $region32
        $region31: #{_lambda_.1} parent=11 // pred_region
          _
        $region32: #{_lambda_.1} parent=11 // pred_fallthru
          _
        // Predicated region
        $region33: #{_lambda_.1} parent=11 // pred_check
          %p484 = pneg %p229
        $region34: #{_lambda_.1} parent=11 // pred_check_branch
          %486 = sbr.rel (%p484) target = $region36
        $region35: #{_lambda_.1} parent=11 // pred_region
          _
        $region36: #{_lambda_.1} parent=11 // pred_fallthru
          _
        // Predicated region
        $region37: #{_lambda_.1} parent=11 // pred_check
          %p487 = pneg %p250
        $region38: #{_lambda_.1} parent=11 // pred_check_branch
          %489 = sbr.rel (%p487) target = $region40
        $region39: #{_lambda_.1} parent=11 // pred_region
          _
        $region40: #{_lambda_.1} parent=11 // pred_fallthru
          _
        // Predicated region
        $region41: #{_lambda_.1} parent=11 // pred_check
          %p490 = pneg %p271
        $region42: #{_lambda_.1} parent=11 // pred_check_branch
          %492 = sbr.rel (%p490) target = $region44
        $region43: #{_lambda_.1} parent=11 // pred_region
          _
        $region44: #{_lambda_.1} parent=11 // pred_fallthru
          _
        // Predicated region
        $region45: #{_lambda_.1} parent=11 // pred_check
          %p493 = pneg %p292
        $region46: #{_lambda_.1} parent=11 // pred_check_branch
          %495 = sbr.rel (%p493) target = $region48
        $region47: #{_lambda_.1} parent=11 // pred_region
          _
        $region48: #{_lambda_.1} parent=11 // pred_fallthru
          _
        // Predicated region
        $region49: #{_lambda_.1} parent=11 // pred_check
          %p496 = pneg %p313
        $region50: #{_lambda_.1} parent=11 // pred_check_branch
          %498 = sbr.rel (%p496) target = $region52
        $region51: #{_lambda_.1} parent=11 // pred_region
          _
        $region52: #{_lambda_.1} parent=11 // pred_fallthru
          _
        // Predicated region
        $region53: #{_lambda_.1} parent=11 // pred_check
          %p499 = pneg %p334
        $region54: #{_lambda_.1} parent=11 // pred_check_branch
          %501 = sbr.rel (%p499) target = $region56
        $region55: #{_lambda_.1} parent=11 // pred_region
          _
        $region56: #{_lambda_.1} parent=11 // pred_fallthru
          _
        // Predicated region
        $region57: #{_lambda_.1} parent=11 // pred_check
          %p502 = pneg %p355
        $region58: #{_lambda_.1} parent=11 // pred_check_branch
          %504 = sbr.rel (%p502) target = $region60
        $region59: #{_lambda_.1} parent=11 // pred_region
          _
        $region60: #{_lambda_.1} parent=11 // pred_fallthru
          _
        // Predicated region
        $region61: #{_lambda_.1} parent=11 // pred_check
          %p505 = pneg %p376
        $region62: #{_lambda_.1} parent=11 // pred_check_branch
          %507 = sbr.rel (%p505) target = $region64
        $region63: #{_lambda_.1} parent=11 // pred_region
          _
        $region64: #{_lambda_.1} parent=11 // pred_fallthru
          _
        // Predicated region
        $region65: #{_lambda_.1} parent=11 // pred_check
          %p508 = pneg %p397
        $region66: #{_lambda_.1} parent=11 // pred_check_branch
          %510 = sbr.rel (%p508) target = $region68
        $region67: #{_lambda_.1} parent=11 // pred_region
          _
        $region68: #{_lambda_.1} parent=11 // pred_fallthru
          _
        // Predicated region
        $region69: #{_lambda_.1} parent=11 // pred_check
          %p511 = pneg %p418
        $region70: #{_lambda_.1} parent=11 // pred_check_branch
          %513 = sbr.rel (%p511) target = $region72
        $region71: #{_lambda_.1} parent=11 // pred_region
          _
        $region72: #{_lambda_.1} parent=11 // pred_fallthru
          _
      $region12: #{_lambda_.1} parent=5 // pred_fallthru
        _
      %p514 = scmp.lt.s32.totalorder %s25, 2
      // Predicated region
      $region73: #{_lambda_.1} parent=5 // pred_check
        %p515 = pneg %p514
      $region74: #{_lambda_.1} parent=5 // pred_check_branch
        %517 = sbr.rel (%p515) target = $region76
      $region75: #{_lambda_.1} parent=5 // pred_region
        // Predicated region
        $region77: #{_lambda_.1} parent=75 // pred_check
          %p518 = pneg %p45
        $region78: #{_lambda_.1} parent=75 // pred_check_branch
          %520 = sbr.rel (%p518) target = $region80
        $region79: #{_lambda_.1} parent=75 // pred_region
          %p521 = scmp.lt.s32.totalorder %s25, 1
          %s522 = scalar_select %p521, %s25, 1
          %s523 = smul.addr %s522, 2
          %s524 = scalar_lea.vmem %s0, %s523
        $region80: #{_lambda_.1} parent=75 // pred_fallthru
          _
        // Predicated region
        $region81: #{_lambda_.1} parent=75 // pred_check
          %p525 = pneg %p71
        $region82: #{_lambda_.1} parent=75 // pred_check_branch
          %527 = sbr.rel (%p525) target = $region84
        $region83: #{_lambda_.1} parent=75 // pred_region
          %p528 = scmp.lt.s32.totalorder %s25, 1
          %s529 = scalar_select %p528, %s25, 1
          %s530 = smul.addr %s529, 2
          %s531 = scalar_lea.vmem %s1, %s530
        $region84: #{_lambda_.1} parent=75 // pred_fallthru
          _
        // Predicated region
        $region85: #{_lambda_.1} parent=75 // pred_check
          %p532 = pneg %p97
        $region86: #{_lambda_.1} parent=75 // pred_check_branch
          %534 = sbr.rel (%p532) target = $region88
        $region87: #{_lambda_.1} parent=75 // pred_region
          %p535 = scmp.lt.s32.totalorder %s25, 1
          %s536 = scalar_select %p535, %s25, 1
          %s537 = smul.addr %s536, 2
          %s538 = smul.addr %s537, 4
          %s539 = scalar_lea.vmem %s2, %s538
        $region88: #{_lambda_.1} parent=75 // pred_fallthru
          _
      $region76: #{_lambda_.1} parent=5 // pred_fallthru
        _
      %p540 = scmp.le.s32.totalorder 1, %s25
      %p541 = scmp.lt.s32.totalorder %s25, 3
      %p542 = pnand %p540, %p541
      %p543 = pneg %p542
      // Predicated region
      $region89: #{_lambda_.1} parent=5 // pred_check
        _
      $region90: #{_lambda_.1} parent=5 // pred_check_branch
        %545 = sbr.rel (%p542) target = $region92
      $region91: #{_lambda_.1} parent=5 // pred_region
        %s546 = ssub.s32 %s25, 1
        // Predicated region
        $region93: #{_lambda_.1} parent=91 // pred_check
          %p547 = pneg %p166
        $region94: #{_lambda_.1} parent=91 // pred_check_branch
          %549 = sbr.rel (%p547) target = $region96
        $region95: #{_lambda_.1} parent=91 // pred_region
          %550 = dma.done [#allocation9], 4096
        $region96: #{_lambda_.1} parent=91 // pred_fallthru
          _
        %p551 = scmp.lt.s32.totalorder %s30, 1
        %s552 = scalar_select %p551, %s30, 1
        %s553 = smul.addr %s552, 2
        %s554 = scalar_lea.vmem %s0, %s553
        %p555 = pneg %p51
        %p556 = pneg %p48
        %p557 = scmp.lt.s32.totalorder %s30, 1
        %s558 = scalar_select %p557, %s30, 1
        %s559 = smul.addr %s558, 2
        %s560 = scalar_lea.vmem %s1, %s559
        %p561 = pneg %p77
        %p562 = pneg %p74
        %p563 = scmp.lt.s32.totalorder %s30, 1
        %s564 = scalar_select %p563, %s30, 1
        %s565 = smul.addr %s564, 2
        %s566 = smul.addr %s565, 4
        %s567 = scalar_lea.vmem %s2, %s566
        %p568 = pneg %p103
        %p569 = pneg %p100
        %p570 = pneg %p124
        %p571 = pneg %p121
        %p572 = pneg %p145
        %p573 = pneg %p142
        %p574 = pneg %p166
        %p575 = pneg %p163
        %p576 = pneg %p187
        %p577 = pneg %p184
        %p578 = pneg %p208
        %p579 = pneg %p205
        %p580 = pneg %p229
        %p581 = pneg %p226
        %p582 = pneg %p250
        %p583 = pneg %p247
        %p584 = pneg %p271
        %p585 = pneg %p268
        %p586 = pneg %p292
        %p587 = pneg %p289
        %p588 = pneg %p313
        %p589 = pneg %p310
        %p590 = pneg %p334
        %p591 = pneg %p331
        %p592 = pneg %p355
        %p593 = pneg %p352
        %p594 = pneg %p376
        %p595 = pneg %p373
        %p596 = pneg %p397
        %p597 = pneg %p394
        %p598 = pneg %p418
        %p599 = pneg %p415
        %p600 = pneg %p444
        %p601 = pneg %p441
        %p602 = scmp.lt.s32.totalorder %s30, 1
        %s603 = scalar_select %p602, %s30, 1
        %s604 = smul.addr %s603, 2
        %s605 = smul.addr %s604, 8
        %s606 = scalar_lea.vmem %s18, %s605
        %p607 = scmp.lt.s32.totalorder %s30, 1
        %s608 = scalar_select %p607, %s30, 1
        %s609 = smul.addr %s608, 2
        %s610 = scalar_lea.vmem %s0, %s609
        %p611 = scmp.lt.s32.totalorder %s30, 1
        %s612 = scalar_select %p611, %s30, 1
        %s613 = smul.addr %s612, 2
        %s614 = scalar_lea.vmem %s1, %s613
        %p615 = scmp.lt.s32.totalorder %s30, 1
        %s616 = scalar_select %p615, %s30, 1
        %s617 = smul.addr %s616, 2
        %s618 = smul.addr %s617, 4
        %s619 = scalar_lea.vmem %s2, %s618
        %p620 = scmp.lt.s32.totalorder %s30, 1
        %s621 = scalar_select %p620, %s30, 1
        %s622 = smul.addr %s621, 2
        %s623 = smul.addr %s622, 8
        %s624 = scalar_lea.vmem %s18, %s623
        %v625 = vld [vmem:[%s610] sm:$0x3]
        %v626 = vld [vmem:[%s614] sm:$0x3]
        %v627 = vld [vmem:[%s619] sm:$0xff]
        %v628 = vld [vmem:[%s3] sm:$0xff]
        %v629 = vld [vmem:[%s3 + $0x8] sm:$0xff]
        %v630 = vld [vmem:[%s4] sm:$0xff]
        %v631 = vld [vmem:[%s4 + $0x8] sm:$0xff]
        %v632 = vld [vmem:[%s4 + $0x10] sm:$0xff]
        %v633 = vld [vmem:[%s4 + $0x18] sm:$0xff]
        %v634 = vld [vmem:[%s4 + $0x20] sm:$0xff]
        %v635 = vld [vmem:[%s4 + $0x28] sm:$0xff]
        %v636 = vld [vmem:[%s4 + $0x30] sm:$0xff]
        %v637 = vld [vmem:[%s4 + $0x38] sm:$0xff]
        %v638 = vld [vmem:[%s4 + $0x40] sm:$0xff]
        %v639 = vld [vmem:[%s4 + $0x48] sm:$0xff]
        %v640 = vld [vmem:[%s4 + $0x50] sm:$0xff]
        %v641 = vld [vmem:[%s4 + $0x58] sm:$0xff]
        %v642 = vld [vmem:[%s4 + $0x60] sm:$0xff]
        %v643 = vld [vmem:[%s4 + $0x68] sm:$0xff]
        %v644 = vld [vmem:[%s4 + $0x70] sm:$0xff]
        %v645 = vld [vmem:[%s4 + $0x78] sm:$0xff]
        %v646 = vld [vmem:[#allocation8] sm:$0xff]
        %v647 = vld [vmem:[#allocation8 + $0x8] sm:$0xff]
        %v648 = vld [vmem:[#allocation8 + $0x10] sm:$0xff]
        %v649 = vld [vmem:[#allocation8 + $0x18] sm:$0xff]
        %v650 = vld [vmem:[#allocation8 + $0x20] sm:$0xff]
        %v651 = vld [vmem:[#allocation8 + $0x28] sm:$0xff]
        %v652 = vld [vmem:[#allocation8 + $0x30] sm:$0xff]
        %v653 = vld [vmem:[#allocation8 + $0x38] sm:$0xff]
        %v654 = vld [vmem:[#allocation8 + $0x40] sm:$0xff]
        %v655 = vld [vmem:[#allocation8 + $0x48] sm:$0xff]
        %v656 = vld [vmem:[#allocation8 + $0x50] sm:$0xff]
        %v657 = vld [vmem:[#allocation8 + $0x58] sm:$0xff]
        %v658 = vld [vmem:[#allocation8 + $0x60] sm:$0xff]
        %v659 = vld [vmem:[#allocation8 + $0x68] sm:$0xff]
        %v660 = vld [vmem:[#allocation8 + $0x70] sm:$0xff]
        %v661 = vld [vmem:[#allocation8 + $0x78] sm:$0xff]
        %v662 = vld [vmem:[#allocation8 + $0x80] sm:$0xff]
        %v663 = vld [vmem:[#allocation8 + $0x88] sm:$0xff]
        %v664 = vld [vmem:[#allocation8 + $0x90] sm:$0xff]
        %v665 = vld [vmem:[#allocation8 + $0x98] sm:$0xff]
        %v666 = vld [vmem:[#allocation8 + $0xa0] sm:$0xff]
        %v667 = vld [vmem:[#allocation8 + $0xa8] sm:$0xff]
        %v668 = vld [vmem:[#allocation8 + $0xb0] sm:$0xff]
        %v669 = vld [vmem:[#allocation8 + $0xb8] sm:$0xff]
        %v670 = vld [vmem:[#allocation8 + $0xc0] sm:$0xff]
        %v671 = vld [vmem:[#allocation8 + $0xc8] sm:$0xff]
        %v672 = vld [vmem:[#allocation8 + $0xd0] sm:$0xff]
        %v673 = vld [vmem:[#allocation8 + $0xd8] sm:$0xff]
        %v674 = vld [vmem:[#allocation8 + $0xe0] sm:$0xff]
        %v675 = vld [vmem:[#allocation8 + $0xe8] sm:$0xff]
        %v676 = vld [vmem:[#allocation8 + $0xf0] sm:$0xff]
        %v677 = vld [vmem:[#allocation8 + $0xf8] sm:$0xff]
        %vm678 = vcmask 523264
        %v680 = vsel %vm678, %v625, 0
        %682 = vmatprep.subr.mxu0 %v631
        %683 = vmatpush1.msra.mxu0 %v630
        %684 = vmatprep.subr.mxu0 %v633
        %685 = vmatpush1.msra.mxu0 %v632
        %686 = vmatprep.subr.mxu0 %v635
        %687 = vmatpush1.msra.mxu0 %v634
        %688 = vmatprep.subr.mxu0 %v637
        %689 = vmatpush1.msra.mxu0 %v636
        %690 = vmatprep.subr.mxu0 %v639
        %691 = vmatpush1.msra.mxu0 %v638
        %692 = vmatprep.subr.mxu0 %v641
        %693 = vmatpush1.msra.mxu0 %v640
        %694 = vmatprep.subr.mxu0 %v643
        %695 = vmatpush1.msra.mxu0 %v642
        %696 = vmatprep.subr.mxu0 %v645
        %697 = vmatpush1.msra.mxu0 %v644
        %698 = vmatprep.subr.mxu0 0.0
        %699 = vmatpush1.msra.mxu0 0.0
        %700 = vmatprep.subr.mxu0 0.0
        %701 = vmatpush1.msra.mxu0 0.0
        %702 = vmatprep.subr.mxu0 0.0
        %703 = vmatpush1.msra.mxu0 0.0
        %704 = vmatprep.subr.mxu0 0.0
        %705 = vmatpush1.msra.mxu0 0.0
        %706 = vmatprep.subr.mxu0 0.0
        %707 = vmatpush1.msra.mxu0 0.0
        %708 = vmatprep.subr.mxu0 0.0
        %709 = vmatpush1.msra.mxu0 0.0
        %710 = vmatprep.subr.mxu0 0.0
        %711 = vmatpush1.msra.mxu0 0.0
        %712 = vmatprep.subr.mxu0 0.0
        %713 = vmatpush1.msra.mxu0 0.0
        %714 = vmatprep.subr.mxu0 0.0
        %715 = vmatpush1.msra.mxu0 0.0
        %716 = vmatprep.subr.mxu0 0.0
        %717 = vmatpush1.msra.mxu0 0.0
        %718 = vmatprep.subr.mxu0 0.0
        %719 = vmatpush1.msra.mxu0 0.0
        %720 = vmatprep.subr.mxu0 0.0
        %721 = vmatpush1.msra.mxu0 0.0
        %722 = vmatprep.subr.mxu0 0.0
        %723 = vmatpush1.msra.mxu0 0.0
        %724 = vmatprep.subr.mxu0 0.0
        %725 = vmatpush1.msra.mxu0 0.0
        %726 = vmatprep.subr.mxu0 0.0
        %727 = vmatpush1.msra.mxu0 0.0
        %728 = vmatprep.subr.mxu0 0.0
        %729 = vmatpush1.msra.mxu0 0.0
        %730 = vmatprep.subr.mxu0 0.0
        %731 = vmatpush1.msra.mxu0 0.0
        %732 = vmatprep.subr.mxu0 0.0
        %733 = vmatpush1.msra.mxu0 0.0
        %734 = vmatprep.subr.mxu0 0.0
        %735 = vmatpush1.msra.mxu0 0.0
        %736 = vmatprep.subr.mxu0 0.0
        %737 = vmatpush1.msra.mxu0 0.0
        %738 = vmatprep.subr.mxu0 0.0
        %739 = vmatpush1.msra.mxu0 0.0
        %740 = vmatprep.subr.mxu0 0.0
        %741 = vmatpush1.msra.mxu0 0.0
        %742 = vmatprep.subr.mxu0 0.0
        %743 = vmatpush1.msra.mxu0 0.0
        %744 = vmatprep.subr.mxu0 0.0
        %745 = vmatpush1.msra.mxu0 0.0
        %746 = vmatprep.mubr.f32.mxu0 0.0
        %747 = vmatmul.mubr.f32.gmra.mrb[0].mxu0 %v680
        %v748 = vpop.f32.mrb[0].mxu0
        %v749 = vadd.f32 0.0, %v748
        %v750 = vpop.f32.mrb[0].mxu0
        %v751 = vadd.f32 0.0, %v750
        %752 = vdwg.mxu0
        %vm753 = vcmask 130048
        %v755 = vsel %vm753, %v626, 0
        %757 = vmatprep.subr.mxu0 0.0
        %758 = vmatpush1.msra.mxu0 %v628
        %759 = vmatprep.subr.mxu0 0.0
        %760 = vmatpush1.msra.mxu0 %v629
        %761 = vmatprep.subr.mxu0 0.0
        %762 = vmatpush1.msra.mxu0 0.0
        %763 = vmatprep.subr.mxu0 0.0
        %764 = vmatpush1.msra.mxu0 0.0
        %765 = vmatprep.subr.mxu0 0.0
        %766 = vmatpush1.msra.mxu0 0.0
        %767 = vmatprep.subr.mxu0 0.0
        %768 = vmatpush1.msra.mxu0 0.0
        %769 = vmatprep.subr.mxu0 0.0
        %770 = vmatpush1.msra.mxu0 0.0
        %771 = vmatprep.subr.mxu0 0.0
        %772 = vmatpush1.msra.mxu0 0.0
        %773 = vmatprep.subr.mxu0 0.0
        %774 = vmatpush1.msra.mxu0 0.0
        %775 = vmatprep.subr.mxu0 0.0
        %776 = vmatpush1.msra.mxu0 0.0
        %777 = vmatprep.subr.mxu0 0.0
        %778 = vmatpush1.msra.mxu0 0.0
        %779 = vmatprep.subr.mxu0 0.0
        %780 = vmatpush1.msra.mxu0 0.0
        %781 = vmatprep.subr.mxu0 0.0
        %782 = vmatpush1.msra.mxu0 0.0
        %783 = vmatprep.subr.mxu0 0.0
        %784 = vmatpush1.msra.mxu0 0.0
        %785 = vmatprep.subr.mxu0 0.0
        %786 = vmatpush1.msra.mxu0 0.0
        %787 = vmatprep.subr.mxu0 0.0
        %788 = vmatpush1.msra.mxu0 0.0
        %789 = vmatprep.subr.mxu0 0.0
        %790 = vmatpush1.msra.mxu0 0.0
        %791 = vmatprep.subr.mxu0 0.0
        %792 = vmatpush1.msra.mxu0 0.0
        %793 = vmatprep.subr.mxu0 0.0
        %794 = vmatpush1.msra.mxu0 0.0
        %795 = vmatprep.subr.mxu0 0.0
        %796 = vmatpush1.msra.mxu0 0.0
        %797 = vmatprep.subr.mxu0 0.0
        %798 = vmatpush1.msra.mxu0 0.0
        %799 = vmatprep.subr.mxu0 0.0
        %800 = vmatpush1.msra.mxu0 0.0
        %801 = vmatprep.subr.mxu0 0.0
        %802 = vmatpush1.msra.mxu0 0.0
        %803 = vmatprep.subr.mxu0 0.0
        %804 = vmatpush1.msra.mxu0 0.0
        %805 = vmatprep.subr.mxu0 0.0
        %806 = vmatpush1.msra.mxu0 0.0
        %807 = vmatprep.subr.mxu0 0.0
        %808 = vmatpush1.msra.mxu0 0.0
        %809 = vmatprep.subr.mxu0 0.0
        %810 = vmatpush1.msra.mxu0 0.0
        %811 = vmatprep.subr.mxu0 0.0
        %812 = vmatpush1.msra.mxu0 0.0
        %813 = vmatprep.subr.mxu0 0.0
        %814 = vmatpush1.msra.mxu0 0.0
        %815 = vmatprep.subr.mxu0 0.0
        %816 = vmatpush1.msra.mxu0 0.0
        %817 = vmatprep.subr.mxu0 0.0
        %818 = vmatpush1.msra.mxu0 0.0
        %819 = vmatprep.subr.mxu0 0.0
        %820 = vmatpush1.msra.mxu0 0.0
        %821 = vmatprep.mubr.f32.mxu0 0.0
        %822 = vmatmul.mubr.f32.gmra.mrb[0].mxu0 %v755
        %v823 = vpop.f32.mrb[0].mxu0
        %v824 = vadd.f32 0.0, %v823
        %v825 = vpop.f32.mrb[0].mxu0
        %826 = vdwg.mxu0
        %v827 = vld [vmem:[%s6] sm:$0x3]
        %v828 = vld [vmem:[%s7] sm:$0x3]
        %830 = vset.pattern.permute.xlu0 0
        %831 = vperm.xlu0 %830, %v828
        %v832 = vpop.permute.xlu0 %831
        %v835 = vcombine.high %v627, %v627
        %vm836 = vcmask 31744
        %v838 = vsel %vm836, %v827, 0
        %vm840 = vcmask 1043456
        %v841 = vsel %vm840, %v627, 0
        %v843 = vsel %vm840, %v835, 0
        %845 = vmatprep.subr.mxu0 %v843
        %846 = vmatpush1.msra.mxu0 %v841
        %847 = vmatprep.subr.mxu0 0.0
        %848 = vmatpush1.msra.mxu0 0.0
        %849 = vmatprep.subr.mxu0 0.0
        %850 = vmatpush1.msra.mxu0 0.0
        %851 = vmatprep.subr.mxu0 0.0
        %852 = vmatpush1.msra.mxu0 0.0
        %853 = vmatprep.subr.mxu0 0.0
        %854 = vmatpush1.msra.mxu0 0.0
        %855 = vmatprep.subr.mxu0 0.0
        %856 = vmatpush1.msra.mxu0 0.0
        %857 = vmatprep.subr.mxu0 0.0
        %858 = vmatpush1.msra.mxu0 0.0
        %859 = vmatprep.subr.mxu0 0.0
        %860 = vmatpush1.msra.mxu0 0.0
        %861 = vmatprep.subr.mxu0 0.0
        %862 = vmatpush1.msra.mxu0 0.0
        %863 = vmatprep.subr.mxu0 0.0
        %864 = vmatpush1.msra.mxu0 0.0
        %865 = vmatprep.subr.mxu0 0.0
        %866 = vmatpush1.msra.mxu0 0.0
        %867 = vmatprep.subr.mxu0 0.0
        %868 = vmatpush1.msra.mxu0 0.0
        %869 = vmatprep.subr.mxu0 0.0
        %870 = vmatpush1.msra.mxu0 0.0
        %871 = vmatprep.subr.mxu0 0.0
        %872 = vmatpush1.msra.mxu0 0.0
        %873 = vmatprep.subr.mxu0 0.0
        %874 = vmatpush1.msra.mxu0 0.0
        %875 = vmatprep.subr.mxu0 0.0
        %876 = vmatpush1.msra.mxu0 0.0
        %877 = vmatprep.subr.mxu0 0.0
        %878 = vmatpush1.msra.mxu0 0.0
        %879 = vmatprep.subr.mxu0 0.0
        %880 = vmatpush1.msra.mxu0 0.0
        %881 = vmatprep.subr.mxu0 0.0
        %882 = vmatpush1.msra.mxu0 0.0
        %883 = vmatprep.subr.mxu0 0.0
        %884 = vmatpush1.msra.mxu0 0.0
        %885 = vmatprep.subr.mxu0 0.0
        %886 = vmatpush1.msra.mxu0 0.0
        %887 = vmatprep.subr.mxu0 0.0
        %888 = vmatpush1.msra.mxu0 0.0
        %889 = vmatprep.subr.mxu0 0.0
        %890 = vmatpush1.msra.mxu0 0.0
        %891 = vmatprep.subr.mxu0 0.0
        %892 = vmatpush1.msra.mxu0 0.0
        %893 = vmatprep.subr.mxu0 0.0
        %894 = vmatpush1.msra.mxu0 0.0
        %895 = vmatprep.subr.mxu0 0.0
        %896 = vmatpush1.msra.mxu0 0.0
        %897 = vmatprep.subr.mxu0 0.0
        %898 = vmatpush1.msra.mxu0 0.0
        %899 = vmatprep.subr.mxu0 0.0
        %900 = vmatpush1.msra.mxu0 0.0
        %901 = vmatprep.subr.mxu0 0.0
        %902 = vmatpush1.msra.mxu0 0.0
        %903 = vmatprep.subr.mxu0 0.0
        %904 = vmatpush1.msra.mxu0 0.0
        %905 = vmatprep.subr.mxu0 0.0
        %906 = vmatpush1.msra.mxu0 0.0
        %907 = vmatprep.subr.mxu0 0.0
        %908 = vmatpush1.msra.mxu0 0.0
        %909 = vmatprep.mubr.f32.mxu0 0.0
        %910 = vmatmul.mubr.f32.gmra.mrb[0].mxu0 %v838
        %v911 = vpop.f32.mrb[0].mxu0
        %v912 = vadd.f32 %v832, %v911
        %v913 = vpop.f32.mrb[0].mxu0
        %v914 = vadd.f32 %v832, %v913
        %915 = vdwg.mxu0
        %v916 = vld [vmem:[%s8] sm:$0x3]
        %918 = vmatprep.subr.mxu0 0.0
        %919 = vmatpush1.msra.mxu0 %v646
        %920 = vmatprep.subr.mxu0 0.0
        %921 = vmatpush1.msra.mxu0 %v647
        %922 = vmatprep.subr.mxu0 0.0
        %923 = vmatpush1.msra.mxu0 %v648
        %924 = vmatprep.subr.mxu0 0.0
        %925 = vmatpush1.msra.mxu0 %v649
        %926 = vmatprep.subr.mxu0 0.0
        %927 = vmatpush1.msra.mxu0 %v650
        %928 = vmatprep.subr.mxu0 0.0
        %929 = vmatpush1.msra.mxu0 %v651
        %930 = vmatprep.subr.mxu0 0.0
        %931 = vmatpush1.msra.mxu0 %v652
        %932 = vmatprep.subr.mxu0 0.0
        %933 = vmatpush1.msra.mxu0 %v653
        %934 = vmatprep.subr.mxu0 0.0
        %935 = vmatpush1.msra.mxu0 %v654
        %936 = vmatprep.subr.mxu0 0.0
        %937 = vmatpush1.msra.mxu0 %v655
        %938 = vmatprep.subr.mxu0 0.0
        %939 = vmatpush1.msra.mxu0 %v656
        %940 = vmatprep.subr.mxu0 0.0
        %941 = vmatpush1.msra.mxu0 %v657
        %942 = vmatprep.subr.mxu0 0.0
        %943 = vmatpush1.msra.mxu0 %v658
        %944 = vmatprep.subr.mxu0 0.0
        %945 = vmatpush1.msra.mxu0 %v659
        %946 = vmatprep.subr.mxu0 0.0
        %947 = vmatpush1.msra.mxu0 %v660
        %948 = vmatprep.subr.mxu0 0.0
        %949 = vmatpush1.msra.mxu0 %v661
        %950 = vmatprep.subr.mxu0 0.0
        %951 = vmatpush1.msra.mxu0 %v662
        %952 = vmatprep.subr.mxu0 0.0
        %953 = vmatpush1.msra.mxu0 %v663
        %954 = vmatprep.subr.mxu0 0.0
        %955 = vmatpush1.msra.mxu0 %v664
        %956 = vmatprep.subr.mxu0 0.0
        %957 = vmatpush1.msra.mxu0 %v665
        %958 = vmatprep.subr.mxu0 0.0
        %959 = vmatpush1.msra.mxu0 %v666
        %960 = vmatprep.subr.mxu0 0.0
        %961 = vmatpush1.msra.mxu0 %v667
        %962 = vmatprep.subr.mxu0 0.0
        %963 = vmatpush1.msra.mxu0 %v668
        %964 = vmatprep.subr.mxu0 0.0
        %965 = vmatpush1.msra.mxu0 %v669
        %966 = vmatprep.subr.mxu0 0.0
        %967 = vmatpush1.msra.mxu0 %v670
        %968 = vmatprep.subr.mxu0 0.0
        %969 = vmatpush1.msra.mxu0 %v671
        %970 = vmatprep.subr.mxu0 0.0
        %971 = vmatpush1.msra.mxu0 %v672
        %972 = vmatprep.subr.mxu0 0.0
        %973 = vmatpush1.msra.mxu0 %v673
        %974 = vmatprep.subr.mxu0 0.0
        %975 = vmatpush1.msra.mxu0 %v674
        %976 = vmatprep.subr.mxu0 0.0
        %977 = vmatpush1.msra.mxu0 %v675
        %978 = vmatprep.subr.mxu0 0.0
        %979 = vmatpush1.msra.mxu0 %v676
        %980 = vmatprep.subr.mxu0 0.0
        %981 = vmatpush1.msra.mxu0 %v677
        %982 = vmatprep.mubr.f32.mxu0 %v835
        %983 = vmatmul.mubr.f32.gmra.mrb[0].mxu0 %v627
        %v984 = vpop.f32.mrb[0].mxu0
        %v985 = vadd.f32 0.0, %v984
        %v986 = vpop.f32.mrb[0].mxu0
        %987 = vdwg.mxu0
        %v988 = vld [vmem:[%s9] sm:$0x3]
        %990 = vset.pattern.permute.xlu0 0
        %991 = vperm.xlu0 %990, %v988
        %v992 = vpop.permute.xlu0 %991
        %v995 = vsel %vm836, %v916, 0
        %v998 = vsel %vm840, %v985, 0
        %1000 = vmatprep.subr.mxu0 0.0
        %1001 = vmatpush1.msra.mxu0 %v998
        %1002 = vmatprep.subr.mxu0 0.0
        %1003 = vmatpush1.msra.mxu0 0.0
        %1004 = vmatprep.subr.mxu0 0.0
        %1005 = vmatpush1.msra.mxu0 0.0
        %1006 = vmatprep.subr.mxu0 0.0
        %1007 = vmatpush1.msra.mxu0 0.0
        %1008 = vmatprep.subr.mxu0 0.0
        %1009 = vmatpush1.msra.mxu0 0.0
        %1010 = vmatprep.subr.mxu0 0.0
        %1011 = vmatpush1.msra.mxu0 0.0
        %1012 = vmatprep.subr.mxu0 0.0
        %1013 = vmatpush1.msra.mxu0 0.0
        %1014 = vmatprep.subr.mxu0 0.0
        %1015 = vmatpush1.msra.mxu0 0.0
        %1016 = vmatprep.subr.mxu0 0.0
        %1017 = vmatpush1.msra.mxu0 0.0
        %1018 = vmatprep.subr.mxu0 0.0
        %1019 = vmatpush1.msra.mxu0 0.0
        %1020 = vmatprep.subr.mxu0 0.0
        %1021 = vmatpush1.msra.mxu0 0.0
        %1022 = vmatprep.subr.mxu0 0.0
        %1023 = vmatpush1.msra.mxu0 0.0
        %1024 = vmatprep.subr.mxu0 0.0
        %1025 = vmatpush1.msra.mxu0 0.0
        %1026 = vmatprep.subr.mxu0 0.0
        %1027 = vmatpush1.msra.mxu0 0.0
        %1028 = vmatprep.subr.mxu0 0.0
        %1029 = vmatpush1.msra.mxu0 0.0
        %1030 = vmatprep.subr.mxu0 0.0
        %1031 = vmatpush1.msra.mxu0 0.0
        %1032 = vmatprep.subr.mxu0 0.0
        %1033 = vmatpush1.msra.mxu0 0.0
        %1034 = vmatprep.subr.mxu0 0.0
        %1035 = vmatpush1.msra.mxu0 0.0
        %1036 = vmatprep.subr.mxu0 0.0
        %1037 = vmatpush1.msra.mxu0 0.0
        %1038 = vmatprep.subr.mxu0 0.0
        %1039 = vmatpush1.msra.mxu0 0.0
        %1040 = vmatprep.subr.mxu0 0.0
        %1041 = vmatpush1.msra.mxu0 0.0
        %1042 = vmatprep.subr.mxu0 0.0
        %1043 = vmatpush1.msra.mxu0 0.0
        %1044 = vmatprep.subr.mxu0 0.0
        %1045 = vmatpush1.msra.mxu0 0.0
        %1046 = vmatprep.subr.mxu0 0.0
        %1047 = vmatpush1.msra.mxu0 0.0
        %1048 = vmatprep.subr.mxu0 0.0
        %1049 = vmatpush1.msra.mxu0 0.0
        %1050 = vmatprep.subr.mxu0 0.0
        %1051 = vmatpush1.msra.mxu0 0.0
        %1052 = vmatprep.subr.mxu0 0.0
        %1053 = vmatpush1.msra.mxu0 0.0
        %1054 = vmatprep.subr.mxu0 0.0
        %1055 = vmatpush1.msra.mxu0 0.0
        %1056 = vmatprep.subr.mxu0 0.0
        %1057 = vmatpush1.msra.mxu0 0.0
        %1058 = vmatprep.subr.mxu0 0.0
        %1059 = vmatpush1.msra.mxu0 0.0
        %1060 = vmatprep.subr.mxu0 0.0
        %1061 = vmatpush1.msra.mxu0 0.0
        %1062 = vmatprep.subr.mxu0 0.0
        %1063 = vmatpush1.msra.mxu0 0.0
        %1064 = vmatprep.mubr.f32.mxu0 0.0
        %1065 = vmatmul.mubr.f32.gmra.mrb[0].mxu0 %v995
        %v1066 = vpop.f32.mrb[0].mxu0
        %v1067 = vadd.f32 %v992, %v1066
        %v1068 = vpop.f32.mrb[0].mxu0
        %1069 = vdwg.mxu0
        %v1072 = vcombine.low %v749, %v751
        %1074 = vst [vmem:[#allocation6] sm:$0x33] %v1072
        %v1077 = vcombine.low %v912, %v914
        %v1078 = vrot.slane %v1077, 6
        %1080 = vst [vmem:[#allocation6] sm:$0xcc] %v1078
        %vm1081 = vcmask 517120
        %1082 = vst.msk [vmem:[#allocation7] sm:$0x3] %vm1081, %v824
        %1083 = vst.msk [vmem:[#allocation7 + $0x2] sm:$0x3] %vm1081, %v1067
        %v1084 = vld [vmem:[#allocation6] sm:$0xff]
        %v1085 = vld [vmem:[#allocation7] sm:$0xf]
        %v1086 = vld [vmem:[%s10] sm:$0xf]
        %1087 = vst [vmem:[#allocation2] sm:$0xff] 0.0
        %vm1088 = vcmask 273408
        %1089 = vst.msk [vmem:[#allocation2 + $0x8] sm:$0xf] %vm1088, 0.0
        %1091 = vrot.lane.b32.xlu0 %v1084, 17
        %v1092 = vpop.permute.xlu0 %1091
        %v1093 = vrot.slane %v1092, 4
        %vm1094 = vcmask 138240
        %v1095 = vsel %vm1094, %v1093, %v1092
        %vm1098 = vcmask 1043592
        %vm1099 = vcmask 1047556
        %vm1100 = vmor %vm1099, %vm1098
        %1101 = vst.msk [vmem:[#allocation2] sm:$0xff] %vm1100, %v1095
        %vm1102 = vcmask 134144
        %1103 = vst.msk [vmem:[#allocation2 + $0x8] sm:$0xf] %vm1102, %v1093
        %v1104 = vlaneseq
        %v1105 = vand.u32 %v1104, 127
        %v1106 = vadd.s32 %v1105, 128
        %vm1107 = vcmp.lt.s32.totalorder %v1105, 0
        %v1108 = vsub.s32 0, %v1105
        %v1109 = vsel %vm1107, %v1108, %v1105
        %v1110 = vshrl.u32 %v1109, 4
        %v1111 = vand.u32 %v1109, 15
        %v1112 = vsub.s32 0, %v1111
        %v1113 = vsel %vm1107, %v1112, %v1111
        %vm1114 = vcmp.lt.s32.totalorder %v1106, 0
        %v1115 = vsub.s32 0, %v1106
        %v1116 = vsel %vm1114, %v1115, %v1106
        %v1117 = vshrl.u32 %v1116, 4
        %v1118 = vand.u32 %v1116, 15
        %v1119 = vsub.s32 0, %v1118
        %v1120 = vsel %vm1114, %v1119, %v1118
        %vm1121 = vcmp.ne.s32.totalorder %v1113, 0
        %vm1122 = vcmp.ne.s32.totalorder %v1120, 0
        %vm1123 = vcmp.lt.s32.totalorder %v1113, 0
        %vm1124 = vcmp.lt.s32.totalorder %v1120, 0
        %vm1125 = vmand %vm1123, %vm1121
        %vm1126 = vmand %vm1124, %vm1122
        %v1127 = vadd.s32 %v1113, 16
        %v1128 = vadd.s32 %v1120, 16
        %v1129 = vsel %vm1125, %v1127, %v1113
        %v1130 = vsel %vm1126, %v1128, %v1120
        %v1131 = vld [vmem:[#allocation2] sm:$0xff]
        %vm1132 = vcmp.ge.s32.totalorder %v1129, 1
        %vm1133 = vcmp.ge.s32.totalorder %v1130, 1
        %v1135 = vcombine.high %v1131, %v1131
        %v1137 = vsel %vm1132, %v1131, 0.0
        %v1138 = vsel %vm1133, %v1135, 0.0
        %1139 = vst [vmem:[#allocation4] sm:$0xf] %v1137
        %1140 = vst [vmem:[#allocation4 + $0x8] sm:$0xf] %v1138
        %v1141 = vld [vmem:[#allocation2] sm:$0xff]
        %v1142 = vld [vmem:[#allocation2 + $0x8] sm:$0xf]
        %v1145 = vcombine.low %v1141, %v1141
        %v1146 = vcombine.low %v1142, %v1142
        %1147 = vrot.lane.b32.xlu0 %v1145, 127
        %v1148 = vpop.permute.xlu0 %1147
        %1149 = vrot.lane.b32.xlu0 %v1141, 127
        %v1150 = vpop.permute.xlu0 %1149
        %1151 = vrot.lane.b32.xlu0 %v1146, 127
        %v1152 = vpop.permute.xlu0 %1151
        %vm1153 = vcmask 1039360
        %v1154 = vsel %vm1153, %v1148, %v1150
        %v1155 = vsel %vm1153, %v1150, %v1152
        %1158 = vst [vmem:[#allocation4] sm:$0xf0] %v1154
        %1159 = vst [vmem:[#allocation4 + $0x8] sm:$0xf0] %v1155
        %v1160 = vld [vmem:[#allocation2] sm:$0xff]
        %v1161 = vld [vmem:[#allocation2 + $0x8] sm:$0xf]
        %vm1162 = vcmp.le.s32.totalorder %v1129, 14
        %vm1163 = vcmp.le.s32.totalorder %v1130, 14
        %v1166 = vcombine.high %v1160, %v1160
        %1167 = vrot.lane.b32.xlu0 %v1160, 126
        %v1168 = vpop.permute.xlu0 %1167
        %1169 = vrot.lane.b32.xlu0 %v1166, 126
        %v1170 = vpop.permute.xlu0 %1169
        %1171 = vrot.lane.b32.xlu0 %v1161, 126
        %v1172 = vpop.permute.xlu0 %1171
        %vm1173 = vcmask 1031168
        %v1174 = vsel %vm1173, %v1168, %v1170
        %v1175 = vsel %vm1173, %v1170, %v1172
        %v1178 = vsel %vm1162, %v1174, 0.0
        %v1179 = vsel %vm1163, %v1175, 0.0
        %1180 = vst [vmem:[#allocation4 + $0x10] sm:$0xf] %v1178
        %1181 = vst [vmem:[#allocation4 + $0x18] sm:$0xf] %v1179
        %v1182 = vld [vmem:[#allocation2] sm:$0xff]
        %v1183 = vld [vmem:[#allocation2 + $0x8] sm:$0xf]
        %v1186 = vcombine.high %v1182, %v1182
        %1187 = vrot.lane.b32.xlu0 %v1182, 112
        %v1188 = vpop.permute.xlu0 %1187
        %1189 = vrot.lane.b32.xlu0 %v1186, 112
        %v1190 = vpop.permute.xlu0 %1189
        %1191 = vrot.lane.b32.xlu0 %v1183, 112
        %v1192 = vpop.permute.xlu0 %1191
        %vm1193 = vcmask 916480
        %v1194 = vsel %vm1193, %v1188, %v1190
        %v1195 = vsel %vm1193, %v1190, %v1192
        %v1198 = vsel %vm1132, %v1194, 0.0
        %v1199 = vsel %vm1133, %v1195, 0.0
        %v1202 = vrot.slane %v1198, 4
        %v1203 = vrot.slane %v1199, 4
        %1206 = vst [vmem:[#allocation4 + $0x10] sm:$0xf0] %v1202
        %1207 = vst [vmem:[#allocation4 + $0x18] sm:$0xf0] %v1203
        %v1208 = vld [vmem:[#allocation2] sm:$0xff]
        %v1209 = vld [vmem:[#allocation2 + $0x8] sm:$0xf]
        %v1212 = vcombine.high %v1208, %v1208
        %1213 = vrot.lane.b32.xlu0 %v1208, 111
        %v1214 = vpop.permute.xlu0 %1213
        %1215 = vrot.lane.b32.xlu0 %v1212, 111
        %v1216 = vpop.permute.xlu0 %1215
        %1217 = vrot.lane.b32.xlu0 %v1209, 111
        %v1218 = vpop.permute.xlu0 %1217
        %vm1219 = vcmask 908288
        %v1220 = vsel %vm1219, %v1214, %v1216
        %v1221 = vsel %vm1219, %v1216, %v1218
        %1224 = vst [vmem:[#allocation4 + $0x20] sm:$0xf] %v1220
        %1225 = vst [vmem:[#allocation4 + $0x28] sm:$0xf] %v1221
        %v1226 = vld [vmem:[#allocation2] sm:$0xff]
        %v1227 = vld [vmem:[#allocation2 + $0x8] sm:$0xf]
        %v1230 = vcombine.high %v1226, %v1226
        %1231 = vrot.lane.b32.xlu0 %v1226, 110
        %v1232 = vpop.permute.xlu0 %1231
        %1233 = vrot.lane.b32.xlu0 %v1230, 110
        %v1234 = vpop.permute.xlu0 %1233
        %1235 = vrot.lane.b32.xlu0 %v1227, 110
        %v1236 = vpop.permute.xlu0 %1235
        %vm1237 = vcmask 900096
        %v1238 = vsel %vm1237, %v1232, %v1234
        %v1239 = vsel %vm1237, %v1234, %v1236
        %v1242 = vsel %vm1162, %v1238, 0.0
        %v1243 = vsel %vm1163, %v1239, 0.0
        %v1246 = vrot.slane %v1242, 4
        %v1247 = vrot.slane %v1243, 4
        %1250 = vst [vmem:[#allocation4 + $0x20] sm:$0xf0] %v1246
        %1251 = vst [vmem:[#allocation4 + $0x28] sm:$0xf0] %v1247
        %v1252 = vld [vmem:[#allocation2] sm:$0xff]
        %v1253 = vld [vmem:[#allocation2 + $0x8] sm:$0xf]
        %v1256 = vcombine.high %v1252, %v1252
        %1257 = vrot.lane.b32.xlu0 %v1252, 96
        %v1258 = vpop.permute.xlu0 %1257
        %1259 = vrot.lane.b32.xlu0 %v1256, 96
        %v1260 = vpop.permute.xlu0 %1259
        %1261 = vrot.lane.b32.xlu0 %v1253, 96
        %v1262 = vpop.permute.xlu0 %1261
        %vm1263 = vcmask 785408
        %v1264 = vsel %vm1263, %v1258, %v1260
        %v1265 = vsel %vm1263, %v1260, %v1262
        %v1268 = vsel %vm1132, %v1264, 0.0
        %v1269 = vsel %vm1133, %v1265, 0.0
        %1270 = vst [vmem:[#allocation4 + $0x30] sm:$0xf] %v1268
        %1271 = vst [vmem:[#allocation4 + $0x38] sm:$0xf] %v1269
        %v1272 = vld [vmem:[#allocation2] sm:$0xff]
        %v1273 = vld [vmem:[#allocation2 + $0x8] sm:$0xf]
        %v1276 = vcombine.low %v1272, %v1272
        %v1277 = vcombine.low %v1273, %v1273
        %1278 = vrot.lane.b32.xlu0 %v1276, 95
        %v1279 = vpop.permute.xlu0 %1278
        %1280 = vrot.lane.b32.xlu0 %v1272, 95
        %v1281 = vpop.permute.xlu0 %1280
        %1282 = vrot.lane.b32.xlu0 %v1277, 95
        %v1283 = vpop.permute.xlu0 %1282
        %vm1284 = vcmask 777216
        %v1285 = vsel %vm1284, %v1279, %v1281
        %v1286 = vsel %vm1284, %v1281, %v1283
        %1289 = vst [vmem:[#allocation4 + $0x30] sm:$0xf0] %v1285
        %1290 = vst [vmem:[#allocation4 + $0x38] sm:$0xf0] %v1286
        %v1291 = vld [vmem:[#allocation2] sm:$0xff]
        %v1292 = vld [vmem:[#allocation2 + $0x8] sm:$0xf]
        %v1295 = vcombine.high %v1291, %v1291
        %1296 = vrot.lane.b32.xlu0 %v1291, 94
        %v1297 = vpop.permute.xlu0 %1296
        %1298 = vrot.lane.b32.xlu0 %v1295, 94
        %v1299 = vpop.permute.xlu0 %1298
        %1300 = vrot.lane.b32.xlu0 %v1292, 94
        %v1301 = vpop.permute.xlu0 %1300
        %vm1302 = vcmask 769024
        %v1303 = vsel %vm1302, %v1297, %v1299
        %v1304 = vsel %vm1302, %v1299, %v1301
        %v1307 = vsel %vm1162, %v1303, 0.0
        %v1308 = vsel %vm1163, %v1304, 0.0
        %1309 = vst [vmem:[#allocation4 + $0x40] sm:$0xf] %v1307
        %1310 = vst [vmem:[#allocation4 + $0x48] sm:$0xf] %v1308
        %v1311 = vld [vmem:[#allocation4] sm:$0xff]
        %v1312 = vld [vmem:[#allocation4 + $0x8] sm:$0xff]
        %v1313 = vld [vmem:[#allocation4 + $0x10] sm:$0xff]
        %v1314 = vld [vmem:[#allocation4 + $0x18] sm:$0xff]
        %v1315 = vld [vmem:[#allocation4 + $0x20] sm:$0xff]
        %v1316 = vld [vmem:[#allocation4 + $0x28] sm:$0xff]
        %v1317 = vld [vmem:[#allocation4 + $0x30] sm:$0xff]
        %v1318 = vld [vmem:[#allocation4 + $0x38] sm:$0xff]
        %v1319 = vld [vmem:[#allocation4 + $0x40] sm:$0xf]
        %v1320 = vld [vmem:[#allocation4 + $0x48] sm:$0xf]
        %v1321 = vld [vmem:[%s11] sm:$0xff]
        %vm1322 = vcmask 666624
        %1323 = vst.msk [vmem:[#allocation3] sm:$0xf] %vm1322, 0.0
        %1325 = vrot.lane.b32.xlu0 %v1085, 9
        %v1326 = vpop.permute.xlu0 %1325
        %vm1328 = vcmask 592968
        %1329 = vst.msk [vmem:[#allocation3] sm:$0xf] %vm1328, %v1326
        %vm1330 = vcmp.lt.s32.totalorder %v1105, 0
        %v1331 = vsub.s32 0, %v1105
        %v1332 = vsel %vm1330, %v1331, %v1105
        %v1333 = vshrl.u32 %v1332, 3
        %v1334 = vand.u32 %v1332, 7
        %v1335 = vsub.s32 0, %v1334
        %v1336 = vsel %vm1330, %v1335, %v1334
        %vm1337 = vcmp.ne.s32.totalorder %v1336, 0
        %vm1338 = vcmp.lt.s32.totalorder %v1336, 0
        %vm1339 = vmand %vm1338, %vm1337
        %v1340 = vadd.s32 %v1336, 8
        %v1341 = vsel %vm1339, %v1340, %v1336
        %v1342 = vld [vmem:[#allocation3] sm:$0xf]
        %vm1343 = vcmp.ge.s32.totalorder %v1341, 1
        %v1344 = vsel %vm1343, %v1342, 0.0
        %vm1345 = vcmask 519168
        %1346 = vst.msk [vmem:[#allocation5] sm:$0xf] %vm1345, %v1344
        %v1347 = vld [vmem:[#allocation3] sm:$0xf]
        %1349 = vrot.lane.b32.xlu0 %v1347, 127
        %v1350 = vpop.permute.xlu0 %1349
        %1352 = vst.msk [vmem:[#allocation5 + $0x4] sm:$0xf] %vm1345, %v1350
        %v1353 = vld [vmem:[#allocation3] sm:$0xf]
        %vm1354 = vcmp.le.s32.totalorder %v1341, 6
        %1356 = vrot.lane.b32.xlu0 %v1353, 126
        %v1357 = vpop.permute.xlu0 %1356
        %v1359 = vsel %vm1354, %v1357, 0.0
        %1360 = vst.msk [vmem:[#allocation5 + $0x8] sm:$0xf] %vm1345, %v1359
        %v1361 = vld [vmem:[#allocation3] sm:$0xf]
        %1363 = vrot.lane.b32.xlu0 %v1361, 120
        %v1364 = vpop.permute.xlu0 %1363
        %v1366 = vsel %vm1343, %v1364, 0.0
        %1367 = vst.msk [vmem:[#allocation5 + $0xc] sm:$0xf] %vm1345, %v1366
        %v1368 = vld [vmem:[#allocation3] sm:$0xf]
        %1370 = vrot.lane.b32.xlu0 %v1368, 119
        %v1371 = vpop.permute.xlu0 %1370
        %1373 = vst.msk [vmem:[#allocation5 + $0x10] sm:$0xf] %vm1345, %v1371
        %v1374 = vld [vmem:[#allocation3] sm:$0xf]
        %1376 = vrot.lane.b32.xlu0 %v1374, 118
        %v1377 = vpop.permute.xlu0 %1376
        %v1379 = vsel %vm1354, %v1377, 0.0
        %1380 = vst.msk [vmem:[#allocation5 + $0x14] sm:$0xf] %vm1345, %v1379
        %v1381 = vld [vmem:[#allocation3] sm:$0xf]
        %1383 = vrot.lane.b32.xlu0 %v1381, 112
        %v1384 = vpop.permute.xlu0 %1383
        %v1386 = vsel %vm1343, %v1384, 0.0
        %1387 = vst.msk [vmem:[#allocation5 + $0x18] sm:$0xf] %vm1345, %v1386
        %v1388 = vld [vmem:[#allocation3] sm:$0xf]
        %1390 = vrot.lane.b32.xlu0 %v1388, 111
        %v1391 = vpop.permute.xlu0 %1390
        %1393 = vst.msk [vmem:[#allocation5 + $0x1c] sm:$0xf] %vm1345, %v1391
        %v1394 = vld [vmem:[#allocation3] sm:$0xf]
        %1396 = vrot.lane.b32.xlu0 %v1394, 110
        %v1397 = vpop.permute.xlu0 %1396
        %v1399 = vsel %vm1354, %v1397, 0.0
        %1400 = vst.msk [vmem:[#allocation5 + $0x20] sm:$0xf] %vm1345, %v1399
        %v1401 = vld [vmem:[#allocation5] sm:$0xff]
        %v1402 = vld [vmem:[#allocation5 + $0x8] sm:$0xff]
        %v1403 = vld [vmem:[#allocation5 + $0x10] sm:$0xff]
        %v1404 = vld [vmem:[#allocation5 + $0x18] sm:$0xff]
        %v1405 = vld [vmem:[#allocation5 + $0x20] sm:$0xf]
        %vm1406 = vcmask 293888
        %v1408 = vsel %vm1406, %v1321, 0
        %v1411 = vsel %vm840, %v1405, 0
        %1413 = vmatprep.subr.mxu0 0.0
        %1414 = vmatpush1.msra.mxu0 %v1401
        %1415 = vmatprep.subr.mxu0 0.0
        %1416 = vmatpush1.msra.mxu0 %v1402
        %1417 = vmatprep.subr.mxu0 0.0
        %1418 = vmatpush1.msra.mxu0 %v1403
        %1419 = vmatprep.subr.mxu0 0.0
        %1420 = vmatpush1.msra.mxu0 %v1404
        %1421 = vmatprep.subr.mxu0 0.0
        %1422 = vmatpush1.msra.mxu0 %v1411
        %1423 = vmatprep.subr.mxu0 0.0
        %1424 = vmatpush1.msra.mxu0 0.0
        %1425 = vmatprep.subr.mxu0 0.0
        %1426 = vmatpush1.msra.mxu0 0.0
        %1427 = vmatprep.subr.mxu0 0.0
        %1428 = vmatpush1.msra.mxu0 0.0
        %1429 = vmatprep.subr.mxu0 0.0
        %1430 = vmatpush1.msra.mxu0 0.0
        %1431 = vmatprep.subr.mxu0 0.0
        %1432 = vmatpush1.msra.mxu0 0.0
        %1433 = vmatprep.subr.mxu0 0.0
        %1434 = vmatpush1.msra.mxu0 0.0
        %1435 = vmatprep.subr.mxu0 0.0
        %1436 = vmatpush1.msra.mxu0 0.0
        %1437 = vmatprep.subr.mxu0 0.0
        %1438 = vmatpush1.msra.mxu0 0.0
        %1439 = vmatprep.subr.mxu0 0.0
        %1440 = vmatpush1.msra.mxu0 0.0
        %1441 = vmatprep.subr.mxu0 0.0
        %1442 = vmatpush1.msra.mxu0 0.0
        %1443 = vmatprep.subr.mxu0 0.0
        %1444 = vmatpush1.msra.mxu0 0.0
        %1445 = vmatprep.subr.mxu0 0.0
        %1446 = vmatpush1.msra.mxu0 0.0
        %1447 = vmatprep.subr.mxu0 0.0
        %1448 = vmatpush1.msra.mxu0 0.0
        %1449 = vmatprep.subr.mxu0 0.0
        %1450 = vmatpush1.msra.mxu0 0.0
        %1451 = vmatprep.subr.mxu0 0.0
        %1452 = vmatpush1.msra.mxu0 0.0
        %1453 = vmatprep.subr.mxu0 0.0
        %1454 = vmatpush1.msra.mxu0 0.0
        %1455 = vmatprep.subr.mxu0 0.0
        %1456 = vmatpush1.msra.mxu0 0.0
        %1457 = vmatprep.subr.mxu0 0.0
        %1458 = vmatpush1.msra.mxu0 0.0
        %1459 = vmatprep.subr.mxu0 0.0
        %1460 = vmatpush1.msra.mxu0 0.0
        %1461 = vmatprep.subr.mxu0 0.0
        %1462 = vmatpush1.msra.mxu0 0.0
        %1463 = vmatprep.subr.mxu0 0.0
        %1464 = vmatpush1.msra.mxu0 0.0
        %1465 = vmatprep.subr.mxu0 0.0
        %1466 = vmatpush1.msra.mxu0 0.0
        %1467 = vmatprep.subr.mxu0 0.0
        %1468 = vmatpush1.msra.mxu0 0.0
        %1469 = vmatprep.subr.mxu0 0.0
        %1470 = vmatpush1.msra.mxu0 0.0
        %1471 = vmatprep.subr.mxu0 0.0
        %1472 = vmatpush1.msra.mxu0 0.0
        %1473 = vmatprep.subr.mxu0 0.0
        %1474 = vmatpush1.msra.mxu0 0.0
        %1475 = vmatprep.subr.mxu0 0.0
        %1476 = vmatpush1.msra.mxu0 0.0
        %1477 = vmatprep.mubr.f32.mxu0 0.0
        %1478 = vmatmul.mubr.f32.gmra.mrb[0].mxu0 %v1408
        %v1479 = vpop.f32.mrb[0].mxu0
        %v1480 = vadd.f32 0.0, %v1479
        %v1481 = vpop.f32.mrb[0].mxu0
        %1482 = vdwg.mxu0
        %v1483 = vcombine.high %v1084, %v1084
        %1485 = vmatprep.subr.mxu0 0.0
        %1486 = vmatpush1.msra.mxu0 %v646
        %1487 = vmatprep.subr.mxu0 0.0
        %1488 = vmatpush1.msra.mxu0 %v647
        %1489 = vmatprep.subr.mxu0 0.0
        %1490 = vmatpush1.msra.mxu0 %v648
        %1491 = vmatprep.subr.mxu0 0.0
        %1492 = vmatpush1.msra.mxu0 %v649
        %1493 = vmatprep.subr.mxu0 0.0
        %1494 = vmatpush1.msra.mxu0 %v650
        %1495 = vmatprep.subr.mxu0 0.0
        %1496 = vmatpush1.msra.mxu0 %v651
        %1497 = vmatprep.subr.mxu0 0.0
        %1498 = vmatpush1.msra.mxu0 %v652
        %1499 = vmatprep.subr.mxu0 0.0
        %1500 = vmatpush1.msra.mxu0 %v653
        %1501 = vmatprep.subr.mxu0 0.0
        %1502 = vmatpush1.msra.mxu0 %v654
        %1503 = vmatprep.subr.mxu0 0.0
        %1504 = vmatpush1.msra.mxu0 %v655
        %1505 = vmatprep.subr.mxu0 0.0
        %1506 = vmatpush1.msra.mxu0 %v656
        %1507 = vmatprep.subr.mxu0 0.0
        %1508 = vmatpush1.msra.mxu0 %v657
        %1509 = vmatprep.subr.mxu0 0.0
        %1510 = vmatpush1.msra.mxu0 %v658
        %1511 = vmatprep.subr.mxu0 0.0
        %1512 = vmatpush1.msra.mxu0 %v659
        %1513 = vmatprep.subr.mxu0 0.0
        %1514 = vmatpush1.msra.mxu0 %v660
        %1515 = vmatprep.subr.mxu0 0.0
        %1516 = vmatpush1.msra.mxu0 %v661
        %1517 = vmatprep.subr.mxu0 0.0
        %1518 = vmatpush1.msra.mxu0 %v662
        %1519 = vmatprep.subr.mxu0 0.0
        %1520 = vmatpush1.msra.mxu0 %v663
        %1521 = vmatprep.subr.mxu0 0.0
        %1522 = vmatpush1.msra.mxu0 %v664
        %1523 = vmatprep.subr.mxu0 0.0
        %1524 = vmatpush1.msra.mxu0 %v665
        %1525 = vmatprep.subr.mxu0 0.0
        %1526 = vmatpush1.msra.mxu0 %v666
        %1527 = vmatprep.subr.mxu0 0.0
        %1528 = vmatpush1.msra.mxu0 %v667
        %1529 = vmatprep.subr.mxu0 0.0
        %1530 = vmatpush1.msra.mxu0 %v668
        %1531 = vmatprep.subr.mxu0 0.0
        %1532 = vmatpush1.msra.mxu0 %v669
        %1533 = vmatprep.subr.mxu0 0.0
        %1534 = vmatpush1.msra.mxu0 %v670
        %1535 = vmatprep.subr.mxu0 0.0
        %1536 = vmatpush1.msra.mxu0 %v671
        %1537 = vmatprep.subr.mxu0 0.0
        %1538 = vmatpush1.msra.mxu0 %v672
        %1539 = vmatprep.subr.mxu0 0.0
        %1540 = vmatpush1.msra.mxu0 %v673
        %1541 = vmatprep.subr.mxu0 0.0
        %1542 = vmatpush1.msra.mxu0 %v674
        %1543 = vmatprep.subr.mxu0 0.0
        %1544 = vmatpush1.msra.mxu0 %v675
        %1545 = vmatprep.subr.mxu0 0.0
        %1546 = vmatpush1.msra.mxu0 %v676
        %1547 = vmatprep.subr.mxu0 0.0
        %1548 = vmatpush1.msra.mxu0 %v677
        %1549 = vmatprep.mubr.f32.mxu0 %v1483
        %1550 = vmatmul.mubr.f32.gmra.mrb[0].mxu0 %v1084
        %v1551 = vpop.f32.mrb[0].mxu0
        %v1552 = vadd.f32 0.0, %v1551
        %v1553 = vpop.f32.mrb[0].mxu0
        %1554 = vdwg.mxu0
        %v1555 = vld [vmem:[%s12] sm:$0xf]
        %1556 = vst.msk [vmem:[#allocation3] sm:$0xf] %vm1322, 0.0
        %1558 = vrot.lane.b32.xlu0 %v1552, 9
        %v1559 = vpop.permute.xlu0 %1558
        %1561 = vst.msk [vmem:[#allocation3] sm:$0xf] %vm1328, %v1559
        %v1562 = vld [vmem:[#allocation3] sm:$0xf]
        %v1563 = vsel %vm1343, %v1562, 0.0
        %1564 = vst.msk [vmem:[#allocation5] sm:$0xf] %vm1345, %v1563
        %v1565 = vld [vmem:[#allocation3] sm:$0xf]
        %1567 = vrot.lane.b32.xlu0 %v1565, 127
        %v1568 = vpop.permute.xlu0 %1567
        %1570 = vst.msk [vmem:[#allocation5 + $0x4] sm:$0xf] %vm1345, %v1568
        %v1571 = vld [vmem:[#allocation3] sm:$0xf]
        %1573 = vrot.lane.b32.xlu0 %v1571, 126
        %v1574 = vpop.permute.xlu0 %1573
        %v1576 = vsel %vm1354, %v1574, 0.0
        %1577 = vst.msk [vmem:[#allocation5 + $0x8] sm:$0xf] %vm1345, %v1576
        %v1578 = vld [vmem:[#allocation3] sm:$0xf]
        %1580 = vrot.lane.b32.xlu0 %v1578, 120
        %v1581 = vpop.permute.xlu0 %1580
        %v1583 = vsel %vm1343, %v1581, 0.0
        %1584 = vst.msk [vmem:[#allocation5 + $0xc] sm:$0xf] %vm1345, %v1583
        %v1585 = vld [vmem:[#allocation3] sm:$0xf]
        %1587 = vrot.lane.b32.xlu0 %v1585, 119
        %v1588 = vpop.permute.xlu0 %1587
        %1590 = vst.msk [vmem:[#allocation5 + $0x10] sm:$0xf] %vm1345, %v1588
        %v1591 = vld [vmem:[#allocation3] sm:$0xf]
        %1593 = vrot.lane.b32.xlu0 %v1591, 118
        %v1594 = vpop.permute.xlu0 %1593
        %v1596 = vsel %vm1354, %v1594, 0.0
        %1597 = vst.msk [vmem:[#allocation5 + $0x14] sm:$0xf] %vm1345, %v1596
        %v1598 = vld [vmem:[#allocation3] sm:$0xf]
        %1600 = vrot.lane.b32.xlu0 %v1598, 112
        %v1601 = vpop.permute.xlu0 %1600
        %v1603 = vsel %vm1343, %v1601, 0.0
        %1604 = vst.msk [vmem:[#allocation5 + $0x18] sm:$0xf] %vm1345, %v1603
        %v1605 = vld [vmem:[#allocation3] sm:$0xf]
        %1607 = vrot.lane.b32.xlu0 %v1605, 111
        %v1608 = vpop.permute.xlu0 %1607
        %1610 = vst.msk [vmem:[#allocation5 + $0x1c] sm:$0xf] %vm1345, %v1608
        %v1611 = vld [vmem:[#allocation3] sm:$0xf]
        %1613 = vrot.lane.b32.xlu0 %v1611, 110
        %v1614 = vpop.permute.xlu0 %1613
        %v1616 = vsel %vm1354, %v1614, 0.0
        %1617 = vst.msk [vmem:[#allocation5 + $0x20] sm:$0xf] %vm1345, %v1616
        %v1618 = vld [vmem:[#allocation5] sm:$0xff]
        %v1619 = vld [vmem:[#allocation5 + $0x8] sm:$0xff]
        %v1620 = vld [vmem:[#allocation5 + $0x10] sm:$0xff]
        %v1621 = vld [vmem:[#allocation5 + $0x18] sm:$0xff]
        %v1622 = vld [vmem:[#allocation5 + $0x20] sm:$0xf]
        %v1624 = vsel %vm1406, %v1555, 0
        %v1627 = vsel %vm840, %v1622, 0
        %1629 = vmatprep.subr.mxu0 0.0
        %1630 = vmatpush1.msra.mxu0 %v1618
        %1631 = vmatprep.subr.mxu0 0.0
        %1632 = vmatpush1.msra.mxu0 %v1619
        %1633 = vmatprep.subr.mxu0 0.0
        %1634 = vmatpush1.msra.mxu0 %v1620
        %1635 = vmatprep.subr.mxu0 0.0
        %1636 = vmatpush1.msra.mxu0 %v1621
        %1637 = vmatprep.subr.mxu0 0.0
        %1638 = vmatpush1.msra.mxu0 %v1627
        %1639 = vmatprep.subr.mxu0 0.0
        %1640 = vmatpush1.msra.mxu0 0.0
        %1641 = vmatprep.subr.mxu0 0.0
        %1642 = vmatpush1.msra.mxu0 0.0
        %1643 = vmatprep.subr.mxu0 0.0
        %1644 = vmatpush1.msra.mxu0 0.0
        %1645 = vmatprep.subr.mxu0 0.0
        %1646 = vmatpush1.msra.mxu0 0.0
        %1647 = vmatprep.subr.mxu0 0.0
        %1648 = vmatpush1.msra.mxu0 0.0
        %1649 = vmatprep.subr.mxu0 0.0
        %1650 = vmatpush1.msra.mxu0 0.0
        %1651 = vmatprep.subr.mxu0 0.0
        %1652 = vmatpush1.msra.mxu0 0.0
        %1653 = vmatprep.subr.mxu0 0.0
        %1654 = vmatpush1.msra.mxu0 0.0
        %1655 = vmatprep.subr.mxu0 0.0
        %1656 = vmatpush1.msra.mxu0 0.0
        %1657 = vmatprep.subr.mxu0 0.0
        %1658 = vmatpush1.msra.mxu0 0.0
        %1659 = vmatprep.subr.mxu0 0.0
        %1660 = vmatpush1.msra.mxu0 0.0
        %1661 = vmatprep.subr.mxu0 0.0
        %1662 = vmatpush1.msra.mxu0 0.0
        %1663 = vmatprep.subr.mxu0 0.0
        %1664 = vmatpush1.msra.mxu0 0.0
        %1665 = vmatprep.subr.mxu0 0.0
        %1666 = vmatpush1.msra.mxu0 0.0
        %1667 = vmatprep.subr.mxu0 0.0
        %1668 = vmatpush1.msra.mxu0 0.0
        %1669 = vmatprep.subr.mxu0 0.0
        %1670 = vmatpush1.msra.mxu0 0.0
        %1671 = vmatprep.subr.mxu0 0.0
        %1672 = vmatpush1.msra.mxu0 0.0
        %1673 = vmatprep.subr.mxu0 0.0
        %1674 = vmatpush1.msra.mxu0 0.0
        %1675 = vmatprep.subr.mxu0 0.0
        %1676 = vmatpush1.msra.mxu0 0.0
        %1677 = vmatprep.subr.mxu0 0.0
        %1678 = vmatpush1.msra.mxu0 0.0
        %1679 = vmatprep.subr.mxu0 0.0
        %1680 = vmatpush1.msra.mxu0 0.0
        %1681 = vmatprep.subr.mxu0 0.0
        %1682 = vmatpush1.msra.mxu0 0.0
        %1683 = vmatprep.subr.mxu0 0.0
        %1684 = vmatpush1.msra.mxu0 0.0
        %1685 = vmatprep.subr.mxu0 0.0
        %1686 = vmatpush1.msra.mxu0 0.0
        %1687 = vmatprep.subr.mxu0 0.0
        %1688 = vmatpush1.msra.mxu0 0.0
        %1689 = vmatprep.subr.mxu0 0.0
        %1690 = vmatpush1.msra.mxu0 0.0
        %1691 = vmatprep.subr.mxu0 0.0
        %1692 = vmatpush1.msra.mxu0 0.0
        %1693 = vmatprep.mubr.f32.mxu0 0.0
        %1694 = vmatmul.mubr.f32.gmra.mrb[0].mxu0 %v1624
        %v1695 = vpop.f32.mrb[0].mxu0
        %v1696 = vadd.f32 0.0, %v1695
        %v1697 = vpop.f32.mrb[0].mxu0
        %1698 = vdwg.mxu0
        %v1700 = vsel %vm678, %v1480, 0
        %1702 = vmatprep.subr.mxu0 %v631
        %1703 = vmatpush1.msra.mxu0 %v630
        %1704 = vmatprep.subr.mxu0 %v633
        %1705 = vmatpush1.msra.mxu0 %v632
        %1706 = vmatprep.subr.mxu0 %v635
        %1707 = vmatpush1.msra.mxu0 %v634
        %1708 = vmatprep.subr.mxu0 %v637
        %1709 = vmatpush1.msra.mxu0 %v636
        %1710 = vmatprep.subr.mxu0 %v639
        %1711 = vmatpush1.msra.mxu0 %v638
        %1712 = vmatprep.subr.mxu0 %v641
        %1713 = vmatpush1.msra.mxu0 %v640
        %1714 = vmatprep.subr.mxu0 %v643
        %1715 = vmatpush1.msra.mxu0 %v642
        %1716 = vmatprep.subr.mxu0 %v645
        %1717 = vmatpush1.msra.mxu0 %v644
        %1718 = vmatprep.subr.mxu0 0.0
        %1719 = vmatpush1.msra.mxu0 0.0
        %1720 = vmatprep.subr.mxu0 0.0
        %1721 = vmatpush1.msra.mxu0 0.0
        %1722 = vmatprep.subr.mxu0 0.0
        %1723 = vmatpush1.msra.mxu0 0.0
        %1724 = vmatprep.subr.mxu0 0.0
        %1725 = vmatpush1.msra.mxu0 0.0
        %1726 = vmatprep.subr.mxu0 0.0
        %1727 = vmatpush1.msra.mxu0 0.0
        %1728 = vmatprep.subr.mxu0 0.0
        %1729 = vmatpush1.msra.mxu0 0.0
        %1730 = vmatprep.subr.mxu0 0.0
        %1731 = vmatpush1.msra.mxu0 0.0
        %1732 = vmatprep.subr.mxu0 0.0
        %1733 = vmatpush1.msra.mxu0 0.0
        %1734 = vmatprep.subr.mxu0 0.0
        %1735 = vmatpush1.msra.mxu0 0.0
        %1736 = vmatprep.subr.mxu0 0.0
        %1737 = vmatpush1.msra.mxu0 0.0
        %1738 = vmatprep.subr.mxu0 0.0
        %1739 = vmatpush1.msra.mxu0 0.0
        %1740 = vmatprep.subr.mxu0 0.0
        %1741 = vmatpush1.msra.mxu0 0.0
        %1742 = vmatprep.subr.mxu0 0.0
        %1743 = vmatpush1.msra.mxu0 0.0
        %1744 = vmatprep.subr.mxu0 0.0
        %1745 = vmatpush1.msra.mxu0 0.0
        %1746 = vmatprep.subr.mxu0 0.0
        %1747 = vmatpush1.msra.mxu0 0.0
        %1748 = vmatprep.subr.mxu0 0.0
        %1749 = vmatpush1.msra.mxu0 0.0
        %1750 = vmatprep.subr.mxu0 0.0
        %1751 = vmatpush1.msra.mxu0 0.0
        %1752 = vmatprep.subr.mxu0 0.0
        %1753 = vmatpush1.msra.mxu0 0.0
        %1754 = vmatprep.subr.mxu0 0.0
        %1755 = vmatpush1.msra.mxu0 0.0
        %1756 = vmatprep.subr.mxu0 0.0
        %1757 = vmatpush1.msra.mxu0 0.0
        %1758 = vmatprep.subr.mxu0 0.0
        %1759 = vmatpush1.msra.mxu0 0.0
        %1760 = vmatprep.subr.mxu0 0.0
        %1761 = vmatpush1.msra.mxu0 0.0
        %1762 = vmatprep.subr.mxu0 0.0
        %1763 = vmatpush1.msra.mxu0 0.0
        %1764 = vmatprep.subr.mxu0 0.0
        %1765 = vmatpush1.msra.mxu0 0.0
        %1766 = vmatprep.mubr.f32.mxu0 0.0
        %1767 = vmatmul.mubr.f32.gmra.mrb[0].mxu0 %v1700
        %v1768 = vpop.f32.mrb[0].mxu0
        %v1769 = vadd.f32 0.0, %v1768
        %v1770 = vpop.f32.mrb[0].mxu0
        %v1771 = vadd.f32 0.0, %v1770
        %1772 = vdwg.mxu0
        %v1774 = vsel %vm1406, %v1086, 0
        %v1777 = vsel %vm840, %v1319, 0
        %v1780 = vsel %vm840, %v1320, 0
        %1782 = vmatprep.subr.mxu0 %v1312
        %1783 = vmatpush1.msra.mxu0 %v1311
        %1784 = vmatprep.subr.mxu0 %v1314
        %1785 = vmatpush1.msra.mxu0 %v1313
        %1786 = vmatprep.subr.mxu0 %v1316
        %1787 = vmatpush1.msra.mxu0 %v1315
        %1788 = vmatprep.subr.mxu0 %v1318
        %1789 = vmatpush1.msra.mxu0 %v1317
        %1790 = vmatprep.subr.mxu0 %v1780
        %1791 = vmatpush1.msra.mxu0 %v1777
        %1792 = vmatprep.subr.mxu0 0.0
        %1793 = vmatpush1.msra.mxu0 0.0
        %1794 = vmatprep.subr.mxu0 0.0
        %1795 = vmatpush1.msra.mxu0 0.0
        %1796 = vmatprep.subr.mxu0 0.0
        %1797 = vmatpush1.msra.mxu0 0.0
        %1798 = vmatprep.subr.mxu0 0.0
        %1799 = vmatpush1.msra.mxu0 0.0
        %1800 = vmatprep.subr.mxu0 0.0
        %1801 = vmatpush1.msra.mxu0 0.0
        %1802 = vmatprep.subr.mxu0 0.0
        %1803 = vmatpush1.msra.mxu0 0.0
        %1804 = vmatprep.subr.mxu0 0.0
        %1805 = vmatpush1.msra.mxu0 0.0
        %1806 = vmatprep.subr.mxu0 0.0
        %1807 = vmatpush1.msra.mxu0 0.0
        %1808 = vmatprep.subr.mxu0 0.0
        %1809 = vmatpush1.msra.mxu0 0.0
        %1810 = vmatprep.subr.mxu0 0.0
        %1811 = vmatpush1.msra.mxu0 0.0
        %1812 = vmatprep.subr.mxu0 0.0
        %1813 = vmatpush1.msra.mxu0 0.0
        %1814 = vmatprep.subr.mxu0 0.0
        %1815 = vmatpush1.msra.mxu0 0.0
        %1816 = vmatprep.subr.mxu0 0.0
        %1817 = vmatpush1.msra.mxu0 0.0
        %1818 = vmatprep.subr.mxu0 0.0
        %1819 = vmatpush1.msra.mxu0 0.0
        %1820 = vmatprep.subr.mxu0 0.0
        %1821 = vmatpush1.msra.mxu0 0.0
        %1822 = vmatprep.subr.mxu0 0.0
        %1823 = vmatpush1.msra.mxu0 0.0
        %1824 = vmatprep.subr.mxu0 0.0
        %1825 = vmatpush1.msra.mxu0 0.0
        %1826 = vmatprep.subr.mxu0 0.0
        %1827 = vmatpush1.msra.mxu0 0.0
        %1828 = vmatprep.subr.mxu0 0.0
        %1829 = vmatpush1.msra.mxu0 0.0
        %1830 = vmatprep.subr.mxu0 0.0
        %1831 = vmatpush1.msra.mxu0 0.0
        %1832 = vmatprep.subr.mxu0 0.0
        %1833 = vmatpush1.msra.mxu0 0.0
        %1834 = vmatprep.subr.mxu0 0.0
        %1835 = vmatpush1.msra.mxu0 0.0
        %1836 = vmatprep.subr.mxu0 0.0
        %1837 = vmatpush1.msra.mxu0 0.0
        %1838 = vmatprep.subr.mxu0 0.0
        %1839 = vmatpush1.msra.mxu0 0.0
        %1840 = vmatprep.subr.mxu0 0.0
        %1841 = vmatpush1.msra.mxu0 0.0
        %1842 = vmatprep.subr.mxu0 0.0
        %1843 = vmatpush1.msra.mxu0 0.0
        %1844 = vmatprep.subr.mxu0 0.0
        %1845 = vmatpush1.msra.mxu0 0.0
        %1846 = vmatprep.mubr.f32.mxu0 0.0
        %1847 = vmatmul.mubr.f32.gmra.mrb[0].mxu0 %v1774
        %v1848 = vpop.f32.mrb[0].mxu0
        %v1849 = vadd.f32 %v1769, %v1848
        %v1850 = vpop.f32.mrb[0].mxu0
        %v1851 = vadd.f32 %v1771, %v1850
        %1852 = vdwg.mxu0
        %v1853 = vld [vmem:[%s13] sm:$0xf]
        %1855 = vset.pattern.permute.xlu0 0
        %1856 = vperm.xlu0 %1855, %v1853
        %v1857 = vpop.permute.xlu0 %1856
        %v1859 = vadd.f32 %v1849, %v1857
        %v1860 = vadd.f32 %v1851, %v1857
        %v1861 = vmax.f32 %v1859, 0.0
        %v1862 = vmax.f32 %v1860, 0.0
        %v1864 = vrot.slane %v1696, 4
        %v1866 = vadd.f32 %v1480, %v1864
        %v1867 = vld [vmem:[%s14] sm:$0xf]
        %1869 = vset.pattern.permute.xlu0 0
        %1870 = vperm.xlu0 %1869, %v1867
        %v1871 = vpop.permute.xlu0 %1870
        %v1872 = vrot.slane %v1871, 4
        %v1874 = vadd.f32 %v1866, %v1872
        %v1875 = vmax.f32 %v1874, 0.0
        %v1876 = vld [vmem:[%s15] sm:$0xff]
        %1877 = vst [vmem:[#allocation2] sm:$0xff] 0.0
        %1878 = vst.msk [vmem:[#allocation2 + $0x8] sm:$0xf] %vm1088, 0.0
        %v1881 = vcombine.low %v1861, %v1862
        %1882 = vrot.lane.b32.xlu0 %v1881, 17
        %v1883 = vpop.permute.xlu0 %1882
        %v1884 = vrot.slane %v1883, 4
        %v1885 = vsel %vm1094, %v1884, %v1883
        %1888 = vst.msk [vmem:[#allocation2] sm:$0xff] %vm1100, %v1885
        %1889 = vst.msk [vmem:[#allocation2 + $0x8] sm:$0xf] %vm1102, %v1884
        %v1890 = vld [vmem:[#allocation2] sm:$0xff]
        %v1892 = vcombine.high %v1890, %v1890
        %v1894 = vsel %vm1132, %v1890, 0.0
        %v1895 = vsel %vm1133, %v1892, 0.0
        %1896 = vst [vmem:[#allocation4] sm:$0xf] %v1894
        %1897 = vst [vmem:[#allocation4 + $0x8] sm:$0xf] %v1895
        %v1898 = vld [vmem:[#allocation2] sm:$0xff]
        %v1899 = vld [vmem:[#allocation2 + $0x8] sm:$0xf]
        %v1902 = vcombine.low %v1898, %v1898
        %v1903 = vcombine.low %v1899, %v1899
        %1904 = vrot.lane.b32.xlu0 %v1902, 127
        %v1905 = vpop.permute.xlu0 %1904
        %1906 = vrot.lane.b32.xlu0 %v1898, 127
        %v1907 = vpop.permute.xlu0 %1906
        %1908 = vrot.lane.b32.xlu0 %v1903, 127
        %v1909 = vpop.permute.xlu0 %1908
        %v1910 = vsel %vm1153, %v1905, %v1907
        %v1911 = vsel %vm1153, %v1907, %v1909
        %1914 = vst [vmem:[#allocation4] sm:$0xf0] %v1910
        %1915 = vst [vmem:[#allocation4 + $0x8] sm:$0xf0] %v1911
        %v1916 = vld [vmem:[#allocation2] sm:$0xff]
        %v1917 = vld [vmem:[#allocation2 + $0x8] sm:$0xf]
        %v1920 = vcombine.high %v1916, %v1916
        %1921 = vrot.lane.b32.xlu0 %v1916, 126
        %v1922 = vpop.permute.xlu0 %1921
        %1923 = vrot.lane.b32.xlu0 %v1920, 126
        %v1924 = vpop.permute.xlu0 %1923
        %1925 = vrot.lane.b32.xlu0 %v1917, 126
        %v1926 = vpop.permute.xlu0 %1925
        %v1927 = vsel %vm1173, %v1922, %v1924
        %v1928 = vsel %vm1173, %v1924, %v1926
        %v1931 = vsel %vm1162, %v1927, 0.0
        %v1932 = vsel %vm1163, %v1928, 0.0
        %1933 = vst [vmem:[#allocation4 + $0x10] sm:$0xf] %v1931
        %1934 = vst [vmem:[#allocation4 + $0x18] sm:$0xf] %v1932
        %v1935 = vld [vmem:[#allocation2] sm:$0xff]
        %v1936 = vld [vmem:[#allocation2 + $0x8] sm:$0xf]
        %v1939 = vcombine.high %v1935, %v1935
        %1940 = vrot.lane.b32.xlu0 %v1935, 112
        %v1941 = vpop.permute.xlu0 %1940
        %1942 = vrot.lane.b32.xlu0 %v1939, 112
        %v1943 = vpop.permute.xlu0 %1942
        %1944 = vrot.lane.b32.xlu0 %v1936, 112
        %v1945 = vpop.permute.xlu0 %1944
        %v1946 = vsel %vm1193, %v1941, %v1943
        %v1947 = vsel %vm1193, %v1943, %v1945
        %v1950 = vsel %vm1132, %v1946, 0.0
        %v1951 = vsel %vm1133, %v1947, 0.0
        %v1954 = vrot.slane %v1950, 4
        %v1955 = vrot.slane %v1951, 4
        %1958 = vst [vmem:[#allocation4 + $0x10] sm:$0xf0] %v1954
        %1959 = vst [vmem:[#allocation4 + $0x18] sm:$0xf0] %v1955
        %v1960 = vld [vmem:[#allocation2] sm:$0xff]
        %v1961 = vld [vmem:[#allocation2 + $0x8] sm:$0xf]
        %v1964 = vcombine.high %v1960, %v1960
        %1965 = vrot.lane.b32.xlu0 %v1960, 111
        %v1966 = vpop.permute.xlu0 %1965
        %1967 = vrot.lane.b32.xlu0 %v1964, 111
        %v1968 = vpop.permute.xlu0 %1967
        %1969 = vrot.lane.b32.xlu0 %v1961, 111
        %v1970 = vpop.permute.xlu0 %1969
        %v1971 = vsel %vm1219, %v1966, %v1968
        %v1972 = vsel %vm1219, %v1968, %v1970
        %1975 = vst [vmem:[#allocation4 + $0x20] sm:$0xf] %v1971
        %1976 = vst [vmem:[#allocation4 + $0x28] sm:$0xf] %v1972
        %v1977 = vld [vmem:[#allocation2] sm:$0xff]
        %v1978 = vld [vmem:[#allocation2 + $0x8] sm:$0xf]
        %v1981 = vcombine.high %v1977, %v1977
        %1982 = vrot.lane.b32.xlu0 %v1977, 110
        %v1983 = vpop.permute.xlu0 %1982
        %1984 = vrot.lane.b32.xlu0 %v1981, 110
        %v1985 = vpop.permute.xlu0 %1984
        %1986 = vrot.lane.b32.xlu0 %v1978, 110
        %v1987 = vpop.permute.xlu0 %1986
        %v1988 = vsel %vm1237, %v1983, %v1985
        %v1989 = vsel %vm1237, %v1985, %v1987
        %v1992 = vsel %vm1162, %v1988, 0.0
        %v1993 = vsel %vm1163, %v1989, 0.0
        %v1996 = vrot.slane %v1992, 4
        %v1997 = vrot.slane %v1993, 4
        %2000 = vst [vmem:[#allocation4 + $0x20] sm:$0xf0] %v1996
        %2001 = vst [vmem:[#allocation4 + $0x28] sm:$0xf0] %v1997
        %v2002 = vld [vmem:[#allocation2] sm:$0xff]
        %v2003 = vld [vmem:[#allocation2 + $0x8] sm:$0xf]
        %v2006 = vcombine.high %v2002, %v2002
        %2007 = vrot.lane.b32.xlu0 %v2002, 96
        %v2008 = vpop.permute.xlu0 %2007
        %2009 = vrot.lane.b32.xlu0 %v2006, 96
        %v2010 = vpop.permute.xlu0 %2009
        %2011 = vrot.lane.b32.xlu0 %v2003, 96
        %v2012 = vpop.permute.xlu0 %2011
        %v2013 = vsel %vm1263, %v2008, %v2010
        %v2014 = vsel %vm1263, %v2010, %v2012
        %v2017 = vsel %vm1132, %v2013, 0.0
        %v2018 = vsel %vm1133, %v2014, 0.0
        %2019 = vst [vmem:[#allocation4 + $0x30] sm:$0xf] %v2017
        %2020 = vst [vmem:[#allocation4 + $0x38] sm:$0xf] %v2018
        %v2021 = vld [vmem:[#allocation2] sm:$0xff]
        %v2022 = vld [vmem:[#allocation2 + $0x8] sm:$0xf]
        %v2025 = vcombine.low %v2021, %v2021
        %v2026 = vcombine.low %v2022, %v2022
        %2027 = vrot.lane.b32.xlu0 %v2025, 95
        %v2028 = vpop.permute.xlu0 %2027
        %2029 = vrot.lane.b32.xlu0 %v2021, 95
        %v2030 = vpop.permute.xlu0 %2029
        %2031 = vrot.lane.b32.xlu0 %v2026, 95
        %v2032 = vpop.permute.xlu0 %2031
        %v2033 = vsel %vm1284, %v2028, %v2030
        %v2034 = vsel %vm1284, %v2030, %v2032
        %2037 = vst [vmem:[#allocation4 + $0x30] sm:$0xf0] %v2033
        %2038 = vst [vmem:[#allocation4 + $0x38] sm:$0xf0] %v2034
        %v2039 = vld [vmem:[#allocation2] sm:$0xff]
        %v2040 = vld [vmem:[#allocation2 + $0x8] sm:$0xf]
        %v2043 = vcombine.high %v2039, %v2039
        %2044 = vrot.lane.b32.xlu0 %v2039, 94
        %v2045 = vpop.permute.xlu0 %2044
        %2046 = vrot.lane.b32.xlu0 %v2043, 94
        %v2047 = vpop.permute.xlu0 %2046
        %2048 = vrot.lane.b32.xlu0 %v2040, 94
        %v2049 = vpop.permute.xlu0 %2048
        %v2050 = vsel %vm1302, %v2045, %v2047
        %v2051 = vsel %vm1302, %v2047, %v2049
        %v2054 = vsel %vm1162, %v2050, 0.0
        %v2055 = vsel %vm1163, %v2051, 0.0
        %2056 = vst [vmem:[#allocation4 + $0x40] sm:$0xf] %v2054
        %2057 = vst [vmem:[#allocation4 + $0x48] sm:$0xf] %v2055
        %v2058 = vld [vmem:[#allocation4] sm:$0xff]
        %v2059 = vld [vmem:[#allocation4 + $0x8] sm:$0xff]
        %v2060 = vld [vmem:[#allocation4 + $0x10] sm:$0xff]
        %v2061 = vld [vmem:[#allocation4 + $0x18] sm:$0xff]
        %v2062 = vld [vmem:[#allocation4 + $0x20] sm:$0xff]
        %v2063 = vld [vmem:[#allocation4 + $0x28] sm:$0xff]
        %v2064 = vld [vmem:[#allocation4 + $0x30] sm:$0xff]
        %v2065 = vld [vmem:[#allocation4 + $0x38] sm:$0xff]
        %v2066 = vld [vmem:[#allocation4 + $0x40] sm:$0xf]
        %v2067 = vld [vmem:[#allocation4 + $0x48] sm:$0xf]
        %v2068 = vld [vmem:[%s16] sm:$0xff]
        %2069 = vst.msk [vmem:[#allocation3] sm:$0xf] %vm1322, 0.0
        %2071 = vrot.lane.b32.xlu0 %v1875, 9
        %v2072 = vpop.permute.xlu0 %2071
        %vm2074 = vcmask 597068
        %2075 = vst.msk [vmem:[#allocation3 - $0x4] sm:$0xf0] %vm2074, %v2072
        %v2076 = vld [vmem:[#allocation3] sm:$0xf]
        %v2077 = vsel %vm1343, %v2076, 0.0
        %2078 = vst.msk [vmem:[#allocation5] sm:$0xf] %vm1345, %v2077
        %v2079 = vld [vmem:[#allocation3] sm:$0xf]
        %2081 = vrot.lane.b32.xlu0 %v2079, 127
        %v2082 = vpop.permute.xlu0 %2081
        %2084 = vst.msk [vmem:[#allocation5 + $0x4] sm:$0xf] %vm1345, %v2082
        %v2085 = vld [vmem:[#allocation3] sm:$0xf]
        %2087 = vrot.lane.b32.xlu0 %v2085, 126
        %v2088 = vpop.permute.xlu0 %2087
        %v2090 = vsel %vm1354, %v2088, 0.0
        %2091 = vst.msk [vmem:[#allocation5 + $0x8] sm:$0xf] %vm1345, %v2090
        %v2092 = vld [vmem:[#allocation3] sm:$0xf]
        %2094 = vrot.lane.b32.xlu0 %v2092, 120
        %v2095 = vpop.permute.xlu0 %2094
        %v2097 = vsel %vm1343, %v2095, 0.0
        %2098 = vst.msk [vmem:[#allocation5 + $0xc] sm:$0xf] %vm1345, %v2097
        %v2099 = vld [vmem:[#allocation3] sm:$0xf]
        %2101 = vrot.lane.b32.xlu0 %v2099, 119
        %v2102 = vpop.permute.xlu0 %2101
        %2104 = vst.msk [vmem:[#allocation5 + $0x10] sm:$0xf] %vm1345, %v2102
        %v2105 = vld [vmem:[#allocation3] sm:$0xf]
        %2107 = vrot.lane.b32.xlu0 %v2105, 118
        %v2108 = vpop.permute.xlu0 %2107
        %v2110 = vsel %vm1354, %v2108, 0.0
        %2111 = vst.msk [vmem:[#allocation5 + $0x14] sm:$0xf] %vm1345, %v2110
        %v2112 = vld [vmem:[#allocation3] sm:$0xf]
        %2114 = vrot.lane.b32.xlu0 %v2112, 112
        %v2115 = vpop.permute.xlu0 %2114
        %v2117 = vsel %vm1343, %v2115, 0.0
        %2118 = vst.msk [vmem:[#allocation5 + $0x18] sm:$0xf] %vm1345, %v2117
        %v2119 = vld [vmem:[#allocation3] sm:$0xf]
        %2121 = vrot.lane.b32.xlu0 %v2119, 111
        %v2122 = vpop.permute.xlu0 %2121
        %2124 = vst.msk [vmem:[#allocation5 + $0x1c] sm:$0xf] %vm1345, %v2122
        %v2125 = vld [vmem:[#allocation3] sm:$0xf]
        %2127 = vrot.lane.b32.xlu0 %v2125, 110
        %v2128 = vpop.permute.xlu0 %2127
        %v2130 = vsel %vm1354, %v2128, 0.0
        %2131 = vst.msk [vmem:[#allocation5 + $0x20] sm:$0xf] %vm1345, %v2130
        %v2132 = vld [vmem:[#allocation5] sm:$0xff]
        %v2133 = vld [vmem:[#allocation5 + $0x8] sm:$0xff]
        %v2134 = vld [vmem:[#allocation5 + $0x10] sm:$0xff]
        %v2135 = vld [vmem:[#allocation5 + $0x18] sm:$0xff]
        %v2136 = vld [vmem:[#allocation5 + $0x20] sm:$0xf]
        %v2138 = vsel %vm1406, %v2068, 0
        %v2141 = vsel %vm840, %v2136, 0
        %2143 = vmatprep.subr.mxu0 0.0
        %2144 = vmatpush1.msra.mxu0 %v2132
        %2145 = vmatprep.subr.mxu0 0.0
        %2146 = vmatpush1.msra.mxu0 %v2133
        %2147 = vmatprep.subr.mxu0 0.0
        %2148 = vmatpush1.msra.mxu0 %v2134
        %2149 = vmatprep.subr.mxu0 0.0
        %2150 = vmatpush1.msra.mxu0 %v2135
        %2151 = vmatprep.subr.mxu0 0.0
        %2152 = vmatpush1.msra.mxu0 %v2141
        %2153 = vmatprep.subr.mxu0 0.0
        %2154 = vmatpush1.msra.mxu0 0.0
        %2155 = vmatprep.subr.mxu0 0.0
        %2156 = vmatpush1.msra.mxu0 0.0
        %2157 = vmatprep.subr.mxu0 0.0
        %2158 = vmatpush1.msra.mxu0 0.0
        %2159 = vmatprep.subr.mxu0 0.0
        %2160 = vmatpush1.msra.mxu0 0.0
        %2161 = vmatprep.subr.mxu0 0.0
        %2162 = vmatpush1.msra.mxu0 0.0
        %2163 = vmatprep.subr.mxu0 0.0
        %2164 = vmatpush1.msra.mxu0 0.0
        %2165 = vmatprep.subr.mxu0 0.0
        %2166 = vmatpush1.msra.mxu0 0.0
        %2167 = vmatprep.subr.mxu0 0.0
        %2168 = vmatpush1.msra.mxu0 0.0
        %2169 = vmatprep.subr.mxu0 0.0
        %2170 = vmatpush1.msra.mxu0 0.0
        %2171 = vmatprep.subr.mxu0 0.0
        %2172 = vmatpush1.msra.mxu0 0.0
        %2173 = vmatprep.subr.mxu0 0.0
        %2174 = vmatpush1.msra.mxu0 0.0
        %2175 = vmatprep.subr.mxu0 0.0
        %2176 = vmatpush1.msra.mxu0 0.0
        %2177 = vmatprep.subr.mxu0 0.0
        %2178 = vmatpush1.msra.mxu0 0.0
        %2179 = vmatprep.subr.mxu0 0.0
        %2180 = vmatpush1.msra.mxu0 0.0
        %2181 = vmatprep.subr.mxu0 0.0
        %2182 = vmatpush1.msra.mxu0 0.0
        %2183 = vmatprep.subr.mxu0 0.0
        %2184 = vmatpush1.msra.mxu0 0.0
        %2185 = vmatprep.subr.mxu0 0.0
        %2186 = vmatpush1.msra.mxu0 0.0
        %2187 = vmatprep.subr.mxu0 0.0
        %2188 = vmatpush1.msra.mxu0 0.0
        %2189 = vmatprep.subr.mxu0 0.0
        %2190 = vmatpush1.msra.mxu0 0.0
        %2191 = vmatprep.subr.mxu0 0.0
        %2192 = vmatpush1.msra.mxu0 0.0
        %2193 = vmatprep.subr.mxu0 0.0
        %2194 = vmatpush1.msra.mxu0 0.0
        %2195 = vmatprep.subr.mxu0 0.0
        %2196 = vmatpush1.msra.mxu0 0.0
        %2197 = vmatprep.subr.mxu0 0.0
        %2198 = vmatpush1.msra.mxu0 0.0
        %2199 = vmatprep.subr.mxu0 0.0
        %2200 = vmatpush1.msra.mxu0 0.0
        %2201 = vmatprep.subr.mxu0 0.0
        %2202 = vmatpush1.msra.mxu0 0.0
        %2203 = vmatprep.subr.mxu0 0.0
        %2204 = vmatpush1.msra.mxu0 0.0
        %2205 = vmatprep.subr.mxu0 0.0
        %2206 = vmatpush1.msra.mxu0 0.0
        %2207 = vmatprep.mubr.f32.mxu0 0.0
        %2208 = vmatmul.mubr.f32.gmra.mrb[0].mxu0 %v2138
        %v2209 = vpop.f32.mrb[0].mxu0
        %v2210 = vadd.f32 0.0, %v2209
        %v2211 = vpop.f32.mrb[0].mxu0
        %2212 = vdwg.mxu0
        %v2214 = vsel %vm678, %v2210, 0
        %2216 = vmatprep.subr.mxu0 %v631
        %2217 = vmatpush1.msra.mxu0 %v630
        %2218 = vmatprep.subr.mxu0 %v633
        %2219 = vmatpush1.msra.mxu0 %v632
        %2220 = vmatprep.subr.mxu0 %v635
        %2221 = vmatpush1.msra.mxu0 %v634
        %2222 = vmatprep.subr.mxu0 %v637
        %2223 = vmatpush1.msra.mxu0 %v636
        %2224 = vmatprep.subr.mxu0 %v639
        %2225 = vmatpush1.msra.mxu0 %v638
        %2226 = vmatprep.subr.mxu0 %v641
        %2227 = vmatpush1.msra.mxu0 %v640
        %2228 = vmatprep.subr.mxu0 %v643
        %2229 = vmatpush1.msra.mxu0 %v642
        %2230 = vmatprep.subr.mxu0 %v645
        %2231 = vmatpush1.msra.mxu0 %v644
        %2232 = vmatprep.subr.mxu0 0.0
        %2233 = vmatpush1.msra.mxu0 0.0
        %2234 = vmatprep.subr.mxu0 0.0
        %2235 = vmatpush1.msra.mxu0 0.0
        %2236 = vmatprep.subr.mxu0 0.0
        %2237 = vmatpush1.msra.mxu0 0.0
        %2238 = vmatprep.subr.mxu0 0.0
        %2239 = vmatpush1.msra.mxu0 0.0
        %2240 = vmatprep.subr.mxu0 0.0
        %2241 = vmatpush1.msra.mxu0 0.0
        %2242 = vmatprep.subr.mxu0 0.0
        %2243 = vmatpush1.msra.mxu0 0.0
        %2244 = vmatprep.subr.mxu0 0.0
        %2245 = vmatpush1.msra.mxu0 0.0
        %2246 = vmatprep.subr.mxu0 0.0
        %2247 = vmatpush1.msra.mxu0 0.0
        %2248 = vmatprep.subr.mxu0 0.0
        %2249 = vmatpush1.msra.mxu0 0.0
        %2250 = vmatprep.subr.mxu0 0.0
        %2251 = vmatpush1.msra.mxu0 0.0
        %2252 = vmatprep.subr.mxu0 0.0
        %2253 = vmatpush1.msra.mxu0 0.0
        %2254 = vmatprep.subr.mxu0 0.0
        %2255 = vmatpush1.msra.mxu0 0.0
        %2256 = vmatprep.subr.mxu0 0.0
        %2257 = vmatpush1.msra.mxu0 0.0
        %2258 = vmatprep.subr.mxu0 0.0
        %2259 = vmatpush1.msra.mxu0 0.0
        %2260 = vmatprep.subr.mxu0 0.0
        %2261 = vmatpush1.msra.mxu0 0.0
        %2262 = vmatprep.subr.mxu0 0.0
        %2263 = vmatpush1.msra.mxu0 0.0
        %2264 = vmatprep.subr.mxu0 0.0
        %2265 = vmatpush1.msra.mxu0 0.0
        %2266 = vmatprep.subr.mxu0 0.0
        %2267 = vmatpush1.msra.mxu0 0.0
        %2268 = vmatprep.subr.mxu0 0.0
        %2269 = vmatpush1.msra.mxu0 0.0
        %2270 = vmatprep.subr.mxu0 0.0
        %2271 = vmatpush1.msra.mxu0 0.0
        %2272 = vmatprep.subr.mxu0 0.0
        %2273 = vmatpush1.msra.mxu0 0.0
        %2274 = vmatprep.subr.mxu0 0.0
        %2275 = vmatpush1.msra.mxu0 0.0
        %2276 = vmatprep.subr.mxu0 0.0
        %2277 = vmatpush1.msra.mxu0 0.0
        %2278 = vmatprep.subr.mxu0 0.0
        %2279 = vmatpush1.msra.mxu0 0.0
        %2280 = vmatprep.mubr.f32.mxu0 0.0
        %2281 = vmatmul.mubr.f32.gmra.mrb[0].mxu0 %v2214
        %v2282 = vpop.f32.mrb[0].mxu0
        %v2283 = vadd.f32 0.0, %v2282
        %v2284 = vpop.f32.mrb[0].mxu0
        %v2285 = vadd.f32 0.0, %v2284
        %2286 = vdwg.mxu0
        %v2288 = vsel %vm1406, %v1876, 0
        %v2291 = vsel %vm840, %v2066, 0
        %v2294 = vsel %vm840, %v2067, 0
        %2296 = vmatprep.subr.mxu0 %v2059
        %2297 = vmatpush1.msra.mxu0 %v2058
        %2298 = vmatprep.subr.mxu0 %v2061
        %2299 = vmatpush1.msra.mxu0 %v2060
        %2300 = vmatprep.subr.mxu0 %v2063
        %2301 = vmatpush1.msra.mxu0 %v2062
        %2302 = vmatprep.subr.mxu0 %v2065
        %2303 = vmatpush1.msra.mxu0 %v2064
        %2304 = vmatprep.subr.mxu0 %v2294
        %2305 = vmatpush1.msra.mxu0 %v2291
        %2306 = vmatprep.subr.mxu0 0.0
        %2307 = vmatpush1.msra.mxu0 0.0
        %2308 = vmatprep.subr.mxu0 0.0
        %2309 = vmatpush1.msra.mxu0 0.0
        %2310 = vmatprep.subr.mxu0 0.0
        %2311 = vmatpush1.msra.mxu0 0.0
        %2312 = vmatprep.subr.mxu0 0.0
        %2313 = vmatpush1.msra.mxu0 0.0
        %2314 = vmatprep.subr.mxu0 0.0
        %2315 = vmatpush1.msra.mxu0 0.0
        %2316 = vmatprep.subr.mxu0 0.0
        %2317 = vmatpush1.msra.mxu0 0.0
        %2318 = vmatprep.subr.mxu0 0.0
        %2319 = vmatpush1.msra.mxu0 0.0
        %2320 = vmatprep.subr.mxu0 0.0
        %2321 = vmatpush1.msra.mxu0 0.0
        %2322 = vmatprep.subr.mxu0 0.0
        %2323 = vmatpush1.msra.mxu0 0.0
        %2324 = vmatprep.subr.mxu0 0.0
        %2325 = vmatpush1.msra.mxu0 0.0
        %2326 = vmatprep.subr.mxu0 0.0
        %2327 = vmatpush1.msra.mxu0 0.0
        %2328 = vmatprep.subr.mxu0 0.0
        %2329 = vmatpush1.msra.mxu0 0.0
        %2330 = vmatprep.subr.mxu0 0.0
        %2331 = vmatpush1.msra.mxu0 0.0
        %2332 = vmatprep.subr.mxu0 0.0
        %2333 = vmatpush1.msra.mxu0 0.0
        %2334 = vmatprep.subr.mxu0 0.0
        %2335 = vmatpush1.msra.mxu0 0.0
        %2336 = vmatprep.subr.mxu0 0.0
        %2337 = vmatpush1.msra.mxu0 0.0
        %2338 = vmatprep.subr.mxu0 0.0
        %2339 = vmatpush1.msra.mxu0 0.0
        %2340 = vmatprep.subr.mxu0 0.0
        %2341 = vmatpush1.msra.mxu0 0.0
        %2342 = vmatprep.subr.mxu0 0.0
        %2343 = vmatpush1.msra.mxu0 0.0
        %2344 = vmatprep.subr.mxu0 0.0
        %2345 = vmatpush1.msra.mxu0 0.0
        %2346 = vmatprep.subr.mxu0 0.0
        %2347 = vmatpush1.msra.mxu0 0.0
        %2348 = vmatprep.subr.mxu0 0.0
        %2349 = vmatpush1.msra.mxu0 0.0
        %2350 = vmatprep.subr.mxu0 0.0
        %2351 = vmatpush1.msra.mxu0 0.0
        %2352 = vmatprep.subr.mxu0 0.0
        %2353 = vmatpush1.msra.mxu0 0.0
        %2354 = vmatprep.subr.mxu0 0.0
        %2355 = vmatpush1.msra.mxu0 0.0
        %2356 = vmatprep.subr.mxu0 0.0
        %2357 = vmatpush1.msra.mxu0 0.0
        %2358 = vmatprep.subr.mxu0 0.0
        %2359 = vmatpush1.msra.mxu0 0.0
        %2360 = vmatprep.mubr.f32.mxu0 0.0
        %2361 = vmatmul.mubr.f32.gmra.mrb[0].mxu0 %v2288
        %v2362 = vpop.f32.mrb[0].mxu0
        %v2363 = vadd.f32 %v2283, %v2362
        %v2364 = vpop.f32.mrb[0].mxu0
        %v2365 = vadd.f32 %v2285, %v2364
        %2366 = vdwg.mxu0
        %v2367 = vld [vmem:[%s17] sm:$0xff]
        %2369 = vset.pattern.permute.xlu0 0
        %2370 = vperm.xlu0 %2369, %v2367
        %v2371 = vpop.permute.xlu0 %2370
        %v2373 = vadd.f32 %v2363, %v2371
        %v2374 = vadd.f32 %v2365, %v2371
        %v2375 = vmax.f32 %v2373, 0.0
        %v2376 = vmax.f32 %v2374, 0.0
        %2377 = vst [vmem:[%s624] sm:$0xff] %v2375
        %2378 = vst [vmem:[%s624 + $0x8] sm:$0xff] %v2376
        %p2379 = scmp.lt.s32.totalorder %s30, 1
        %s2380 = scalar_select %p2379, %s30, 1
        %s2381 = smul.addr %s2380, 2
        %s2382 = smul.addr %s2381, 8
        %s2383 = scalar_lea.vmem %s18, %s2382
        // Predicated region
        $region97: #{_lambda_.1} parent=91 // pred_check
          %p2384 = pneg %p441
        $region98: #{_lambda_.1} parent=91 // pred_check_branch
          %2386 = sbr.rel (%p2384) target = $region100
        $region99: #{_lambda_.1} parent=91 // pred_region
          _
        $region100: #{_lambda_.1} parent=91 // pred_fallthru
          _
      $region92: #{_lambda_.1} parent=5 // pred_fallthru
        _
      %p2387 = scmp.le.s32.totalorder 2, %s25
      // Predicated region
      $region101: #{_lambda_.1} parent=5 // pred_check
        %p2388 = pneg %p2387
      $region102: #{_lambda_.1} parent=5 // pred_check_branch
        %2390 = sbr.rel (%p2388) target = $region104
      $region103: #{_lambda_.1} parent=5 // pred_region
        %s2391 = ssub.s32 %s25, 2
        // Predicated region
        $region105: #{_lambda_.1} parent=103 // pred_check
          %p2392 = pneg %p447
        $region106: #{_lambda_.1} parent=103 // pred_check_branch
          %2394 = sbr.rel (%p2392) target = $region108
        $region107: #{_lambda_.1} parent=103 // pred_region
          %p2395 = scmp.lt.s32.totalorder %s31, 1
          %s2396 = scalar_select %p2395, %s31, 1
          %s2397 = smul.addr %s2396, 2
          %s2398 = smul.addr %s2397, 8
          %s2399 = scalar_lea.vmem %s18, %s2398
        $region108: #{_lambda_.1} parent=103 // pred_fallthru
          _
      $region104: #{_lambda_.1} parent=5 // pred_fallthru
        _
    $region6: #{_lambda_.1} parent=1 // loop_footer
      %s29 = sadd.s32 1, %s25
    $region7: #{_lambda_.1} parent=1 // loop_footer_branch
      %24 = sbr.rel target = $region3
    $region8: #{_lambda_.1} parent=1 // loop_exit
      _
    %2400 = vsyncpa [#allocation9], 1
    %s2401 = scalar_lea.sflag [#allocation9], 1
    %2402 = vsyncpa %s2401, 1

</llo_original>
